<compile_context>
chip_gen: v6e
topology: v6e:2x2x1
jax: 0.10.0
libtpu: 0.0.40
codegen_flags: <defaults>
</compile_context>

<pallas_src>
import functools

import numpy as np

import jax
import jax.numpy as jnp
from jax.experimental import pallas as pl
from jax.experimental.pallas import tpu as pltpu

_LANE = 128


def _round_up(x, m):
    return (x + m - 1) // m * m


def _fused_deep_attn_kernel(x_ref, w_ref, o_ref, *, normalize, a_p, d_p, bt, t,
                            weights_resident, mxu_dtype, approx_reciprocal,
                            precision):
    """One grid step == (one batch tile, one attention layer).

    x_ref : (bt, t, d_p)            padded input activations (read at layer 0)
    w_ref : (L, d_p, 2*a_p + d_p)   resident weight stack (weights_resident)
            (1, d_p, 2*a_p + d_p)   this layer's weights   (streamed)
    o_ref : (bt, t, d_p) f32        output block; also the VMEM-resident
                                    running activation across the layer axis.
    """
    layer = pl.program_id(1)

    @pl.when(layer == 0)
    def _():
        # Initialize the resident accumulator from the input tile.
        o_ref[...] = x_ref[...].astype(jnp.float32)

    x = o_ref[...]                                            # (bt, t, d_p) f32
    w = w_ref[layer] if weights_resident else w_ref[0]        # (d_p, 2a_p+d_p)

    # Fused projection: [Qx | Kx | Vx] = x @ [Q^T | K^T | V^T].
    # Slice offsets a_p and 2*a_p are multiples of 128 -> free views.
    proj = jnp.dot(x.reshape(bt * t, d_p).astype(mxu_dtype),
                   w.astype(mxu_dtype),
                   preferred_element_type=jnp.float32,
                   precision=precision)                       # (bt*t, 2a_p+d_p)
    proj = proj.reshape(bt, t, 2 * a_p + d_p)
    qx = proj[:, :, :a_p]                                     # (bt, t, a_p)
    kx = proj[:, :, a_p:2 * a_p]                              # (bt, t, a_p)
    vx = proj[:, :, 2 * a_p:]                                 # (bt, t, d_p)

    # s[b, j, i] = Qx[b, j] . Kx[b, i]   (== A[b, i, j] in the torch code)
    s = jnp.einsum("bja,bia->bji",
                   qx.astype(mxu_dtype), kx.astype(mxu_dtype),
                   preferred_element_type=jnp.float32,
                   precision=precision)                       # (bt, t, t)

    if normalize:
        # torch softmax(A, dim=1) == softmax over i == last axis of s here.
        s_max = jnp.max(s, axis=-1, keepdims=True)
        e = jnp.exp(s - s_max)
        denom = jnp.sum(e, axis=-1, keepdims=True)
        s = e * pl.reciprocal(denom, approx=approx_reciprocal)

    # out[b, j] = sum_i s[b, j, i] * Vx[b, i]
    out = jnp.einsum("bji,bid->bjd",
                     s.astype(mxu_dtype), vx.astype(mxu_dtype),
                     preferred_element_type=jnp.float32,
                     precision=precision)                     # (bt, t, d_p)
    o_ref[...] = out


def _pick_batch_tile(B, T, *, rows_target=256, score_budget_bytes=8 << 20):
    """Pack ~rows_target rows (bt*T) of M into the projection matmul (fills the
    256-wide v6e/v7x MXU; v5e just runs two 128-row passes).  Cap bt so the
    (bt, T, T) f32 score tile stays within a few MiB of VMEM.  On v7x one may
    want bt <= B//2 so both TensorCores get a batch tile; fatter tiles win on
    the single-core v5e/v6e parts, so no clamp is applied by default."""
    bt = max(1, rows_target // max(T, 1))
    bt = min(bt, max(1, score_budget_bytes // max(T * T * 4, 1)))
    return max(1, min(bt, B))


def deep_attn_pallas(x, params, *, normalize=True, batch_tile=None,
                     mxu_dtype=jnp.float32, approx_reciprocal=False,
                     precision=jax.lax.Precision.HIGHEST,
                     weight_resident_budget_bytes=8 << 20):
    """Fused deep_attn forward: all L layers in one pallas_call."""
    B, T, d = x.shape
    L = len(params)
    a = params[0]["Q"].shape[0]

    # 128-lane-align the attention (a) and feature (d) dims.
    a_p = _round_up(a, _LANE)
    d_p = _round_up(d, _LANE)
    wcols = 2 * a_p + d_p

    def _pad_layer(p):
        q = jnp.zeros((d_p, a_p), jnp.float32).at[:d, :a].set(
            jnp.asarray(p["Q"], jnp.float32).T)
        k = jnp.zeros((d_p, a_p), jnp.float32).at[:d, :a].set(
            jnp.asarray(p["K"], jnp.float32).T)
        v = jnp.zeros((d_p, d_p), jnp.float32).at[:d, :d].set(
            jnp.asarray(p["V"], jnp.float32).T)
        return jnp.concatenate([q, k, v], axis=1)             # (d_p, wcols)

    wcat = jnp.stack([_pad_layer(p) for p in params], axis=0)  # (L, d_p, wcols)

    bt = batch_tile if batch_tile is not None else _pick_batch_tile(B, T)
    n_bt = pl.cdiv(B, bt)
    B_p = n_bt * bt
    # Zero-pad batch and feature dims; padded entries stay exactly zero through
    # every layer (zero weight rows/cols, independent batch rows) and are
    # sliced off on return.
    x_p = jnp.zeros((B_p, T, d_p), jnp.float32).at[:B, :, :d].set(
        x.astype(jnp.float32))

    # Weight residency: fetch the whole stack once if it fits the budget,
    # otherwise stream one layer per inner grid step (re-streamed per batch
    # tile, so maximizing bt also minimizes redundant weight HBM traffic).
    w_bytes_total = L * d_p * wcols * 4
    weights_resident = w_bytes_total <= weight_resident_budget_bytes
    if weights_resident:
        w_spec = pl.BlockSpec((L, d_p, wcols), lambda b, l: (0, 0, 0))
    else:
        w_spec = pl.BlockSpec((1, d_p, wcols), lambda b, l: (l, 0, 0))

    kernel = functools.partial(
        _fused_deep_attn_kernel, normalize=normalize, a_p=a_p, d_p=d_p, bt=bt,
        t=T, weights_resident=weights_resident, mxu_dtype=mxu_dtype,
        approx_reciprocal=approx_reciprocal, precision=precision)

    # Per-step VMEM residency estimate -> scoped VMEM limit (clamped to the
    # v7x 64 MiB physical ceiling).
    blk = bt * T * d_p * 4
    vmem_est = (4 * blk
                + (w_bytes_total if weights_resident else 2 * d_p * wcols * 4)
                + 2 * bt * T * wcols * 4        # proj intermediate
                + 2 * bt * T * T * 4            # score tile
                + (1 << 20))                    # headroom
    vmem_limit = int(min(64 << 20, max(32 << 20, 2 * vmem_est)))

    # NOTE: for very large T, tile the key axis flash-style so the (bt, T, T)
    # score tile stays small on v7x's 64 MiB VMEM; not needed at these shapes.
    out_p = pl.pallas_call(
        kernel,
        out_shape=jax.ShapeDtypeStruct((B_p, T, d_p), jnp.float32),
        grid_spec=pltpu.PrefetchScalarGridSpec(
            num_scalar_prefetch=0,
            grid=(n_bt, L),                     # batch tiles outer, layers inner
            in_specs=[
                # x: one batch tile, constant across the layer axis.
                pl.BlockSpec((bt, T, d_p), lambda b, l: (b, 0, 0)),
                w_spec,
            ],
            # Output block is constant across the layer axis -> resident
            # accumulator; written back to HBM once per batch tile.
            out_specs=pl.BlockSpec((bt, T, d_p), lambda b, l: (b, 0, 0)),
        ),
        compiler_params=pltpu.CompilerParams(
            dimension_semantics=("parallel", "arbitrary"),
            vmem_limit_bytes=vmem_limit),
    )(x_p, wcat)

    return out_p[:B, :, :d]


def init_deep_attn_params(key, l, d, a):
    """Deterministic stand-in for the torch.randn parameter init."""
    params = []
    for _ in range(l):
        kq, kk, kv, key = jax.random.split(key, 4)
        params.append(dict(
            Q=jax.random.normal(kq, (a, d), dtype=jnp.float32),
            K=jax.random.normal(kk, (a, d), dtype=jnp.float32),
            V=jax.random.normal(kv, (d, d), dtype=jnp.float32),
        ))
    return params


def _deep_attn_ref_np(x, params, *, normalize=True):
    """Exact float64 NumPy reference mirroring the PyTorch forward."""
    x = np.asarray(x, np.float64)
    for p in params:
        Q = np.asarray(p["Q"], np.float64)
        K = np.asarray(p["K"], np.float64)
        V = np.asarray(p["V"], np.float64)
        qx = x @ Q.T                                    # (B, T, a)
        kx = x @ K.T                                    # (B, T, a)
        vx = x @ V.T                                    # (B, T, d)
        A = np.einsum("bia,bja->bij", kx, qx)           # A[b,i,j] = Kx_i . Qx_j
        if normalize:
            A = A - A.max(axis=1, keepdims=True)        # softmax over i (dim=1)
            A = np.exp(A)
            A = A / A.sum(axis=1, keepdims=True)
        x = np.einsum("bij,bid->bjd", A, vx)            # sum_i A[b,i,j] Vx[b,i]
    return x


if __name__ == "__main__":
    # Small shapes consistent with the module: l=2 layers, d=32 features,
    # a=16 attention dim, batch B=2, sequence T=8.
    l, d, a = 2, 32, 16
    B, T = 2, 8

    key = jax.random.PRNGKey(0)
    kx_, kp = jax.random.split(key)
    x = jax.random.normal(kx_, (B, T, d), dtype=jnp.float32)
    params = init_deep_attn_params(kp, l, d, a)

    out = deep_attn_pallas(x, params, normalize=True)
    out = jax.block_until_ready(out)
    assert out.shape == (B, T, d)

    ref = _deep_attn_ref_np(
        np.asarray(jax.device_get(x)),
        [{k: np.asarray(jax.device_get(v)) for k, v in p.items()} for p in params],
        normalize=True)

    out_np = np.asarray(jax.device_get(out), np.float64)
    assert np.isfinite(out_np).all()
    scale = np.max(np.abs(ref)) + 1e-6
    err = np.max(np.abs(out_np - ref)) / scale
    assert err < 2e-3, f"max relative error {err:.3e} vs float64 reference"

    print("KERNEL_OK")
</pallas_src>

<mosaic_0001>
module attributes {stable_mosaic.version = 11 : i64} {
  func.func @_fused_deep_attn_kernel(%arg0: i32, %arg1: i32, %arg2: memref<2x8x128xf32, #tpu.memory_space<vmem>>, %arg3: memref<2x128x384xf32, #tpu.memory_space<vmem>>, %arg4: memref<2x8x128xf32, #tpu.memory_space<vmem>>) attributes {dimension_semantics = [#tpu.dimension_semantics<parallel>, #tpu.dimension_semantics<arbitrary>], iteration_bounds = array<i64: 1, 2>, scalar_prefetch = 0 : i64, scratch_operands = 0 : i64, tpu.core_type = #tpu.core_type<tc>, window_params = [{transform_indices = @transform_0, window_bounds = array<i64: 2, 8, 128>}, {pipeline_mode = #tpu.pipeline_mode<synchronous>, transform_indices = @transform_1, window_bounds = array<i64: 2, 128, 384>}, {transform_indices = @transform_2, window_bounds = array<i64: 2, 8, 128>}]} {
    %c0_i32 = arith.constant 0 : i32
    %0 = arith.cmpi eq, %arg1, %c0_i32 : i32
    %1 = arith.extui %0 : i1 to i32
    %c0_i32_0 = arith.constant 0 : i32
    %2 = arith.cmpi ne, %1, %c0_i32_0 : i32
    scf.if %2 {
      %c0_12 = arith.constant 0 : index
      %c0_13 = arith.constant 0 : index
      %c0_14 = arith.constant 0 : index
      %26 = vector.load %arg2[%c0_12, %c0_13, %c0_14] : memref<2x8x128xf32, #tpu.memory_space<vmem>>, vector<2x8x128xf32>
      %c0_15 = arith.constant 0 : index
      %c0_16 = arith.constant 0 : index
      %c0_17 = arith.constant 0 : index
      %27 = vector.load %arg4[%c0_15, %c0_16, %c0_17] : memref<2x8x128xf32, #tpu.memory_space<vmem>>, vector<2x8x128xf32>
      tpu.vector_store %arg4[%c0_15, %c0_16, %c0_17], %26 {strides = array<i32>} : memref<2x8x128xf32, #tpu.memory_space<vmem>>, vector<2x8x128xf32>,
    } else {
    }
    %c0 = arith.constant 0 : index
    %c0_1 = arith.constant 0 : index
    %c0_2 = arith.constant 0 : index
    %3 = vector.load %arg4[%c0, %c0_1, %c0_2] : memref<2x8x128xf32, #tpu.memory_space<vmem>>, vector<2x8x128xf32>
    %4 = arith.index_cast %arg1 : i32 to index
    %c0_3 = arith.constant 0 : index
    %c0_4 = arith.constant 0 : index
    %5 = vector.load %arg3[%4, %c0_3, %c0_4] : memref<2x128x384xf32, #tpu.memory_space<vmem>>, vector<1x128x384xf32>
    %6 = vector.shape_cast %5 : vector<1x128x384xf32> to vector<128x384xf32>
    %7 = vector.shape_cast %3 : vector<2x8x128xf32> to vector<16x128xf32>
    %cst = arith.constant dense<0.000000e+00> : vector<16x384xf32>
    %8 = tpu.matmul %7, %6, %cst {dimension_numbers = #tpu.dot_dimension_numbers<[1], [0], [0], [1], [0, 0, 1, 1], [], []>, precision = #tpu.contract_precision<fp32>} : vector<16x128xf32>, vector<128x384xf32>, vector<16x384xf32> -> vector<16x384xf32>
    %9 = vector.shape_cast %8 : vector<16x384xf32> to vector<2x8x384xf32>
    %10 = vector.extract_strided_slice %9 {offsets = [0, 0, 0], sizes = [2, 8, 128], strides = [1, 1, 1]} : vector<2x8x384xf32> to vector<2x8x128xf32>
    %11 = vector.extract_strided_slice %9 {offsets = [0, 0, 128], sizes = [2, 8, 128], strides = [1, 1, 1]} : vector<2x8x384xf32> to vector<2x8x128xf32>
    %12 = vector.extract_strided_slice %9 {offsets = [0, 0, 256], sizes = [2, 8, 128], strides = [1, 1, 1]} : vector<2x8x384xf32> to vector<2x8x128xf32>
    "tpu.trace_start"() <{level = 10 : i32, message = "bja,bia->bji"}> : () -> ()
    %cst_5 = arith.constant dense<0.000000e+00> : vector<2x8x8xf32>
    %13 = tpu.matmul %10, %11, %cst_5 {dimension_numbers = #tpu.dot_dimension_numbers<[2], [2], [1], [1], [0, 0, 0, 1, 1, 1], [0], [0]>, precision = #tpu.contract_precision<fp32>} : vector<2x8x128xf32>, vector<2x8x128xf32>, vector<2x8x8xf32> -> vector<2x8x8xf32>
    "tpu.trace_stop"() : () -> ()
    %cst_6 = arith.constant dense<0xFF800000> : vector<2x8xf32>
    %14 = vector.multi_reduction <maximumf>, %13, %cst_6 [2] : vector<2x8x8xf32> to vector<2x8xf32>
    %15 = vector.shape_cast %14 : vector<2x8xf32> to vector<2x8x1xf32>
    %16 = vector.broadcast %15 : vector<2x8x1xf32> to vector<2x8x8xf32>
    %17 = arith.subf %13, %16 : vector<2x8x8xf32>
    %18 = math.exp %17 : vector<2x8x8xf32>
    %cst_7 = arith.constant dense<0.000000e+00> : vector<2x8xf32>
    %19 = vector.multi_reduction <add>, %18, %cst_7 [2] : vector<2x8x8xf32> to vector<2x8xf32>
    %20 = vector.shape_cast %19 : vector<2x8xf32> to vector<2x8x1xf32>
    %21 = tpu.reciprocal %20 : vector<2x8x1xf32> -> vector<2x8x1xf32>
    %22 = vector.broadcast %21 : vector<2x8x1xf32> to vector<2x8x8xf32>
    %23 = arith.mulf %18, %22 : vector<2x8x8xf32>
    "tpu.trace_start"() <{level = 10 : i32, message = "bji,bid->bjd"}> : () -> ()
    %cst_8 = arith.constant dense<0.000000e+00> : vector<2x8x128xf32>
    %24 = tpu.matmul %23, %12, %cst_8 {dimension_numbers = #tpu.dot_dimension_numbers<[2], [1], [1], [2], [0, 0, 0, 1, 1, 2], [0], [0]>, precision = #tpu.contract_precision<fp32>} : vector<2x8x8xf32>, vector<2x8x128xf32>, vector<2x8x128xf32> -> vector<2x8x128xf32>
    "tpu.trace_stop"() : () -> ()
    %c0_9 = arith.constant 0 : index
    %c0_10 = arith.constant 0 : index
    %c0_11 = arith.constant 0 : index
    %25 = vector.load %arg4[%c0_9, %c0_10, %c0_11] : memref<2x8x128xf32, #tpu.memory_space<vmem>>, vector<2x8x128xf32>
    tpu.vector_store %arg4[%c0_9, %c0_10, %c0_11], %24 {strides = array<i32>} : memref<2x8x128xf32, #tpu.memory_space<vmem>>, vector<2x8x128xf32>,
    return
  }
  func.func @transform_0(%arg0: i32, %arg1: i32) -> (i32, i32, i32) {
    %c0_i32 = arith.constant 0 : i32
    %c0_i32_0 = arith.constant 0 : i32
    %c0_i32_1 = arith.constant 0 : i32
    return %arg0, %c0_i32, %c0_i32_0 : i32, i32, i32
  }
  func.func @transform_1(%arg0: i32, %arg1: i32) -> (i32, i32, i32) {
    %c0_i32 = arith.constant 0 : i32
    %c0_i32_0 = arith.constant 0 : i32
    %c0_i32_1 = arith.constant 0 : i32
    %c0_i32_2 = arith.constant 0 : i32
    return %c0_i32, %c0_i32_0, %c0_i32_1 : i32, i32, i32
  }
  func.func @transform_2(%arg0: i32, %arg1: i32) -> (i32, i32, i32) {
    %c0_i32 = arith.constant 0 : i32
    %c0_i32_0 = arith.constant 0 : i32
    %c0_i32_1 = arith.constant 0 : i32
    return %arg0, %c0_i32, %c0_i32_0 : i32, i32, i32
  }
}

</mosaic_0001>

<llo_original>
// kernel: tpu_custom_call.1
$region0: #{tpu_custom_call.1}
  #allocation0 [shape = 'u32[]', space=smem, size = 0x4, offset = 0x4, fixed_abs, tag = 'smem constant byte address 0x4 - core index']
  #allocation1 [shape = 'u32[144,128]{1,0:T(1,128)}', space=vmem, size = 0x12000, scoped, tag = 'internal scratch']
  %s0 = inlined_call_operand.hbm [shape: f32[2,8,128], index: 0, kind: input, shape index: {}]
  %s1 = inlined_call_operand.hbm [shape: f32[2,128,384], index: 1, kind: input, shape index: {}]
  %s2 = inlined_call_operand.hbm [shape: f32[2,8,128], index: 2, kind: output, shape index: {}]
  %s3 = sld [smem:[#allocation0]]
  $region53: #{tpu_custom_call.1} parent=0
    _
  %s5 = ssub.s32 1, %s3
  %s6 = scalar_select 0, %s5, %s3
  $region1: #{tpu_custom_call.1} parent=0
    #allocation2 [shape = 'u8[8192]{0}', space=vmem, size = 0x2000, scoped, tag = 'input window, operand 0, single buffered']
    #allocation3 [shape = 's32[2]{0}', space=sflag, size = 0x8, scoped, tag = 'scoped memory for tpu_custom_call.1']
    #allocation4 [shape = 's32[2]{0}', space=sflag, size = 0x8, scoped, tag = 'scoped memory for tpu_custom_call.1']
    #allocation5 [shape = 'u8[393216]{0}', space=vmem, size = 0x60000, scoped, tag = 'input window, operand 1, single buffered']
    #allocation6 [shape = 's32[1]{0}', space=sflag, size = 0x4, scoped, tag = 'scoped memory for tpu_custom_call.1']
    #allocation7 [shape = 'u8[8192]{0}', space=vmem, size = 0x2000, scoped, tag = 'output window, operand 0, single buffered']
    %7 = vsyncpa [#allocation3], 0
    %8 = vsyncpa [#allocation6], 0
    %9 = vsyncpa [#allocation4], 0
    loop: start=0, step=1, limit=4
    $region2: #{tpu_custom_call.1} parent=1 // loop_pre_header
      _
    $region3: #{tpu_custom_call.1} parent=1 // loop_header
      %s11 = sphi 0, %s15
      %p12 = scmp.ge.s32.totalorder %s11, 4
      %s18 = sphi 0, %s30
      %s19 = sphi 0, %s26
      %s20 = sphi 0, %s18
      %s21 = sphi 0, %s19
      %s22 = sphi 0, %s20
      %s23 = sphi 0, %s21
      %s33 = sphi 0, %s35
      %s36 = sphi 0, %s33
      %s37 = sphi 0, %s36
      %s53 = sphi 0, %s37
      %s57 = sphi 0, %s57
      %s59 = sphi 0, %s57
      %s60 = sphi 0, %s59
      %s74 = sphi 0, %s60
      %s80 = sphi 0, %s82
      %s83 = sphi 0, %s80
      %s84 = sphi 0, %s83
      %s100 = sphi 0, %s84
    $region4: #{tpu_custom_call.1} parent=1 // loop_header_branch
      %14 = sbr.rel (%p12) target = $region8
    $region5: #{tpu_custom_call.1} parent=1 // loop_body
      %s16 = ssub.s32 %s11, 1
      %s17 = ssub.s32 %s11, 2
      %s24 = sadd.s32 1, %s19
      %p25 = scmp.ge.s32.totalorder %s24, 2
      %s26 = scalar_select %p25, 0, %s24
      %s27 = sadd.s32 1, %s18
      %s28 = scalar_select %p25, %s27, %s18
      %p29 = scmp.ge.s32.totalorder %s28, 1
      %s30 = scalar_select %p29, 0, %s28
      %s31 = ssub.s32 %s18, %s30
      %p32 = scmp.eq.s32.totalorder %s31, 0
      %s34 = sadd.s32 %s33, 1
      %s35 = scalar_select %p32, %s33, %s34
      %p38 = pneg %p32
      %p39 = scmp.eq.s32.totalorder %s11, 1
      %p40 = por %p38, %p39
      %p41 = scmp.ne.s32.totalorder %s33, %s36
      %p42 = scmp.eq.s32.totalorder %s11, 0
      %p43 = por %p41, %p42
      %p44 = scmp.ne.s32.totalorder %s33, %s36
      %p45 = scmp.eq.s32.totalorder %s16, 1
      %p46 = por %p44, %p45
      %p47 = scmp.ne.s32.totalorder %s36, %s37
      %p48 = scmp.eq.s32.totalorder %s16, 0
      %p49 = por %p47, %p48
      %p50 = scmp.ne.s32.totalorder %s36, %s37
      %p51 = scmp.eq.s32.totalorder %s17, 1
      %p52 = por %p50, %p51
      %p54 = scmp.ne.s32.totalorder %s37, %s53
      %p55 = scmp.eq.s32.totalorder %s17, 0
      %p56 = por %p54, %p55
      %s58 = sadd.s32 %s57, 1
      %p61 = scmp.eq.s32.totalorder %s11, 1
      %p62 = scmp.ne.s32.totalorder %s57, %s59
      %p63 = scmp.eq.s32.totalorder %s11, 0
      %p64 = por %p62, %p63
      %p65 = scmp.ne.s32.totalorder %s57, %s59
      %p66 = scmp.eq.s32.totalorder %s16, 1
      %p67 = por %p65, %p66
      %p68 = scmp.ne.s32.totalorder %s59, %s60
      %p69 = scmp.eq.s32.totalorder %s16, 0
      %p70 = por %p68, %p69
      %p71 = scmp.ne.s32.totalorder %s59, %s60
      %p72 = scmp.eq.s32.totalorder %s17, 1
      %p73 = por %p71, %p72
      %p75 = scmp.ne.s32.totalorder %s60, %s74
      %p76 = scmp.eq.s32.totalorder %s17, 0
      %p77 = por %p75, %p76
      %s78 = ssub.s32 %s18, %s30
      %p79 = scmp.eq.s32.totalorder %s78, 0
      %s81 = sadd.s32 %s80, 1
      %s82 = scalar_select %p79, %s80, %s81
      %p85 = pneg %p79
      %p86 = scmp.eq.s32.totalorder %s11, 1
      %p87 = por %p85, %p86
      %p88 = scmp.ne.s32.totalorder %s80, %s83
      %p89 = scmp.eq.s32.totalorder %s11, 0
      %p90 = por %p88, %p89
      %p91 = scmp.ne.s32.totalorder %s80, %s83
      %p92 = scmp.eq.s32.totalorder %s16, 1
      %p93 = por %p91, %p92
      %p94 = scmp.ne.s32.totalorder %s83, %s84
      %p95 = scmp.eq.s32.totalorder %s16, 0
      %p96 = por %p94, %p95
      %p97 = scmp.ne.s32.totalorder %s83, %s84
      %p98 = scmp.eq.s32.totalorder %s17, 1
      %p99 = por %p97, %p98
      %p101 = scmp.ne.s32.totalorder %s84, %s100
      %p102 = scmp.eq.s32.totalorder %s17, 0
      %p103 = por %p101, %p102
      %p104 = scmp.le.s32.totalorder 1, %s11
      %p105 = scmp.lt.s32.totalorder %s11, 3
      %p106 = pnand %p104, %p105
      %p107 = pneg %p106
      // Predicated region
      $region9: #{tpu_custom_call.1} parent=5 // pred_check
        _
      $region10: #{tpu_custom_call.1} parent=5 // pred_check_branch
        %109 = sbr.rel (%p106) target = $region12
      $region11: #{tpu_custom_call.1} parent=5 // pred_region
        %s110 = ssub.s32 %s11, 1
        // Predicated region
        $region13: #{tpu_custom_call.1} parent=11 // pred_check
          %p111 = pneg %p49
        $region14: #{tpu_custom_call.1} parent=11 // pred_check_branch
          %113 = sbr.rel (%p111) target = $region16
        $region15: #{tpu_custom_call.1} parent=11 // pred_region
          %s114 = smul.u32 2, %s20
          %s116 = ssub.s32 256, 256
          %117 = vsyncadd [#allocation3], %s116
          %s118 = smul.addr %s114, 128
          %s119 = scalar_lea.hbm %s0, %s118
          %s120 = sshll.u32 [#allocation2], 4
          %s121 = int_to_ptr.vmem [resolvable:$true] %s120
          %126 = dma.hbm_to_vmem [thread:$0]  %s119, 256, %s121, [#allocation3], 128, 128, 8
        $region16: #{tpu_custom_call.1} parent=11 // pred_fallthru
          _
        // Predicated region
        $region17: #{tpu_custom_call.1} parent=11 // pred_check
          %p127 = pneg %p70
        $region18: #{tpu_custom_call.1} parent=11 // pred_check_branch
          %129 = sbr.rel (%p127) target = $region20
        $region19: #{tpu_custom_call.1} parent=11 // pred_region
          %s131 = ssub.s32 12288, 12288
          %132 = vsyncadd [#allocation6], %s131
          %s133 = sshll.u32 [#allocation5], 4
          %s134 = int_to_ptr.vmem [resolvable:$true] %s133
          %139 = dma.hbm_to_vmem [thread:$0]  %s1, 12288, %s134, [#allocation6], 384, 384, 24
        $region20: #{tpu_custom_call.1} parent=11 // pred_fallthru
          _
      $region12: #{tpu_custom_call.1} parent=5 // pred_fallthru
        _
      %p140 = scmp.lt.s32.totalorder %s11, 2
      // Predicated region
      $region21: #{tpu_custom_call.1} parent=5 // pred_check
        %p141 = pneg %p140
      $region22: #{tpu_custom_call.1} parent=5 // pred_check_branch
        %143 = sbr.rel (%p141) target = $region24
      $region23: #{tpu_custom_call.1} parent=5 // pred_region
        _
      $region24: #{tpu_custom_call.1} parent=5 // pred_fallthru
        _
      %p144 = scmp.le.s32.totalorder 1, %s11
      %p145 = scmp.lt.s32.totalorder %s11, 3
      %p146 = pnand %p144, %p145
      %p147 = pneg %p146
      // Predicated region
      $region25: #{tpu_custom_call.1} parent=5 // pred_check
        _
      $region26: #{tpu_custom_call.1} parent=5 // pred_check_branch
        %149 = sbr.rel (%p146) target = $region28
      $region27: #{tpu_custom_call.1} parent=5 // pred_region
        %s150 = ssub.s32 %s11, 1
        // Predicated region
        $region29: #{tpu_custom_call.1} parent=27 // pred_check
          %p151 = pneg %p49
        $region30: #{tpu_custom_call.1} parent=27 // pred_check_branch
          %153 = sbr.rel (%p151) target = $region32
        $region31: #{tpu_custom_call.1} parent=27 // pred_region
          %154 = dma.done [#allocation3], 256
        $region32: #{tpu_custom_call.1} parent=27 // pred_fallthru
          _
        // Predicated region
        $region33: #{tpu_custom_call.1} parent=27 // pred_check
          %p155 = pneg %p70
        $region34: #{tpu_custom_call.1} parent=27 // pred_check_branch
          %157 = sbr.rel (%p155) target = $region36
        $region35: #{tpu_custom_call.1} parent=27 // pred_region
          %158 = dma.done [#allocation6], 12288
        $region36: #{tpu_custom_call.1} parent=27 // pred_fallthru
          _
        %p159 = pneg %p49
        %p160 = pneg %p46
        %p161 = pneg %p70
        %p162 = pneg %p67
        %p163 = pneg %p96
        %p164 = pneg %p93
        %s165 = smul.u32 2, %s20
        %s166 = smul.u32 2, %s20
        %p167 = scmp.eq.s32.totalorder %s21, 0
        // Predicated region
        $region37: #{tpu_custom_call.1} parent=27 // pred_check
          %p168 = pneg %p167
        $region38: #{tpu_custom_call.1} parent=27 // pred_check_branch
          %170 = sbr.rel (%p168) target = $region40
        $region39: #{tpu_custom_call.1} parent=27 // pred_region
          %v171 = vld [vmem:[#allocation2] sm:$0xff]
          %v172 = vld [vmem:[#allocation2 + $0x8] sm:$0xff]
          %173 = vst [vmem:[#allocation7] sm:$0xff] %v171
          %174 = vst [vmem:[#allocation7 + $0x8] sm:$0xff] %v172
        $region40: #{tpu_custom_call.1} parent=27 // pred_fallthru
          _
        %v175 = vld [vmem:[#allocation7] sm:$0xff]
        %v176 = vld [vmem:[#allocation7 + $0x8] sm:$0xff]
        %s177 = smul.u32 %s21, 48
        %s178 = smul.addr %s177, 8
        %s179 = scalar_lea.vmem [#allocation5], %s178
        %v180 = vld [vmem:[%s179] sm:$0xff]
        %v181 = vld [vmem:[%s179 + $0x8] sm:$0xff]
        %v182 = vld [vmem:[%s179 + $0x10] sm:$0xff]
        %v183 = vld [vmem:[%s179 + $0x18] sm:$0xff]
        %v184 = vld [vmem:[%s179 + $0x20] sm:$0xff]
        %v185 = vld [vmem:[%s179 + $0x28] sm:$0xff]
        %v186 = vld [vmem:[%s179 + $0x30] sm:$0xff]
        %v187 = vld [vmem:[%s179 + $0x38] sm:$0xff]
        %v188 = vld [vmem:[%s179 + $0x40] sm:$0xff]
        %v189 = vld [vmem:[%s179 + $0x48] sm:$0xff]
        %v190 = vld [vmem:[%s179 + $0x50] sm:$0xff]
        %v191 = vld [vmem:[%s179 + $0x58] sm:$0xff]
        %v192 = vld [vmem:[%s179 + $0x60] sm:$0xff]
        %v193 = vld [vmem:[%s179 + $0x68] sm:$0xff]
        %v194 = vld [vmem:[%s179 + $0x70] sm:$0xff]
        %v195 = vld [vmem:[%s179 + $0x78] sm:$0xff]
        %v196 = vld [vmem:[%s179 + $0x80] sm:$0xff]
        %v197 = vld [vmem:[%s179 + $0x88] sm:$0xff]
        %v198 = vld [vmem:[%s179 + $0x90] sm:$0xff]
        %v199 = vld [vmem:[%s179 + $0x98] sm:$0xff]
        %v200 = vld [vmem:[%s179 + $0xa0] sm:$0xff]
        %v201 = vld [vmem:[%s179 + $0xa8] sm:$0xff]
        %v202 = vld [vmem:[%s179 + $0xb0] sm:$0xff]
        %v203 = vld [vmem:[%s179 + $0xb8] sm:$0xff]
        %v204 = vld [vmem:[%s179 + $0xc0] sm:$0xff]
        %v205 = vld [vmem:[%s179 + $0xc8] sm:$0xff]
        %v206 = vld [vmem:[%s179 + $0xd0] sm:$0xff]
        %v207 = vld [vmem:[%s179 + $0xd8] sm:$0xff]
        %v208 = vld [vmem:[%s179 + $0xe0] sm:$0xff]
        %v209 = vld [vmem:[%s179 + $0xe8] sm:$0xff]
        %v210 = vld [vmem:[%s179 + $0xf0] sm:$0xff]
        %v211 = vld [vmem:[%s179 + $0xf8] sm:$0xff]
        %v212 = vld [vmem:[%s179 + $0x100] sm:$0xff]
        %v213 = vld [vmem:[%s179 + $0x108] sm:$0xff]
        %v214 = vld [vmem:[%s179 + $0x110] sm:$0xff]
        %v215 = vld [vmem:[%s179 + $0x118] sm:$0xff]
        %v216 = vld [vmem:[%s179 + $0x120] sm:$0xff]
        %v217 = vld [vmem:[%s179 + $0x128] sm:$0xff]
        %v218 = vld [vmem:[%s179 + $0x130] sm:$0xff]
        %v219 = vld [vmem:[%s179 + $0x138] sm:$0xff]
        %v220 = vld [vmem:[%s179 + $0x140] sm:$0xff]
        %v221 = vld [vmem:[%s179 + $0x148] sm:$0xff]
        %v222 = vld [vmem:[%s179 + $0x150] sm:$0xff]
        %v223 = vld [vmem:[%s179 + $0x158] sm:$0xff]
        %v224 = vld [vmem:[%s179 + $0x160] sm:$0xff]
        %v225 = vld [vmem:[%s179 + $0x168] sm:$0xff]
        %v226 = vld [vmem:[%s179 + $0x170] sm:$0xff]
        %v227 = vld [vmem:[%s179 + $0x178] sm:$0xff]
        %v228 = vand.u32 %v226, 4294901760
        %229 = vmatprep.subr.mxu0 %v228
        %v230 = vand.u32 %v225, 4294901760
        %231 = vmatpush1.msra.mxu0 %v230
        %v232 = vand.u32 %v223, 4294901760
        %233 = vmatprep.subr.mxu0 %v232
        %v234 = vand.u32 %v222, 4294901760
        %235 = vmatpush1.msra.mxu0 %v234
        %v236 = vand.u32 %v220, 4294901760
        %237 = vmatprep.subr.mxu0 %v236
        %v238 = vand.u32 %v219, 4294901760
        %239 = vmatpush1.msra.mxu0 %v238
        %v240 = vand.u32 %v217, 4294901760
        %241 = vmatprep.subr.mxu0 %v240
        %v242 = vand.u32 %v216, 4294901760
        %243 = vmatpush1.msra.mxu0 %v242
        %v244 = vand.u32 %v214, 4294901760
        %245 = vmatprep.subr.mxu0 %v244
        %v246 = vand.u32 %v213, 4294901760
        %247 = vmatpush1.msra.mxu0 %v246
        %v248 = vand.u32 %v211, 4294901760
        %249 = vmatprep.subr.mxu0 %v248
        %v250 = vand.u32 %v210, 4294901760
        %251 = vmatpush1.msra.mxu0 %v250
        %v252 = vand.u32 %v208, 4294901760
        %253 = vmatprep.subr.mxu0 %v252
        %v254 = vand.u32 %v207, 4294901760
        %255 = vmatpush1.msra.mxu0 %v254
        %v256 = vand.u32 %v205, 4294901760
        %257 = vmatprep.subr.mxu0 %v256
        %v258 = vand.u32 %v204, 4294901760
        %259 = vmatpush1.msra.mxu0 %v258
        %v260 = vand.u32 %v202, 4294901760
        %261 = vmatprep.subr.mxu0 %v260
        %v262 = vand.u32 %v201, 4294901760
        %263 = vmatpush1.msra.mxu0 %v262
        %v264 = vand.u32 %v199, 4294901760
        %265 = vmatprep.subr.mxu0 %v264
        %v266 = vand.u32 %v198, 4294901760
        %267 = vmatpush1.msra.mxu0 %v266
        %v268 = vand.u32 %v196, 4294901760
        %269 = vmatprep.subr.mxu0 %v268
        %v270 = vand.u32 %v195, 4294901760
        %271 = vmatpush1.msra.mxu0 %v270
        %v272 = vand.u32 %v193, 4294901760
        %273 = vmatprep.subr.mxu0 %v272
        %v274 = vand.u32 %v192, 4294901760
        %275 = vmatpush1.msra.mxu0 %v274
        %v276 = vand.u32 %v190, 4294901760
        %277 = vmatprep.subr.mxu0 %v276
        %v278 = vand.u32 %v189, 4294901760
        %279 = vmatpush1.msra.mxu0 %v278
        %v280 = vand.u32 %v187, 4294901760
        %281 = vmatprep.subr.mxu0 %v280
        %v282 = vand.u32 %v186, 4294901760
        %283 = vmatpush1.msra.mxu0 %v282
        %v284 = vand.u32 %v184, 4294901760
        %285 = vmatprep.subr.mxu0 %v284
        %v286 = vand.u32 %v183, 4294901760
        %287 = vmatpush1.msra.mxu0 %v286
        %v288 = vand.u32 %v181, 4294901760
        %289 = vmatprep.subr.mxu0 %v288
        %v290 = vand.u32 %v180, 4294901760
        %291 = vmatpush1.msra.mxu0 %v290
        %292 = vmatprep.subr.mxu0 0.0
        %293 = vmatpush2.msra.mxu0 0.0
        %294 = vmatprep.subr.mxu0 0.0
        %295 = vmatpush2.msra.mxu0 0.0
        %296 = vmatprep.subr.mxu0 0.0
        %297 = vmatpush2.msra.mxu0 0.0
        %298 = vmatprep.subr.mxu0 0.0
        %299 = vmatpush2.msra.mxu0 0.0
        %300 = vmatprep.subr.mxu0 0.0
        %301 = vmatpush2.msra.mxu0 0.0
        %302 = vmatprep.subr.mxu0 0.0
        %303 = vmatpush2.msra.mxu0 0.0
        %304 = vmatprep.subr.mxu0 0.0
        %305 = vmatpush2.msra.mxu0 0.0
        %306 = vmatprep.subr.mxu0 0.0
        %307 = vmatpush2.msra.mxu0 0.0
        %308 = vmatprep.subr.mxu0 0.0
        %309 = vmatpush2.msra.mxu0 0.0
        %310 = vmatprep.subr.mxu0 0.0
        %311 = vmatpush2.msra.mxu0 0.0
        %312 = vmatprep.subr.mxu0 0.0
        %313 = vmatpush2.msra.mxu0 0.0
        %314 = vmatprep.subr.mxu0 0.0
        %315 = vmatpush2.msra.mxu0 0.0
        %316 = vmatprep.subr.mxu0 0.0
        %317 = vmatpush2.msra.mxu0 0.0
        %318 = vmatprep.subr.mxu0 0.0
        %319 = vmatpush2.msra.mxu0 0.0
        %320 = vmatprep.subr.mxu0 0.0
        %321 = vmatpush2.msra.mxu0 0.0
        %322 = vmatprep.subr.mxu0 0.0
        %323 = vmatpush2.msra.mxu0 0.0
        %324 = vmatprep.mubr.f32.mxu0 0.0
        %v325 = vand.u32 %v175, 4294901760
        %v326 = vsub.f32 %v175, %v325
        %v327 = vand.u32 %v326, 4294901760
        %v328 = vsub.f32 %v326, %v327
        %v329 = vand.u32 %v328, 4294901760
        %330 = vmatmul.mubr.f32.gmra.mxu0 %v329
        %v331 = vpop.f32.mrf.mxu0
        %v332 = vadd.f32 0.0, %v331
        %v333 = vpop.f32.mrf.mxu0
        %v334 = vadd.f32 0.0, %v333
        %335 = vmatprep.mubr.f32.mxu0 0.0
        %v336 = vand.u32 %v176, 4294901760
        %v337 = vsub.f32 %v176, %v336
        %v338 = vand.u32 %v337, 4294901760
        %v339 = vsub.f32 %v337, %v338
        %v340 = vand.u32 %v339, 4294901760
        %341 = vmatmul.mubr.f32.gmra.mxu0 %v340
        %v342 = vpop.f32.mrf.mxu0
        %v343 = vadd.f32 0.0, %v342
        %v344 = vpop.f32.mrf.mxu0
        %v345 = vadd.f32 0.0, %v344
        %346 = vdwg.mxu0
        %v347 = vand.u32 %v226, 4294901760
        %v348 = vsub.f32 %v226, %v347
        %v349 = vand.u32 %v348, 4294901760
        %v350 = vsub.f32 %v348, %v349
        %v351 = vand.u32 %v350, 4294901760
        %352 = vmatprep.subr.mxu0 %v351
        %v353 = vand.u32 %v225, 4294901760
        %v354 = vsub.f32 %v225, %v353
        %v355 = vand.u32 %v354, 4294901760
        %v356 = vsub.f32 %v354, %v355
        %v357 = vand.u32 %v356, 4294901760
        %358 = vmatpush1.msra.mxu0 %v357
        %v359 = vand.u32 %v223, 4294901760
        %v360 = vsub.f32 %v223, %v359
        %v361 = vand.u32 %v360, 4294901760
        %v362 = vsub.f32 %v360, %v361
        %v363 = vand.u32 %v362, 4294901760
        %364 = vmatprep.subr.mxu0 %v363
        %v365 = vand.u32 %v222, 4294901760
        %v366 = vsub.f32 %v222, %v365
        %v367 = vand.u32 %v366, 4294901760
        %v368 = vsub.f32 %v366, %v367
        %v369 = vand.u32 %v368, 4294901760
        %370 = vmatpush1.msra.mxu0 %v369
        %v371 = vand.u32 %v220, 4294901760
        %v372 = vsub.f32 %v220, %v371
        %v373 = vand.u32 %v372, 4294901760
        %v374 = vsub.f32 %v372, %v373
        %v375 = vand.u32 %v374, 4294901760
        %376 = vmatprep.subr.mxu0 %v375
        %v377 = vand.u32 %v219, 4294901760
        %v378 = vsub.f32 %v219, %v377
        %v379 = vand.u32 %v378, 4294901760
        %v380 = vsub.f32 %v378, %v379
        %v381 = vand.u32 %v380, 4294901760
        %382 = vmatpush1.msra.mxu0 %v381
        %v383 = vand.u32 %v217, 4294901760
        %v384 = vsub.f32 %v217, %v383
        %v385 = vand.u32 %v384, 4294901760
        %v386 = vsub.f32 %v384, %v385
        %v387 = vand.u32 %v386, 4294901760
        %388 = vmatprep.subr.mxu0 %v387
        %v389 = vand.u32 %v216, 4294901760
        %v390 = vsub.f32 %v216, %v389
        %v391 = vand.u32 %v390, 4294901760
        %v392 = vsub.f32 %v390, %v391
        %v393 = vand.u32 %v392, 4294901760
        %394 = vmatpush1.msra.mxu0 %v393
        %v395 = vand.u32 %v214, 4294901760
        %v396 = vsub.f32 %v214, %v395
        %v397 = vand.u32 %v396, 4294901760
        %v398 = vsub.f32 %v396, %v397
        %v399 = vand.u32 %v398, 4294901760
        %400 = vmatprep.subr.mxu0 %v399
        %v401 = vand.u32 %v213, 4294901760
        %v402 = vsub.f32 %v213, %v401
        %v403 = vand.u32 %v402, 4294901760
        %v404 = vsub.f32 %v402, %v403
        %v405 = vand.u32 %v404, 4294901760
        %406 = vmatpush1.msra.mxu0 %v405
        %v407 = vand.u32 %v211, 4294901760
        %v408 = vsub.f32 %v211, %v407
        %v409 = vand.u32 %v408, 4294901760
        %v410 = vsub.f32 %v408, %v409
        %v411 = vand.u32 %v410, 4294901760
        %412 = vmatprep.subr.mxu0 %v411
        %v413 = vand.u32 %v210, 4294901760
        %v414 = vsub.f32 %v210, %v413
        %v415 = vand.u32 %v414, 4294901760
        %v416 = vsub.f32 %v414, %v415
        %v417 = vand.u32 %v416, 4294901760
        %418 = vmatpush1.msra.mxu0 %v417
        %v419 = vand.u32 %v208, 4294901760
        %v420 = vsub.f32 %v208, %v419
        %v421 = vand.u32 %v420, 4294901760
        %v422 = vsub.f32 %v420, %v421
        %v423 = vand.u32 %v422, 4294901760
        %424 = vmatprep.subr.mxu0 %v423
        %v425 = vand.u32 %v207, 4294901760
        %v426 = vsub.f32 %v207, %v425
        %v427 = vand.u32 %v426, 4294901760
        %v428 = vsub.f32 %v426, %v427
        %v429 = vand.u32 %v428, 4294901760
        %430 = vmatpush1.msra.mxu0 %v429
        %v431 = vand.u32 %v205, 4294901760
        %v432 = vsub.f32 %v205, %v431
        %v433 = vand.u32 %v432, 4294901760
        %v434 = vsub.f32 %v432, %v433
        %v435 = vand.u32 %v434, 4294901760
        %436 = vmatprep.subr.mxu0 %v435
        %v437 = vand.u32 %v204, 4294901760
        %v438 = vsub.f32 %v204, %v437
        %v439 = vand.u32 %v438, 4294901760
        %v440 = vsub.f32 %v438, %v439
        %v441 = vand.u32 %v440, 4294901760
        %442 = vmatpush1.msra.mxu0 %v441
        %v443 = vand.u32 %v202, 4294901760
        %v444 = vsub.f32 %v202, %v443
        %v445 = vand.u32 %v444, 4294901760
        %v446 = vsub.f32 %v444, %v445
        %v447 = vand.u32 %v446, 4294901760
        %448 = vmatprep.subr.mxu0 %v447
        %v449 = vand.u32 %v201, 4294901760
        %v450 = vsub.f32 %v201, %v449
        %v451 = vand.u32 %v450, 4294901760
        %v452 = vsub.f32 %v450, %v451
        %v453 = vand.u32 %v452, 4294901760
        %454 = vmatpush1.msra.mxu0 %v453
        %v455 = vand.u32 %v199, 4294901760
        %v456 = vsub.f32 %v199, %v455
        %v457 = vand.u32 %v456, 4294901760
        %v458 = vsub.f32 %v456, %v457
        %v459 = vand.u32 %v458, 4294901760
        %460 = vmatprep.subr.mxu0 %v459
        %v461 = vand.u32 %v198, 4294901760
        %v462 = vsub.f32 %v198, %v461
        %v463 = vand.u32 %v462, 4294901760
        %v464 = vsub.f32 %v462, %v463
        %v465 = vand.u32 %v464, 4294901760
        %466 = vmatpush1.msra.mxu0 %v465
        %v467 = vand.u32 %v196, 4294901760
        %v468 = vsub.f32 %v196, %v467
        %v469 = vand.u32 %v468, 4294901760
        %v470 = vsub.f32 %v468, %v469
        %v471 = vand.u32 %v470, 4294901760
        %472 = vmatprep.subr.mxu0 %v471
        %v473 = vand.u32 %v195, 4294901760
        %v474 = vsub.f32 %v195, %v473
        %v475 = vand.u32 %v474, 4294901760
        %v476 = vsub.f32 %v474, %v475
        %v477 = vand.u32 %v476, 4294901760
        %478 = vmatpush1.msra.mxu0 %v477
        %v479 = vand.u32 %v193, 4294901760
        %v480 = vsub.f32 %v193, %v479
        %v481 = vand.u32 %v480, 4294901760
        %v482 = vsub.f32 %v480, %v481
        %v483 = vand.u32 %v482, 4294901760
        %484 = vmatprep.subr.mxu0 %v483
        %v485 = vand.u32 %v192, 4294901760
        %v486 = vsub.f32 %v192, %v485
        %v487 = vand.u32 %v486, 4294901760
        %v488 = vsub.f32 %v486, %v487
        %v489 = vand.u32 %v488, 4294901760
        %490 = vmatpush1.msra.mxu0 %v489
        %v491 = vand.u32 %v190, 4294901760
        %v492 = vsub.f32 %v190, %v491
        %v493 = vand.u32 %v492, 4294901760
        %v494 = vsub.f32 %v492, %v493
        %v495 = vand.u32 %v494, 4294901760
        %496 = vmatprep.subr.mxu0 %v495
        %v497 = vand.u32 %v189, 4294901760
        %v498 = vsub.f32 %v189, %v497
        %v499 = vand.u32 %v498, 4294901760
        %v500 = vsub.f32 %v498, %v499
        %v501 = vand.u32 %v500, 4294901760
        %502 = vmatpush1.msra.mxu0 %v501
        %v503 = vand.u32 %v187, 4294901760
        %v504 = vsub.f32 %v187, %v503
        %v505 = vand.u32 %v504, 4294901760
        %v506 = vsub.f32 %v504, %v505
        %v507 = vand.u32 %v506, 4294901760
        %508 = vmatprep.subr.mxu0 %v507
        %v509 = vand.u32 %v186, 4294901760
        %v510 = vsub.f32 %v186, %v509
        %v511 = vand.u32 %v510, 4294901760
        %v512 = vsub.f32 %v510, %v511
        %v513 = vand.u32 %v512, 4294901760
        %514 = vmatpush1.msra.mxu0 %v513
        %v515 = vand.u32 %v184, 4294901760
        %v516 = vsub.f32 %v184, %v515
        %v517 = vand.u32 %v516, 4294901760
        %v518 = vsub.f32 %v516, %v517
        %v519 = vand.u32 %v518, 4294901760
        %520 = vmatprep.subr.mxu0 %v519
        %v521 = vand.u32 %v183, 4294901760
        %v522 = vsub.f32 %v183, %v521
        %v523 = vand.u32 %v522, 4294901760
        %v524 = vsub.f32 %v522, %v523
        %v525 = vand.u32 %v524, 4294901760
        %526 = vmatpush1.msra.mxu0 %v525
        %v527 = vand.u32 %v181, 4294901760
        %v528 = vsub.f32 %v181, %v527
        %v529 = vand.u32 %v528, 4294901760
        %v530 = vsub.f32 %v528, %v529
        %v531 = vand.u32 %v530, 4294901760
        %532 = vmatprep.subr.mxu0 %v531
        %v533 = vand.u32 %v180, 4294901760
        %v534 = vsub.f32 %v180, %v533
        %v535 = vand.u32 %v534, 4294901760
        %v536 = vsub.f32 %v534, %v535
        %v537 = vand.u32 %v536, 4294901760
        %538 = vmatpush1.msra.mxu0 %v537
        %539 = vmatprep.subr.mxu0 0.0
        %540 = vmatpush2.msra.mxu0 0.0
        %541 = vmatprep.subr.mxu0 0.0
        %542 = vmatpush2.msra.mxu0 0.0
        %543 = vmatprep.subr.mxu0 0.0
        %544 = vmatpush2.msra.mxu0 0.0
        %545 = vmatprep.subr.mxu0 0.0
        %546 = vmatpush2.msra.mxu0 0.0
        %547 = vmatprep.subr.mxu0 0.0
        %548 = vmatpush2.msra.mxu0 0.0
        %549 = vmatprep.subr.mxu0 0.0
        %550 = vmatpush2.msra.mxu0 0.0
        %551 = vmatprep.subr.mxu0 0.0
        %552 = vmatpush2.msra.mxu0 0.0
        %553 = vmatprep.subr.mxu0 0.0
        %554 = vmatpush2.msra.mxu0 0.0
        %555 = vmatprep.subr.mxu0 0.0
        %556 = vmatpush2.msra.mxu0 0.0
        %557 = vmatprep.subr.mxu0 0.0
        %558 = vmatpush2.msra.mxu0 0.0
        %559 = vmatprep.subr.mxu0 0.0
        %560 = vmatpush2.msra.mxu0 0.0
        %561 = vmatprep.subr.mxu0 0.0
        %562 = vmatpush2.msra.mxu0 0.0
        %563 = vmatprep.subr.mxu0 0.0
        %564 = vmatpush2.msra.mxu0 0.0
        %565 = vmatprep.subr.mxu0 0.0
        %566 = vmatpush2.msra.mxu0 0.0
        %567 = vmatprep.subr.mxu0 0.0
        %568 = vmatpush2.msra.mxu0 0.0
        %569 = vmatprep.subr.mxu0 0.0
        %570 = vmatpush2.msra.mxu0 0.0
        %571 = vmatprep.mubr.f32.mxu0 0.0
        %v572 = vand.u32 %v175, 4294901760
        %573 = vmatmul.mubr.f32.gmra.mxu0 %v572
        %v574 = vpop.f32.mrf.mxu0
        %v575 = vadd.f32 %v332, %v574
        %v576 = vpop.f32.mrf.mxu0
        %v577 = vadd.f32 %v334, %v576
        %578 = vmatprep.mubr.f32.mxu0 0.0
        %v579 = vand.u32 %v176, 4294901760
        %580 = vmatmul.mubr.f32.gmra.mxu0 %v579
        %v581 = vpop.f32.mrf.mxu0
        %v582 = vadd.f32 %v343, %v581
        %v583 = vpop.f32.mrf.mxu0
        %v584 = vadd.f32 %v345, %v583
        %585 = vdwg.mxu0
        %v586 = vand.u32 %v226, 4294901760
        %v587 = vsub.f32 %v226, %v586
        %588 = vmatprep.subr.mxu0 %v587
        %v589 = vand.u32 %v225, 4294901760
        %v590 = vsub.f32 %v225, %v589
        %591 = vmatpush1.msra.mxu0 %v590
        %v592 = vand.u32 %v223, 4294901760
        %v593 = vsub.f32 %v223, %v592
        %594 = vmatprep.subr.mxu0 %v593
        %v595 = vand.u32 %v222, 4294901760
        %v596 = vsub.f32 %v222, %v595
        %597 = vmatpush1.msra.mxu0 %v596
        %v598 = vand.u32 %v220, 4294901760
        %v599 = vsub.f32 %v220, %v598
        %600 = vmatprep.subr.mxu0 %v599
        %v601 = vand.u32 %v219, 4294901760
        %v602 = vsub.f32 %v219, %v601
        %603 = vmatpush1.msra.mxu0 %v602
        %v604 = vand.u32 %v217, 4294901760
        %v605 = vsub.f32 %v217, %v604
        %606 = vmatprep.subr.mxu0 %v605
        %v607 = vand.u32 %v216, 4294901760
        %v608 = vsub.f32 %v216, %v607
        %609 = vmatpush1.msra.mxu0 %v608
        %v610 = vand.u32 %v214, 4294901760
        %v611 = vsub.f32 %v214, %v610
        %612 = vmatprep.subr.mxu0 %v611
        %v613 = vand.u32 %v213, 4294901760
        %v614 = vsub.f32 %v213, %v613
        %615 = vmatpush1.msra.mxu0 %v614
        %v616 = vand.u32 %v211, 4294901760
        %v617 = vsub.f32 %v211, %v616
        %618 = vmatprep.subr.mxu0 %v617
        %v619 = vand.u32 %v210, 4294901760
        %v620 = vsub.f32 %v210, %v619
        %621 = vmatpush1.msra.mxu0 %v620
        %v622 = vand.u32 %v208, 4294901760
        %v623 = vsub.f32 %v208, %v622
        %624 = vmatprep.subr.mxu0 %v623
        %v625 = vand.u32 %v207, 4294901760
        %v626 = vsub.f32 %v207, %v625
        %627 = vmatpush1.msra.mxu0 %v626
        %v628 = vand.u32 %v205, 4294901760
        %v629 = vsub.f32 %v205, %v628
        %630 = vmatprep.subr.mxu0 %v629
        %v631 = vand.u32 %v204, 4294901760
        %v632 = vsub.f32 %v204, %v631
        %633 = vmatpush1.msra.mxu0 %v632
        %v634 = vand.u32 %v202, 4294901760
        %v635 = vsub.f32 %v202, %v634
        %636 = vmatprep.subr.mxu0 %v635
        %v637 = vand.u32 %v201, 4294901760
        %v638 = vsub.f32 %v201, %v637
        %639 = vmatpush1.msra.mxu0 %v638
        %v640 = vand.u32 %v199, 4294901760
        %v641 = vsub.f32 %v199, %v640
        %642 = vmatprep.subr.mxu0 %v641
        %v643 = vand.u32 %v198, 4294901760
        %v644 = vsub.f32 %v198, %v643
        %645 = vmatpush1.msra.mxu0 %v644
        %v646 = vand.u32 %v196, 4294901760
        %v647 = vsub.f32 %v196, %v646
        %648 = vmatprep.subr.mxu0 %v647
        %v649 = vand.u32 %v195, 4294901760
        %v650 = vsub.f32 %v195, %v649
        %651 = vmatpush1.msra.mxu0 %v650
        %v652 = vand.u32 %v193, 4294901760
        %v653 = vsub.f32 %v193, %v652
        %654 = vmatprep.subr.mxu0 %v653
        %v655 = vand.u32 %v192, 4294901760
        %v656 = vsub.f32 %v192, %v655
        %657 = vmatpush1.msra.mxu0 %v656
        %v658 = vand.u32 %v190, 4294901760
        %v659 = vsub.f32 %v190, %v658
        %660 = vmatprep.subr.mxu0 %v659
        %v661 = vand.u32 %v189, 4294901760
        %v662 = vsub.f32 %v189, %v661
        %663 = vmatpush1.msra.mxu0 %v662
        %v664 = vand.u32 %v187, 4294901760
        %v665 = vsub.f32 %v187, %v664
        %666 = vmatprep.subr.mxu0 %v665
        %v667 = vand.u32 %v186, 4294901760
        %v668 = vsub.f32 %v186, %v667
        %669 = vmatpush1.msra.mxu0 %v668
        %v670 = vand.u32 %v184, 4294901760
        %v671 = vsub.f32 %v184, %v670
        %672 = vmatprep.subr.mxu0 %v671
        %v673 = vand.u32 %v183, 4294901760
        %v674 = vsub.f32 %v183, %v673
        %675 = vmatpush1.msra.mxu0 %v674
        %v676 = vand.u32 %v181, 4294901760
        %v677 = vsub.f32 %v181, %v676
        %678 = vmatprep.subr.mxu0 %v677
        %v679 = vand.u32 %v180, 4294901760
        %v680 = vsub.f32 %v180, %v679
        %681 = vmatpush1.msra.mxu0 %v680
        %682 = vmatprep.subr.mxu0 0.0
        %683 = vmatpush2.msra.mxu0 0.0
        %684 = vmatprep.subr.mxu0 0.0
        %685 = vmatpush2.msra.mxu0 0.0
        %686 = vmatprep.subr.mxu0 0.0
        %687 = vmatpush2.msra.mxu0 0.0
        %688 = vmatprep.subr.mxu0 0.0
        %689 = vmatpush2.msra.mxu0 0.0
        %690 = vmatprep.subr.mxu0 0.0
        %691 = vmatpush2.msra.mxu0 0.0
        %692 = vmatprep.subr.mxu0 0.0
        %693 = vmatpush2.msra.mxu0 0.0
        %694 = vmatprep.subr.mxu0 0.0
        %695 = vmatpush2.msra.mxu0 0.0
        %696 = vmatprep.subr.mxu0 0.0
        %697 = vmatpush2.msra.mxu0 0.0
        %698 = vmatprep.subr.mxu0 0.0
        %699 = vmatpush2.msra.mxu0 0.0
        %700 = vmatprep.subr.mxu0 0.0
        %701 = vmatpush2.msra.mxu0 0.0
        %702 = vmatprep.subr.mxu0 0.0
        %703 = vmatpush2.msra.mxu0 0.0
        %704 = vmatprep.subr.mxu0 0.0
        %705 = vmatpush2.msra.mxu0 0.0
        %706 = vmatprep.subr.mxu0 0.0
        %707 = vmatpush2.msra.mxu0 0.0
        %708 = vmatprep.subr.mxu0 0.0
        %709 = vmatpush2.msra.mxu0 0.0
        %710 = vmatprep.subr.mxu0 0.0
        %711 = vmatpush2.msra.mxu0 0.0
        %712 = vmatprep.subr.mxu0 0.0
        %713 = vmatpush2.msra.mxu0 0.0
        %714 = vmatprep.mubr.f32.mxu0 0.0
        %v715 = vand.u32 %v175, 4294901760
        %v716 = vsub.f32 %v175, %v715
        %717 = vmatmul.mubr.f32.gmra.mxu0 %v716
        %v718 = vpop.f32.mrf.mxu0
        %v719 = vadd.f32 %v575, %v718
        %v720 = vpop.f32.mrf.mxu0
        %v721 = vadd.f32 %v577, %v720
        %722 = vmatprep.mubr.f32.mxu0 0.0
        %v723 = vand.u32 %v176, 4294901760
        %v724 = vsub.f32 %v176, %v723
        %725 = vmatmul.mubr.f32.gmra.mxu0 %v724
        %v726 = vpop.f32.mrf.mxu0
        %v727 = vadd.f32 %v582, %v726
        %v728 = vpop.f32.mrf.mxu0
        %v729 = vadd.f32 %v584, %v728
        %730 = vdwg.mxu0
        %v731 = vand.u32 %v226, 4294901760
        %732 = vmatprep.subr.mxu0 %v731
        %v733 = vand.u32 %v225, 4294901760
        %734 = vmatpush1.msra.mxu0 %v733
        %v735 = vand.u32 %v223, 4294901760
        %736 = vmatprep.subr.mxu0 %v735
        %v737 = vand.u32 %v222, 4294901760
        %738 = vmatpush1.msra.mxu0 %v737
        %v739 = vand.u32 %v220, 4294901760
        %740 = vmatprep.subr.mxu0 %v739
        %v741 = vand.u32 %v219, 4294901760
        %742 = vmatpush1.msra.mxu0 %v741
        %v743 = vand.u32 %v217, 4294901760
        %744 = vmatprep.subr.mxu0 %v743
        %v745 = vand.u32 %v216, 4294901760
        %746 = vmatpush1.msra.mxu0 %v745
        %v747 = vand.u32 %v214, 4294901760
        %748 = vmatprep.subr.mxu0 %v747
        %v749 = vand.u32 %v213, 4294901760
        %750 = vmatpush1.msra.mxu0 %v749
        %v751 = vand.u32 %v211, 4294901760
        %752 = vmatprep.subr.mxu0 %v751
        %v753 = vand.u32 %v210, 4294901760
        %754 = vmatpush1.msra.mxu0 %v753
        %v755 = vand.u32 %v208, 4294901760
        %756 = vmatprep.subr.mxu0 %v755
        %v757 = vand.u32 %v207, 4294901760
        %758 = vmatpush1.msra.mxu0 %v757
        %v759 = vand.u32 %v205, 4294901760
        %760 = vmatprep.subr.mxu0 %v759
        %v761 = vand.u32 %v204, 4294901760
        %762 = vmatpush1.msra.mxu0 %v761
        %v763 = vand.u32 %v202, 4294901760
        %764 = vmatprep.subr.mxu0 %v763
        %v765 = vand.u32 %v201, 4294901760
        %766 = vmatpush1.msra.mxu0 %v765
        %v767 = vand.u32 %v199, 4294901760
        %768 = vmatprep.subr.mxu0 %v767
        %v769 = vand.u32 %v198, 4294901760
        %770 = vmatpush1.msra.mxu0 %v769
        %v771 = vand.u32 %v196, 4294901760
        %772 = vmatprep.subr.mxu0 %v771
        %v773 = vand.u32 %v195, 4294901760
        %774 = vmatpush1.msra.mxu0 %v773
        %v775 = vand.u32 %v193, 4294901760
        %776 = vmatprep.subr.mxu0 %v775
        %v777 = vand.u32 %v192, 4294901760
        %778 = vmatpush1.msra.mxu0 %v777
        %v779 = vand.u32 %v190, 4294901760
        %780 = vmatprep.subr.mxu0 %v779
        %v781 = vand.u32 %v189, 4294901760
        %782 = vmatpush1.msra.mxu0 %v781
        %v783 = vand.u32 %v187, 4294901760
        %784 = vmatprep.subr.mxu0 %v783
        %v785 = vand.u32 %v186, 4294901760
        %786 = vmatpush1.msra.mxu0 %v785
        %v787 = vand.u32 %v184, 4294901760
        %788 = vmatprep.subr.mxu0 %v787
        %v789 = vand.u32 %v183, 4294901760
        %790 = vmatpush1.msra.mxu0 %v789
        %v791 = vand.u32 %v181, 4294901760
        %792 = vmatprep.subr.mxu0 %v791
        %v793 = vand.u32 %v180, 4294901760
        %794 = vmatpush1.msra.mxu0 %v793
        %795 = vmatprep.subr.mxu0 0.0
        %796 = vmatpush2.msra.mxu0 0.0
        %797 = vmatprep.subr.mxu0 0.0
        %798 = vmatpush2.msra.mxu0 0.0
        %799 = vmatprep.subr.mxu0 0.0
        %800 = vmatpush2.msra.mxu0 0.0
        %801 = vmatprep.subr.mxu0 0.0
        %802 = vmatpush2.msra.mxu0 0.0
        %803 = vmatprep.subr.mxu0 0.0
        %804 = vmatpush2.msra.mxu0 0.0
        %805 = vmatprep.subr.mxu0 0.0
        %806 = vmatpush2.msra.mxu0 0.0
        %807 = vmatprep.subr.mxu0 0.0
        %808 = vmatpush2.msra.mxu0 0.0
        %809 = vmatprep.subr.mxu0 0.0
        %810 = vmatpush2.msra.mxu0 0.0
        %811 = vmatprep.subr.mxu0 0.0
        %812 = vmatpush2.msra.mxu0 0.0
        %813 = vmatprep.subr.mxu0 0.0
        %814 = vmatpush2.msra.mxu0 0.0
        %815 = vmatprep.subr.mxu0 0.0
        %816 = vmatpush2.msra.mxu0 0.0
        %817 = vmatprep.subr.mxu0 0.0
        %818 = vmatpush2.msra.mxu0 0.0
        %819 = vmatprep.subr.mxu0 0.0
        %820 = vmatpush2.msra.mxu0 0.0
        %821 = vmatprep.subr.mxu0 0.0
        %822 = vmatpush2.msra.mxu0 0.0
        %823 = vmatprep.subr.mxu0 0.0
        %824 = vmatpush2.msra.mxu0 0.0
        %825 = vmatprep.subr.mxu0 0.0
        %826 = vmatpush2.msra.mxu0 0.0
        %827 = vmatprep.mubr.f32.mxu0 0.0
        %v828 = vand.u32 %v175, 4294901760
        %v829 = vsub.f32 %v175, %v828
        %v830 = vand.u32 %v829, 4294901760
        %831 = vmatmul.mubr.f32.gmra.mxu0 %v830
        %v832 = vpop.f32.mrf.mxu0
        %v833 = vadd.f32 %v719, %v832
        %v834 = vpop.f32.mrf.mxu0
        %v835 = vadd.f32 %v721, %v834
        %836 = vmatprep.mubr.f32.mxu0 0.0
        %v837 = vand.u32 %v176, 4294901760
        %v838 = vsub.f32 %v176, %v837
        %v839 = vand.u32 %v838, 4294901760
        %840 = vmatmul.mubr.f32.gmra.mxu0 %v839
        %v841 = vpop.f32.mrf.mxu0
        %v842 = vadd.f32 %v727, %v841
        %v843 = vpop.f32.mrf.mxu0
        %v844 = vadd.f32 %v729, %v843
        %845 = vdwg.mxu0
        %v846 = vand.u32 %v226, 4294901760
        %v847 = vsub.f32 %v226, %v846
        %v848 = vand.u32 %v847, 4294901760
        %849 = vmatprep.subr.mxu0 %v848
        %v850 = vand.u32 %v225, 4294901760
        %v851 = vsub.f32 %v225, %v850
        %v852 = vand.u32 %v851, 4294901760
        %853 = vmatpush1.msra.mxu0 %v852
        %v854 = vand.u32 %v223, 4294901760
        %v855 = vsub.f32 %v223, %v854
        %v856 = vand.u32 %v855, 4294901760
        %857 = vmatprep.subr.mxu0 %v856
        %v858 = vand.u32 %v222, 4294901760
        %v859 = vsub.f32 %v222, %v858
        %v860 = vand.u32 %v859, 4294901760
        %861 = vmatpush1.msra.mxu0 %v860
        %v862 = vand.u32 %v220, 4294901760
        %v863 = vsub.f32 %v220, %v862
        %v864 = vand.u32 %v863, 4294901760
        %865 = vmatprep.subr.mxu0 %v864
        %v866 = vand.u32 %v219, 4294901760
        %v867 = vsub.f32 %v219, %v866
        %v868 = vand.u32 %v867, 4294901760
        %869 = vmatpush1.msra.mxu0 %v868
        %v870 = vand.u32 %v217, 4294901760
        %v871 = vsub.f32 %v217, %v870
        %v872 = vand.u32 %v871, 4294901760
        %873 = vmatprep.subr.mxu0 %v872
        %v874 = vand.u32 %v216, 4294901760
        %v875 = vsub.f32 %v216, %v874
        %v876 = vand.u32 %v875, 4294901760
        %877 = vmatpush1.msra.mxu0 %v876
        %v878 = vand.u32 %v214, 4294901760
        %v879 = vsub.f32 %v214, %v878
        %v880 = vand.u32 %v879, 4294901760
        %881 = vmatprep.subr.mxu0 %v880
        %v882 = vand.u32 %v213, 4294901760
        %v883 = vsub.f32 %v213, %v882
        %v884 = vand.u32 %v883, 4294901760
        %885 = vmatpush1.msra.mxu0 %v884
        %v886 = vand.u32 %v211, 4294901760
        %v887 = vsub.f32 %v211, %v886
        %v888 = vand.u32 %v887, 4294901760
        %889 = vmatprep.subr.mxu0 %v888
        %v890 = vand.u32 %v210, 4294901760
        %v891 = vsub.f32 %v210, %v890
        %v892 = vand.u32 %v891, 4294901760
        %893 = vmatpush1.msra.mxu0 %v892
        %v894 = vand.u32 %v208, 4294901760
        %v895 = vsub.f32 %v208, %v894
        %v896 = vand.u32 %v895, 4294901760
        %897 = vmatprep.subr.mxu0 %v896
        %v898 = vand.u32 %v207, 4294901760
        %v899 = vsub.f32 %v207, %v898
        %v900 = vand.u32 %v899, 4294901760
        %901 = vmatpush1.msra.mxu0 %v900
        %v902 = vand.u32 %v205, 4294901760
        %v903 = vsub.f32 %v205, %v902
        %v904 = vand.u32 %v903, 4294901760
        %905 = vmatprep.subr.mxu0 %v904
        %v906 = vand.u32 %v204, 4294901760
        %v907 = vsub.f32 %v204, %v906
        %v908 = vand.u32 %v907, 4294901760
        %909 = vmatpush1.msra.mxu0 %v908
        %v910 = vand.u32 %v202, 4294901760
        %v911 = vsub.f32 %v202, %v910
        %v912 = vand.u32 %v911, 4294901760
        %913 = vmatprep.subr.mxu0 %v912
        %v914 = vand.u32 %v201, 4294901760
        %v915 = vsub.f32 %v201, %v914
        %v916 = vand.u32 %v915, 4294901760
        %917 = vmatpush1.msra.mxu0 %v916
        %v918 = vand.u32 %v199, 4294901760
        %v919 = vsub.f32 %v199, %v918
        %v920 = vand.u32 %v919, 4294901760
        %921 = vmatprep.subr.mxu0 %v920
        %v922 = vand.u32 %v198, 4294901760
        %v923 = vsub.f32 %v198, %v922
        %v924 = vand.u32 %v923, 4294901760
        %925 = vmatpush1.msra.mxu0 %v924
        %v926 = vand.u32 %v196, 4294901760
        %v927 = vsub.f32 %v196, %v926
        %v928 = vand.u32 %v927, 4294901760
        %929 = vmatprep.subr.mxu0 %v928
        %v930 = vand.u32 %v195, 4294901760
        %v931 = vsub.f32 %v195, %v930
        %v932 = vand.u32 %v931, 4294901760
        %933 = vmatpush1.msra.mxu0 %v932
        %v934 = vand.u32 %v193, 4294901760
        %v935 = vsub.f32 %v193, %v934
        %v936 = vand.u32 %v935, 4294901760
        %937 = vmatprep.subr.mxu0 %v936
        %v938 = vand.u32 %v192, 4294901760
        %v939 = vsub.f32 %v192, %v938
        %v940 = vand.u32 %v939, 4294901760
        %941 = vmatpush1.msra.mxu0 %v940
        %v942 = vand.u32 %v190, 4294901760
        %v943 = vsub.f32 %v190, %v942
        %v944 = vand.u32 %v943, 4294901760
        %945 = vmatprep.subr.mxu0 %v944
        %v946 = vand.u32 %v189, 4294901760
        %v947 = vsub.f32 %v189, %v946
        %v948 = vand.u32 %v947, 4294901760
        %949 = vmatpush1.msra.mxu0 %v948
        %v950 = vand.u32 %v187, 4294901760
        %v951 = vsub.f32 %v187, %v950
        %v952 = vand.u32 %v951, 4294901760
        %953 = vmatprep.subr.mxu0 %v952
        %v954 = vand.u32 %v186, 4294901760
        %v955 = vsub.f32 %v186, %v954
        %v956 = vand.u32 %v955, 4294901760
        %957 = vmatpush1.msra.mxu0 %v956
        %v958 = vand.u32 %v184, 4294901760
        %v959 = vsub.f32 %v184, %v958
        %v960 = vand.u32 %v959, 4294901760
        %961 = vmatprep.subr.mxu0 %v960
        %v962 = vand.u32 %v183, 4294901760
        %v963 = vsub.f32 %v183, %v962
        %v964 = vand.u32 %v963, 4294901760
        %965 = vmatpush1.msra.mxu0 %v964
        %v966 = vand.u32 %v181, 4294901760
        %v967 = vsub.f32 %v181, %v966
        %v968 = vand.u32 %v967, 4294901760
        %969 = vmatprep.subr.mxu0 %v968
        %v970 = vand.u32 %v180, 4294901760
        %v971 = vsub.f32 %v180, %v970
        %v972 = vand.u32 %v971, 4294901760
        %973 = vmatpush1.msra.mxu0 %v972
        %974 = vmatprep.subr.mxu0 0.0
        %975 = vmatpush2.msra.mxu0 0.0
        %976 = vmatprep.subr.mxu0 0.0
        %977 = vmatpush2.msra.mxu0 0.0
        %978 = vmatprep.subr.mxu0 0.0
        %979 = vmatpush2.msra.mxu0 0.0
        %980 = vmatprep.subr.mxu0 0.0
        %981 = vmatpush2.msra.mxu0 0.0
        %982 = vmatprep.subr.mxu0 0.0
        %983 = vmatpush2.msra.mxu0 0.0
        %984 = vmatprep.subr.mxu0 0.0
        %985 = vmatpush2.msra.mxu0 0.0
        %986 = vmatprep.subr.mxu0 0.0
        %987 = vmatpush2.msra.mxu0 0.0
        %988 = vmatprep.subr.mxu0 0.0
        %989 = vmatpush2.msra.mxu0 0.0
        %990 = vmatprep.subr.mxu0 0.0
        %991 = vmatpush2.msra.mxu0 0.0
        %992 = vmatprep.subr.mxu0 0.0
        %993 = vmatpush2.msra.mxu0 0.0
        %994 = vmatprep.subr.mxu0 0.0
        %995 = vmatpush2.msra.mxu0 0.0
        %996 = vmatprep.subr.mxu0 0.0
        %997 = vmatpush2.msra.mxu0 0.0
        %998 = vmatprep.subr.mxu0 0.0
        %999 = vmatpush2.msra.mxu0 0.0
        %1000 = vmatprep.subr.mxu0 0.0
        %1001 = vmatpush2.msra.mxu0 0.0
        %1002 = vmatprep.subr.mxu0 0.0
        %1003 = vmatpush2.msra.mxu0 0.0
        %1004 = vmatprep.subr.mxu0 0.0
        %1005 = vmatpush2.msra.mxu0 0.0
        %1006 = vmatprep.mubr.f32.mxu0 0.0
        %v1007 = vand.u32 %v175, 4294901760
        %1008 = vmatmul.mubr.f32.gmra.mxu0 %v1007
        %v1009 = vpop.f32.mrf.mxu0
        %v1010 = vadd.f32 %v833, %v1009
        %v1011 = vpop.f32.mrf.mxu0
        %v1012 = vadd.f32 %v835, %v1011
        %1013 = vmatprep.mubr.f32.mxu0 0.0
        %v1014 = vand.u32 %v176, 4294901760
        %1015 = vmatmul.mubr.f32.gmra.mxu0 %v1014
        %v1016 = vpop.f32.mrf.mxu0
        %v1017 = vadd.f32 %v842, %v1016
        %v1018 = vpop.f32.mrf.mxu0
        %v1019 = vadd.f32 %v844, %v1018
        %1020 = vdwg.mxu0
        %v1021 = vand.u32 %v226, 4294901760
        %1022 = vmatprep.subr.mxu0 %v1021
        %v1023 = vand.u32 %v225, 4294901760
        %1024 = vmatpush1.msra.mxu0 %v1023
        %v1025 = vand.u32 %v223, 4294901760
        %1026 = vmatprep.subr.mxu0 %v1025
        %v1027 = vand.u32 %v222, 4294901760
        %1028 = vmatpush1.msra.mxu0 %v1027
        %v1029 = vand.u32 %v220, 4294901760
        %1030 = vmatprep.subr.mxu0 %v1029
        %v1031 = vand.u32 %v219, 4294901760
        %1032 = vmatpush1.msra.mxu0 %v1031
        %v1033 = vand.u32 %v217, 4294901760
        %1034 = vmatprep.subr.mxu0 %v1033
        %v1035 = vand.u32 %v216, 4294901760
        %1036 = vmatpush1.msra.mxu0 %v1035
        %v1037 = vand.u32 %v214, 4294901760
        %1038 = vmatprep.subr.mxu0 %v1037
        %v1039 = vand.u32 %v213, 4294901760
        %1040 = vmatpush1.msra.mxu0 %v1039
        %v1041 = vand.u32 %v211, 4294901760
        %1042 = vmatprep.subr.mxu0 %v1041
        %v1043 = vand.u32 %v210, 4294901760
        %1044 = vmatpush1.msra.mxu0 %v1043
        %v1045 = vand.u32 %v208, 4294901760
        %1046 = vmatprep.subr.mxu0 %v1045
        %v1047 = vand.u32 %v207, 4294901760
        %1048 = vmatpush1.msra.mxu0 %v1047
        %v1049 = vand.u32 %v205, 4294901760
        %1050 = vmatprep.subr.mxu0 %v1049
        %v1051 = vand.u32 %v204, 4294901760
        %1052 = vmatpush1.msra.mxu0 %v1051
        %v1053 = vand.u32 %v202, 4294901760
        %1054 = vmatprep.subr.mxu0 %v1053
        %v1055 = vand.u32 %v201, 4294901760
        %1056 = vmatpush1.msra.mxu0 %v1055
        %v1057 = vand.u32 %v199, 4294901760
        %1058 = vmatprep.subr.mxu0 %v1057
        %v1059 = vand.u32 %v198, 4294901760
        %1060 = vmatpush1.msra.mxu0 %v1059
        %v1061 = vand.u32 %v196, 4294901760
        %1062 = vmatprep.subr.mxu0 %v1061
        %v1063 = vand.u32 %v195, 4294901760
        %1064 = vmatpush1.msra.mxu0 %v1063
        %v1065 = vand.u32 %v193, 4294901760
        %1066 = vmatprep.subr.mxu0 %v1065
        %v1067 = vand.u32 %v192, 4294901760
        %1068 = vmatpush1.msra.mxu0 %v1067
        %v1069 = vand.u32 %v190, 4294901760
        %1070 = vmatprep.subr.mxu0 %v1069
        %v1071 = vand.u32 %v189, 4294901760
        %1072 = vmatpush1.msra.mxu0 %v1071
        %v1073 = vand.u32 %v187, 4294901760
        %1074 = vmatprep.subr.mxu0 %v1073
        %v1075 = vand.u32 %v186, 4294901760
        %1076 = vmatpush1.msra.mxu0 %v1075
        %v1077 = vand.u32 %v184, 4294901760
        %1078 = vmatprep.subr.mxu0 %v1077
        %v1079 = vand.u32 %v183, 4294901760
        %1080 = vmatpush1.msra.mxu0 %v1079
        %v1081 = vand.u32 %v181, 4294901760
        %1082 = vmatprep.subr.mxu0 %v1081
        %v1083 = vand.u32 %v180, 4294901760
        %1084 = vmatpush1.msra.mxu0 %v1083
        %1085 = vmatprep.subr.mxu0 0.0
        %1086 = vmatpush2.msra.mxu0 0.0
        %1087 = vmatprep.subr.mxu0 0.0
        %1088 = vmatpush2.msra.mxu0 0.0
        %1089 = vmatprep.subr.mxu0 0.0
        %1090 = vmatpush2.msra.mxu0 0.0
        %1091 = vmatprep.subr.mxu0 0.0
        %1092 = vmatpush2.msra.mxu0 0.0
        %1093 = vmatprep.subr.mxu0 0.0
        %1094 = vmatpush2.msra.mxu0 0.0
        %1095 = vmatprep.subr.mxu0 0.0
        %1096 = vmatpush2.msra.mxu0 0.0
        %1097 = vmatprep.subr.mxu0 0.0
        %1098 = vmatpush2.msra.mxu0 0.0
        %1099 = vmatprep.subr.mxu0 0.0
        %1100 = vmatpush2.msra.mxu0 0.0
        %1101 = vmatprep.subr.mxu0 0.0
        %1102 = vmatpush2.msra.mxu0 0.0
        %1103 = vmatprep.subr.mxu0 0.0
        %1104 = vmatpush2.msra.mxu0 0.0
        %1105 = vmatprep.subr.mxu0 0.0
        %1106 = vmatpush2.msra.mxu0 0.0
        %1107 = vmatprep.subr.mxu0 0.0
        %1108 = vmatpush2.msra.mxu0 0.0
        %1109 = vmatprep.subr.mxu0 0.0
        %1110 = vmatpush2.msra.mxu0 0.0
        %1111 = vmatprep.subr.mxu0 0.0
        %1112 = vmatpush2.msra.mxu0 0.0
        %1113 = vmatprep.subr.mxu0 0.0
        %1114 = vmatpush2.msra.mxu0 0.0
        %1115 = vmatprep.subr.mxu0 0.0
        %1116 = vmatpush2.msra.mxu0 0.0
        %1117 = vmatprep.mubr.f32.mxu0 0.0
        %v1118 = vand.u32 %v175, 4294901760
        %1119 = vmatmul.mubr.f32.gmra.mxu0 %v1118
        %v1120 = vpop.f32.mrf.mxu0
        %v1121 = vadd.f32 %v1010, %v1120
        %v1122 = vpop.f32.mrf.mxu0
        %v1123 = vadd.f32 %v1012, %v1122
        %1124 = vmatprep.mubr.f32.mxu0 0.0
        %v1125 = vand.u32 %v176, 4294901760
        %1126 = vmatmul.mubr.f32.gmra.mxu0 %v1125
        %v1127 = vpop.f32.mrf.mxu0
        %v1128 = vadd.f32 %v1017, %v1127
        %v1129 = vpop.f32.mrf.mxu0
        %v1130 = vadd.f32 %v1019, %v1129
        %1131 = vdwg.mxu0
        %1132 = vmatprep.subr.mxu0 0.0
        %v1133 = vand.u32 %v227, 4294901760
        %1134 = vmatpush1.msra.mxu0 %v1133
        %1135 = vmatprep.subr.mxu0 0.0
        %v1136 = vand.u32 %v224, 4294901760
        %1137 = vmatpush1.msra.mxu0 %v1136
        %1138 = vmatprep.subr.mxu0 0.0
        %v1139 = vand.u32 %v221, 4294901760
        %1140 = vmatpush1.msra.mxu0 %v1139
        %1141 = vmatprep.subr.mxu0 0.0
        %v1142 = vand.u32 %v218, 4294901760
        %1143 = vmatpush1.msra.mxu0 %v1142
        %1144 = vmatprep.subr.mxu0 0.0
        %v1145 = vand.u32 %v215, 4294901760
        %1146 = vmatpush1.msra.mxu0 %v1145
        %1147 = vmatprep.subr.mxu0 0.0
        %v1148 = vand.u32 %v212, 4294901760
        %1149 = vmatpush1.msra.mxu0 %v1148
        %1150 = vmatprep.subr.mxu0 0.0
        %v1151 = vand.u32 %v209, 4294901760
        %1152 = vmatpush1.msra.mxu0 %v1151
        %1153 = vmatprep.subr.mxu0 0.0
        %v1154 = vand.u32 %v206, 4294901760
        %1155 = vmatpush1.msra.mxu0 %v1154
        %1156 = vmatprep.subr.mxu0 0.0
        %v1157 = vand.u32 %v203, 4294901760
        %1158 = vmatpush1.msra.mxu0 %v1157
        %1159 = vmatprep.subr.mxu0 0.0
        %v1160 = vand.u32 %v200, 4294901760
        %1161 = vmatpush1.msra.mxu0 %v1160
        %1162 = vmatprep.subr.mxu0 0.0
        %v1163 = vand.u32 %v197, 4294901760
        %1164 = vmatpush1.msra.mxu0 %v1163
        %1165 = vmatprep.subr.mxu0 0.0
        %v1166 = vand.u32 %v194, 4294901760
        %1167 = vmatpush1.msra.mxu0 %v1166
        %1168 = vmatprep.subr.mxu0 0.0
        %v1169 = vand.u32 %v191, 4294901760
        %1170 = vmatpush1.msra.mxu0 %v1169
        %1171 = vmatprep.subr.mxu0 0.0
        %v1172 = vand.u32 %v188, 4294901760
        %1173 = vmatpush1.msra.mxu0 %v1172
        %1174 = vmatprep.subr.mxu0 0.0
        %v1175 = vand.u32 %v185, 4294901760
        %1176 = vmatpush1.msra.mxu0 %v1175
        %1177 = vmatprep.subr.mxu0 0.0
        %v1178 = vand.u32 %v182, 4294901760
        %1179 = vmatpush1.msra.mxu0 %v1178
        %1180 = vmatprep.subr.mxu0 0.0
        %1181 = vmatpush2.msra.mxu0 0.0
        %1182 = vmatprep.subr.mxu0 0.0
        %1183 = vmatpush2.msra.mxu0 0.0
        %1184 = vmatprep.subr.mxu0 0.0
        %1185 = vmatpush2.msra.mxu0 0.0
        %1186 = vmatprep.subr.mxu0 0.0
        %1187 = vmatpush2.msra.mxu0 0.0
        %1188 = vmatprep.subr.mxu0 0.0
        %1189 = vmatpush2.msra.mxu0 0.0
        %1190 = vmatprep.subr.mxu0 0.0
        %1191 = vmatpush2.msra.mxu0 0.0
        %1192 = vmatprep.subr.mxu0 0.0
        %1193 = vmatpush2.msra.mxu0 0.0
        %1194 = vmatprep.subr.mxu0 0.0
        %1195 = vmatpush2.msra.mxu0 0.0
        %1196 = vmatprep.subr.mxu0 0.0
        %1197 = vmatpush2.msra.mxu0 0.0
        %1198 = vmatprep.subr.mxu0 0.0
        %1199 = vmatpush2.msra.mxu0 0.0
        %1200 = vmatprep.subr.mxu0 0.0
        %1201 = vmatpush2.msra.mxu0 0.0
        %1202 = vmatprep.subr.mxu0 0.0
        %1203 = vmatpush2.msra.mxu0 0.0
        %1204 = vmatprep.subr.mxu0 0.0
        %1205 = vmatpush2.msra.mxu0 0.0
        %1206 = vmatprep.subr.mxu0 0.0
        %1207 = vmatpush2.msra.mxu0 0.0
        %1208 = vmatprep.subr.mxu0 0.0
        %1209 = vmatpush2.msra.mxu0 0.0
        %1210 = vmatprep.subr.mxu0 0.0
        %1211 = vmatpush2.msra.mxu0 0.0
        %1212 = vmatprep.mubr.f32.mxu0 0.0
        %v1213 = vand.u32 %v175, 4294901760
        %v1214 = vsub.f32 %v175, %v1213
        %v1215 = vand.u32 %v1214, 4294901760
        %v1216 = vsub.f32 %v1214, %v1215
        %v1217 = vand.u32 %v1216, 4294901760
        %1218 = vmatmul.mubr.f32.gmra.mxu0 %v1217
        %v1219 = vpop.f32.mrf.mxu0
        %v1220 = vadd.f32 0.0, %v1219
        %v1221 = vpop.f32.mrf.mxu0
        %1222 = vmatprep.mubr.f32.mxu0 0.0
        %v1223 = vand.u32 %v176, 4294901760
        %v1224 = vsub.f32 %v176, %v1223
        %v1225 = vand.u32 %v1224, 4294901760
        %v1226 = vsub.f32 %v1224, %v1225
        %v1227 = vand.u32 %v1226, 4294901760
        %1228 = vmatmul.mubr.f32.gmra.mxu0 %v1227
        %v1229 = vpop.f32.mrf.mxu0
        %v1230 = vadd.f32 0.0, %v1229
        %v1231 = vpop.f32.mrf.mxu0
        %1232 = vdwg.mxu0
        %1233 = vmatprep.subr.mxu0 0.0
        %v1234 = vand.u32 %v227, 4294901760
        %v1235 = vsub.f32 %v227, %v1234
        %v1236 = vand.u32 %v1235, 4294901760
        %v1237 = vsub.f32 %v1235, %v1236
        %v1238 = vand.u32 %v1237, 4294901760
        %1239 = vmatpush1.msra.mxu0 %v1238
        %1240 = vmatprep.subr.mxu0 0.0
        %v1241 = vand.u32 %v224, 4294901760
        %v1242 = vsub.f32 %v224, %v1241
        %v1243 = vand.u32 %v1242, 4294901760
        %v1244 = vsub.f32 %v1242, %v1243
        %v1245 = vand.u32 %v1244, 4294901760
        %1246 = vmatpush1.msra.mxu0 %v1245
        %1247 = vmatprep.subr.mxu0 0.0
        %v1248 = vand.u32 %v221, 4294901760
        %v1249 = vsub.f32 %v221, %v1248
        %v1250 = vand.u32 %v1249, 4294901760
        %v1251 = vsub.f32 %v1249, %v1250
        %v1252 = vand.u32 %v1251, 4294901760
        %1253 = vmatpush1.msra.mxu0 %v1252
        %1254 = vmatprep.subr.mxu0 0.0
        %v1255 = vand.u32 %v218, 4294901760
        %v1256 = vsub.f32 %v218, %v1255
        %v1257 = vand.u32 %v1256, 4294901760
        %v1258 = vsub.f32 %v1256, %v1257
        %v1259 = vand.u32 %v1258, 4294901760
        %1260 = vmatpush1.msra.mxu0 %v1259
        %1261 = vmatprep.subr.mxu0 0.0
        %v1262 = vand.u32 %v215, 4294901760
        %v1263 = vsub.f32 %v215, %v1262
        %v1264 = vand.u32 %v1263, 4294901760
        %v1265 = vsub.f32 %v1263, %v1264
        %v1266 = vand.u32 %v1265, 4294901760
        %1267 = vmatpush1.msra.mxu0 %v1266
        %1268 = vmatprep.subr.mxu0 0.0
        %v1269 = vand.u32 %v212, 4294901760
        %v1270 = vsub.f32 %v212, %v1269
        %v1271 = vand.u32 %v1270, 4294901760
        %v1272 = vsub.f32 %v1270, %v1271
        %v1273 = vand.u32 %v1272, 4294901760
        %1274 = vmatpush1.msra.mxu0 %v1273
        %1275 = vmatprep.subr.mxu0 0.0
        %v1276 = vand.u32 %v209, 4294901760
        %v1277 = vsub.f32 %v209, %v1276
        %v1278 = vand.u32 %v1277, 4294901760
        %v1279 = vsub.f32 %v1277, %v1278
        %v1280 = vand.u32 %v1279, 4294901760
        %1281 = vmatpush1.msra.mxu0 %v1280
        %1282 = vmatprep.subr.mxu0 0.0
        %v1283 = vand.u32 %v206, 4294901760
        %v1284 = vsub.f32 %v206, %v1283
        %v1285 = vand.u32 %v1284, 4294901760
        %v1286 = vsub.f32 %v1284, %v1285
        %v1287 = vand.u32 %v1286, 4294901760
        %1288 = vmatpush1.msra.mxu0 %v1287
        %1289 = vmatprep.subr.mxu0 0.0
        %v1290 = vand.u32 %v203, 4294901760
        %v1291 = vsub.f32 %v203, %v1290
        %v1292 = vand.u32 %v1291, 4294901760
        %v1293 = vsub.f32 %v1291, %v1292
        %v1294 = vand.u32 %v1293, 4294901760
        %1295 = vmatpush1.msra.mxu0 %v1294
        %1296 = vmatprep.subr.mxu0 0.0
        %v1297 = vand.u32 %v200, 4294901760
        %v1298 = vsub.f32 %v200, %v1297
        %v1299 = vand.u32 %v1298, 4294901760
        %v1300 = vsub.f32 %v1298, %v1299
        %v1301 = vand.u32 %v1300, 4294901760
        %1302 = vmatpush1.msra.mxu0 %v1301
        %1303 = vmatprep.subr.mxu0 0.0
        %v1304 = vand.u32 %v197, 4294901760
        %v1305 = vsub.f32 %v197, %v1304
        %v1306 = vand.u32 %v1305, 4294901760
        %v1307 = vsub.f32 %v1305, %v1306
        %v1308 = vand.u32 %v1307, 4294901760
        %1309 = vmatpush1.msra.mxu0 %v1308
        %1310 = vmatprep.subr.mxu0 0.0
        %v1311 = vand.u32 %v194, 4294901760
        %v1312 = vsub.f32 %v194, %v1311
        %v1313 = vand.u32 %v1312, 4294901760
        %v1314 = vsub.f32 %v1312, %v1313
        %v1315 = vand.u32 %v1314, 4294901760
        %1316 = vmatpush1.msra.mxu0 %v1315
        %1317 = vmatprep.subr.mxu0 0.0
        %v1318 = vand.u32 %v191, 4294901760
        %v1319 = vsub.f32 %v191, %v1318
        %v1320 = vand.u32 %v1319, 4294901760
        %v1321 = vsub.f32 %v1319, %v1320
        %v1322 = vand.u32 %v1321, 4294901760
        %1323 = vmatpush1.msra.mxu0 %v1322
        %1324 = vmatprep.subr.mxu0 0.0
        %v1325 = vand.u32 %v188, 4294901760
        %v1326 = vsub.f32 %v188, %v1325
        %v1327 = vand.u32 %v1326, 4294901760
        %v1328 = vsub.f32 %v1326, %v1327
        %v1329 = vand.u32 %v1328, 4294901760
        %1330 = vmatpush1.msra.mxu0 %v1329
        %1331 = vmatprep.subr.mxu0 0.0
        %v1332 = vand.u32 %v185, 4294901760
        %v1333 = vsub.f32 %v185, %v1332
        %v1334 = vand.u32 %v1333, 4294901760
        %v1335 = vsub.f32 %v1333, %v1334
        %v1336 = vand.u32 %v1335, 4294901760
        %1337 = vmatpush1.msra.mxu0 %v1336
        %1338 = vmatprep.subr.mxu0 0.0
        %v1339 = vand.u32 %v182, 4294901760
        %v1340 = vsub.f32 %v182, %v1339
        %v1341 = vand.u32 %v1340, 4294901760
        %v1342 = vsub.f32 %v1340, %v1341
        %v1343 = vand.u32 %v1342, 4294901760
        %1344 = vmatpush1.msra.mxu0 %v1343
        %1345 = vmatprep.subr.mxu0 0.0
        %1346 = vmatpush2.msra.mxu0 0.0
        %1347 = vmatprep.subr.mxu0 0.0
        %1348 = vmatpush2.msra.mxu0 0.0
        %1349 = vmatprep.subr.mxu0 0.0
        %1350 = vmatpush2.msra.mxu0 0.0
        %1351 = vmatprep.subr.mxu0 0.0
        %1352 = vmatpush2.msra.mxu0 0.0
        %1353 = vmatprep.subr.mxu0 0.0
        %1354 = vmatpush2.msra.mxu0 0.0
        %1355 = vmatprep.subr.mxu0 0.0
        %1356 = vmatpush2.msra.mxu0 0.0
        %1357 = vmatprep.subr.mxu0 0.0
        %1358 = vmatpush2.msra.mxu0 0.0
        %1359 = vmatprep.subr.mxu0 0.0
        %1360 = vmatpush2.msra.mxu0 0.0
        %1361 = vmatprep.subr.mxu0 0.0
        %1362 = vmatpush2.msra.mxu0 0.0
        %1363 = vmatprep.subr.mxu0 0.0
        %1364 = vmatpush2.msra.mxu0 0.0
        %1365 = vmatprep.subr.mxu0 0.0
        %1366 = vmatpush2.msra.mxu0 0.0
        %1367 = vmatprep.subr.mxu0 0.0
        %1368 = vmatpush2.msra.mxu0 0.0
        %1369 = vmatprep.subr.mxu0 0.0
        %1370 = vmatpush2.msra.mxu0 0.0
        %1371 = vmatprep.subr.mxu0 0.0
        %1372 = vmatpush2.msra.mxu0 0.0
        %1373 = vmatprep.subr.mxu0 0.0
        %1374 = vmatpush2.msra.mxu0 0.0
        %1375 = vmatprep.subr.mxu0 0.0
        %1376 = vmatpush2.msra.mxu0 0.0
        %1377 = vmatprep.mubr.f32.mxu0 0.0
        %v1378 = vand.u32 %v175, 4294901760
        %1379 = vmatmul.mubr.f32.gmra.mxu0 %v1378
        %v1380 = vpop.f32.mrf.mxu0
        %v1381 = vadd.f32 %v1220, %v1380
        %v1382 = vpop.f32.mrf.mxu0
        %1383 = vmatprep.mubr.f32.mxu0 0.0
        %v1384 = vand.u32 %v176, 4294901760
        %1385 = vmatmul.mubr.f32.gmra.mxu0 %v1384
        %v1386 = vpop.f32.mrf.mxu0
        %v1387 = vadd.f32 %v1230, %v1386
        %v1388 = vpop.f32.mrf.mxu0
        %1389 = vdwg.mxu0
        %1390 = vmatprep.subr.mxu0 0.0
        %v1391 = vand.u32 %v227, 4294901760
        %v1392 = vsub.f32 %v227, %v1391
        %1393 = vmatpush1.msra.mxu0 %v1392
        %1394 = vmatprep.subr.mxu0 0.0
        %v1395 = vand.u32 %v224, 4294901760
        %v1396 = vsub.f32 %v224, %v1395
        %1397 = vmatpush1.msra.mxu0 %v1396
        %1398 = vmatprep.subr.mxu0 0.0
        %v1399 = vand.u32 %v221, 4294901760
        %v1400 = vsub.f32 %v221, %v1399
        %1401 = vmatpush1.msra.mxu0 %v1400
        %1402 = vmatprep.subr.mxu0 0.0
        %v1403 = vand.u32 %v218, 4294901760
        %v1404 = vsub.f32 %v218, %v1403
        %1405 = vmatpush1.msra.mxu0 %v1404
        %1406 = vmatprep.subr.mxu0 0.0
        %v1407 = vand.u32 %v215, 4294901760
        %v1408 = vsub.f32 %v215, %v1407
        %1409 = vmatpush1.msra.mxu0 %v1408
        %1410 = vmatprep.subr.mxu0 0.0
        %v1411 = vand.u32 %v212, 4294901760
        %v1412 = vsub.f32 %v212, %v1411
        %1413 = vmatpush1.msra.mxu0 %v1412
        %1414 = vmatprep.subr.mxu0 0.0
        %v1415 = vand.u32 %v209, 4294901760
        %v1416 = vsub.f32 %v209, %v1415
        %1417 = vmatpush1.msra.mxu0 %v1416
        %1418 = vmatprep.subr.mxu0 0.0
        %v1419 = vand.u32 %v206, 4294901760
        %v1420 = vsub.f32 %v206, %v1419
        %1421 = vmatpush1.msra.mxu0 %v1420
        %1422 = vmatprep.subr.mxu0 0.0
        %v1423 = vand.u32 %v203, 4294901760
        %v1424 = vsub.f32 %v203, %v1423
        %1425 = vmatpush1.msra.mxu0 %v1424
        %1426 = vmatprep.subr.mxu0 0.0
        %v1427 = vand.u32 %v200, 4294901760
        %v1428 = vsub.f32 %v200, %v1427
        %1429 = vmatpush1.msra.mxu0 %v1428
        %1430 = vmatprep.subr.mxu0 0.0
        %v1431 = vand.u32 %v197, 4294901760
        %v1432 = vsub.f32 %v197, %v1431
        %1433 = vmatpush1.msra.mxu0 %v1432
        %1434 = vmatprep.subr.mxu0 0.0
        %v1435 = vand.u32 %v194, 4294901760
        %v1436 = vsub.f32 %v194, %v1435
        %1437 = vmatpush1.msra.mxu0 %v1436
        %1438 = vmatprep.subr.mxu0 0.0
        %v1439 = vand.u32 %v191, 4294901760
        %v1440 = vsub.f32 %v191, %v1439
        %1441 = vmatpush1.msra.mxu0 %v1440
        %1442 = vmatprep.subr.mxu0 0.0
        %v1443 = vand.u32 %v188, 4294901760
        %v1444 = vsub.f32 %v188, %v1443
        %1445 = vmatpush1.msra.mxu0 %v1444
        %1446 = vmatprep.subr.mxu0 0.0
        %v1447 = vand.u32 %v185, 4294901760
        %v1448 = vsub.f32 %v185, %v1447
        %1449 = vmatpush1.msra.mxu0 %v1448
        %1450 = vmatprep.subr.mxu0 0.0
        %v1451 = vand.u32 %v182, 4294901760
        %v1452 = vsub.f32 %v182, %v1451
        %1453 = vmatpush1.msra.mxu0 %v1452
        %1454 = vmatprep.subr.mxu0 0.0
        %1455 = vmatpush2.msra.mxu0 0.0
        %1456 = vmatprep.subr.mxu0 0.0
        %1457 = vmatpush2.msra.mxu0 0.0
        %1458 = vmatprep.subr.mxu0 0.0
        %1459 = vmatpush2.msra.mxu0 0.0
        %1460 = vmatprep.subr.mxu0 0.0
        %1461 = vmatpush2.msra.mxu0 0.0
        %1462 = vmatprep.subr.mxu0 0.0
        %1463 = vmatpush2.msra.mxu0 0.0
        %1464 = vmatprep.subr.mxu0 0.0
        %1465 = vmatpush2.msra.mxu0 0.0
        %1466 = vmatprep.subr.mxu0 0.0
        %1467 = vmatpush2.msra.mxu0 0.0
        %1468 = vmatprep.subr.mxu0 0.0
        %1469 = vmatpush2.msra.mxu0 0.0
        %1470 = vmatprep.subr.mxu0 0.0
        %1471 = vmatpush2.msra.mxu0 0.0
        %1472 = vmatprep.subr.mxu0 0.0
        %1473 = vmatpush2.msra.mxu0 0.0
        %1474 = vmatprep.subr.mxu0 0.0
        %1475 = vmatpush2.msra.mxu0 0.0
        %1476 = vmatprep.subr.mxu0 0.0
        %1477 = vmatpush2.msra.mxu0 0.0
        %1478 = vmatprep.subr.mxu0 0.0
        %1479 = vmatpush2.msra.mxu0 0.0
        %1480 = vmatprep.subr.mxu0 0.0
        %1481 = vmatpush2.msra.mxu0 0.0
        %1482 = vmatprep.subr.mxu0 0.0
        %1483 = vmatpush2.msra.mxu0 0.0
        %1484 = vmatprep.subr.mxu0 0.0
        %1485 = vmatpush2.msra.mxu0 0.0
        %1486 = vmatprep.mubr.f32.mxu0 0.0
        %v1487 = vand.u32 %v175, 4294901760
        %v1488 = vsub.f32 %v175, %v1487
        %1489 = vmatmul.mubr.f32.gmra.mxu0 %v1488
        %v1490 = vpop.f32.mrf.mxu0
        %v1491 = vadd.f32 %v1381, %v1490
        %v1492 = vpop.f32.mrf.mxu0
        %1493 = vmatprep.mubr.f32.mxu0 0.0
        %v1494 = vand.u32 %v176, 4294901760
        %v1495 = vsub.f32 %v176, %v1494
        %1496 = vmatmul.mubr.f32.gmra.mxu0 %v1495
        %v1497 = vpop.f32.mrf.mxu0
        %v1498 = vadd.f32 %v1387, %v1497
        %v1499 = vpop.f32.mrf.mxu0
        %1500 = vdwg.mxu0
        %1501 = vmatprep.subr.mxu0 0.0
        %v1502 = vand.u32 %v227, 4294901760
        %1503 = vmatpush1.msra.mxu0 %v1502
        %1504 = vmatprep.subr.mxu0 0.0
        %v1505 = vand.u32 %v224, 4294901760
        %1506 = vmatpush1.msra.mxu0 %v1505
        %1507 = vmatprep.subr.mxu0 0.0
        %v1508 = vand.u32 %v221, 4294901760
        %1509 = vmatpush1.msra.mxu0 %v1508
        %1510 = vmatprep.subr.mxu0 0.0
        %v1511 = vand.u32 %v218, 4294901760
        %1512 = vmatpush1.msra.mxu0 %v1511
        %1513 = vmatprep.subr.mxu0 0.0
        %v1514 = vand.u32 %v215, 4294901760
        %1515 = vmatpush1.msra.mxu0 %v1514
        %1516 = vmatprep.subr.mxu0 0.0
        %v1517 = vand.u32 %v212, 4294901760
        %1518 = vmatpush1.msra.mxu0 %v1517
        %1519 = vmatprep.subr.mxu0 0.0
        %v1520 = vand.u32 %v209, 4294901760
        %1521 = vmatpush1.msra.mxu0 %v1520
        %1522 = vmatprep.subr.mxu0 0.0
        %v1523 = vand.u32 %v206, 4294901760
        %1524 = vmatpush1.msra.mxu0 %v1523
        %1525 = vmatprep.subr.mxu0 0.0
        %v1526 = vand.u32 %v203, 4294901760
        %1527 = vmatpush1.msra.mxu0 %v1526
        %1528 = vmatprep.subr.mxu0 0.0
        %v1529 = vand.u32 %v200, 4294901760
        %1530 = vmatpush1.msra.mxu0 %v1529
        %1531 = vmatprep.subr.mxu0 0.0
        %v1532 = vand.u32 %v197, 4294901760
        %1533 = vmatpush1.msra.mxu0 %v1532
        %1534 = vmatprep.subr.mxu0 0.0
        %v1535 = vand.u32 %v194, 4294901760
        %1536 = vmatpush1.msra.mxu0 %v1535
        %1537 = vmatprep.subr.mxu0 0.0
        %v1538 = vand.u32 %v191, 4294901760
        %1539 = vmatpush1.msra.mxu0 %v1538
        %1540 = vmatprep.subr.mxu0 0.0
        %v1541 = vand.u32 %v188, 4294901760
        %1542 = vmatpush1.msra.mxu0 %v1541
        %1543 = vmatprep.subr.mxu0 0.0
        %v1544 = vand.u32 %v185, 4294901760
        %1545 = vmatpush1.msra.mxu0 %v1544
        %1546 = vmatprep.subr.mxu0 0.0
        %v1547 = vand.u32 %v182, 4294901760
        %1548 = vmatpush1.msra.mxu0 %v1547
        %1549 = vmatprep.subr.mxu0 0.0
        %1550 = vmatpush2.msra.mxu0 0.0
        %1551 = vmatprep.subr.mxu0 0.0
        %1552 = vmatpush2.msra.mxu0 0.0
        %1553 = vmatprep.subr.mxu0 0.0
        %1554 = vmatpush2.msra.mxu0 0.0
        %1555 = vmatprep.subr.mxu0 0.0
        %1556 = vmatpush2.msra.mxu0 0.0
        %1557 = vmatprep.subr.mxu0 0.0
        %1558 = vmatpush2.msra.mxu0 0.0
        %1559 = vmatprep.subr.mxu0 0.0
        %1560 = vmatpush2.msra.mxu0 0.0
        %1561 = vmatprep.subr.mxu0 0.0
        %1562 = vmatpush2.msra.mxu0 0.0
        %1563 = vmatprep.subr.mxu0 0.0
        %1564 = vmatpush2.msra.mxu0 0.0
        %1565 = vmatprep.subr.mxu0 0.0
        %1566 = vmatpush2.msra.mxu0 0.0
        %1567 = vmatprep.subr.mxu0 0.0
        %1568 = vmatpush2.msra.mxu0 0.0
        %1569 = vmatprep.subr.mxu0 0.0
        %1570 = vmatpush2.msra.mxu0 0.0
        %1571 = vmatprep.subr.mxu0 0.0
        %1572 = vmatpush2.msra.mxu0 0.0
        %1573 = vmatprep.subr.mxu0 0.0
        %1574 = vmatpush2.msra.mxu0 0.0
        %1575 = vmatprep.subr.mxu0 0.0
        %1576 = vmatpush2.msra.mxu0 0.0
        %1577 = vmatprep.subr.mxu0 0.0
        %1578 = vmatpush2.msra.mxu0 0.0
        %1579 = vmatprep.subr.mxu0 0.0
        %1580 = vmatpush2.msra.mxu0 0.0
        %1581 = vmatprep.mubr.f32.mxu0 0.0
        %v1582 = vand.u32 %v175, 4294901760
        %v1583 = vsub.f32 %v175, %v1582
        %v1584 = vand.u32 %v1583, 4294901760
        %1585 = vmatmul.mubr.f32.gmra.mxu0 %v1584
        %v1586 = vpop.f32.mrf.mxu0
        %v1587 = vadd.f32 %v1491, %v1586
        %v1588 = vpop.f32.mrf.mxu0
        %1589 = vmatprep.mubr.f32.mxu0 0.0
        %v1590 = vand.u32 %v176, 4294901760
        %v1591 = vsub.f32 %v176, %v1590
        %v1592 = vand.u32 %v1591, 4294901760
        %1593 = vmatmul.mubr.f32.gmra.mxu0 %v1592
        %v1594 = vpop.f32.mrf.mxu0
        %v1595 = vadd.f32 %v1498, %v1594
        %v1596 = vpop.f32.mrf.mxu0
        %1597 = vdwg.mxu0
        %1598 = vmatprep.subr.mxu0 0.0
        %v1599 = vand.u32 %v227, 4294901760
        %v1600 = vsub.f32 %v227, %v1599
        %v1601 = vand.u32 %v1600, 4294901760
        %1602 = vmatpush1.msra.mxu0 %v1601
        %1603 = vmatprep.subr.mxu0 0.0
        %v1604 = vand.u32 %v224, 4294901760
        %v1605 = vsub.f32 %v224, %v1604
        %v1606 = vand.u32 %v1605, 4294901760
        %1607 = vmatpush1.msra.mxu0 %v1606
        %1608 = vmatprep.subr.mxu0 0.0
        %v1609 = vand.u32 %v221, 4294901760
        %v1610 = vsub.f32 %v221, %v1609
        %v1611 = vand.u32 %v1610, 4294901760
        %1612 = vmatpush1.msra.mxu0 %v1611
        %1613 = vmatprep.subr.mxu0 0.0
        %v1614 = vand.u32 %v218, 4294901760
        %v1615 = vsub.f32 %v218, %v1614
        %v1616 = vand.u32 %v1615, 4294901760
        %1617 = vmatpush1.msra.mxu0 %v1616
        %1618 = vmatprep.subr.mxu0 0.0
        %v1619 = vand.u32 %v215, 4294901760
        %v1620 = vsub.f32 %v215, %v1619
        %v1621 = vand.u32 %v1620, 4294901760
        %1622 = vmatpush1.msra.mxu0 %v1621
        %1623 = vmatprep.subr.mxu0 0.0
        %v1624 = vand.u32 %v212, 4294901760
        %v1625 = vsub.f32 %v212, %v1624
        %v1626 = vand.u32 %v1625, 4294901760
        %1627 = vmatpush1.msra.mxu0 %v1626
        %1628 = vmatprep.subr.mxu0 0.0
        %v1629 = vand.u32 %v209, 4294901760
        %v1630 = vsub.f32 %v209, %v1629
        %v1631 = vand.u32 %v1630, 4294901760
        %1632 = vmatpush1.msra.mxu0 %v1631
        %1633 = vmatprep.subr.mxu0 0.0
        %v1634 = vand.u32 %v206, 4294901760
        %v1635 = vsub.f32 %v206, %v1634
        %v1636 = vand.u32 %v1635, 4294901760
        %1637 = vmatpush1.msra.mxu0 %v1636
        %1638 = vmatprep.subr.mxu0 0.0
        %v1639 = vand.u32 %v203, 4294901760
        %v1640 = vsub.f32 %v203, %v1639
        %v1641 = vand.u32 %v1640, 4294901760
        %1642 = vmatpush1.msra.mxu0 %v1641
        %1643 = vmatprep.subr.mxu0 0.0
        %v1644 = vand.u32 %v200, 4294901760
        %v1645 = vsub.f32 %v200, %v1644
        %v1646 = vand.u32 %v1645, 4294901760
        %1647 = vmatpush1.msra.mxu0 %v1646
        %1648 = vmatprep.subr.mxu0 0.0
        %v1649 = vand.u32 %v197, 4294901760
        %v1650 = vsub.f32 %v197, %v1649
        %v1651 = vand.u32 %v1650, 4294901760
        %1652 = vmatpush1.msra.mxu0 %v1651
        %1653 = vmatprep.subr.mxu0 0.0
        %v1654 = vand.u32 %v194, 4294901760
        %v1655 = vsub.f32 %v194, %v1654
        %v1656 = vand.u32 %v1655, 4294901760
        %1657 = vmatpush1.msra.mxu0 %v1656
        %1658 = vmatprep.subr.mxu0 0.0
        %v1659 = vand.u32 %v191, 4294901760
        %v1660 = vsub.f32 %v191, %v1659
        %v1661 = vand.u32 %v1660, 4294901760
        %1662 = vmatpush1.msra.mxu0 %v1661
        %1663 = vmatprep.subr.mxu0 0.0
        %v1664 = vand.u32 %v188, 4294901760
        %v1665 = vsub.f32 %v188, %v1664
        %v1666 = vand.u32 %v1665, 4294901760
        %1667 = vmatpush1.msra.mxu0 %v1666
        %1668 = vmatprep.subr.mxu0 0.0
        %v1669 = vand.u32 %v185, 4294901760
        %v1670 = vsub.f32 %v185, %v1669
        %v1671 = vand.u32 %v1670, 4294901760
        %1672 = vmatpush1.msra.mxu0 %v1671
        %1673 = vmatprep.subr.mxu0 0.0
        %v1674 = vand.u32 %v182, 4294901760
        %v1675 = vsub.f32 %v182, %v1674
        %v1676 = vand.u32 %v1675, 4294901760
        %1677 = vmatpush1.msra.mxu0 %v1676
        %1678 = vmatprep.subr.mxu0 0.0
        %1679 = vmatpush2.msra.mxu0 0.0
        %1680 = vmatprep.subr.mxu0 0.0
        %1681 = vmatpush2.msra.mxu0 0.0
        %1682 = vmatprep.subr.mxu0 0.0
        %1683 = vmatpush2.msra.mxu0 0.0
        %1684 = vmatprep.subr.mxu0 0.0
        %1685 = vmatpush2.msra.mxu0 0.0
        %1686 = vmatprep.subr.mxu0 0.0
        %1687 = vmatpush2.msra.mxu0 0.0
        %1688 = vmatprep.subr.mxu0 0.0
        %1689 = vmatpush2.msra.mxu0 0.0
        %1690 = vmatprep.subr.mxu0 0.0
        %1691 = vmatpush2.msra.mxu0 0.0
        %1692 = vmatprep.subr.mxu0 0.0
        %1693 = vmatpush2.msra.mxu0 0.0
        %1694 = vmatprep.subr.mxu0 0.0
        %1695 = vmatpush2.msra.mxu0 0.0
        %1696 = vmatprep.subr.mxu0 0.0
        %1697 = vmatpush2.msra.mxu0 0.0
        %1698 = vmatprep.subr.mxu0 0.0
        %1699 = vmatpush2.msra.mxu0 0.0
        %1700 = vmatprep.subr.mxu0 0.0
        %1701 = vmatpush2.msra.mxu0 0.0
        %1702 = vmatprep.subr.mxu0 0.0
        %1703 = vmatpush2.msra.mxu0 0.0
        %1704 = vmatprep.subr.mxu0 0.0
        %1705 = vmatpush2.msra.mxu0 0.0
        %1706 = vmatprep.subr.mxu0 0.0
        %1707 = vmatpush2.msra.mxu0 0.0
        %1708 = vmatprep.subr.mxu0 0.0
        %1709 = vmatpush2.msra.mxu0 0.0
        %1710 = vmatprep.mubr.f32.mxu0 0.0
        %v1711 = vand.u32 %v175, 4294901760
        %1712 = vmatmul.mubr.f32.gmra.mxu0 %v1711
        %v1713 = vpop.f32.mrf.mxu0
        %v1714 = vadd.f32 %v1587, %v1713
        %v1715 = vpop.f32.mrf.mxu0
        %1716 = vmatprep.mubr.f32.mxu0 0.0
        %v1717 = vand.u32 %v176, 4294901760
        %1718 = vmatmul.mubr.f32.gmra.mxu0 %v1717
        %v1719 = vpop.f32.mrf.mxu0
        %v1720 = vadd.f32 %v1595, %v1719
        %v1721 = vpop.f32.mrf.mxu0
        %1722 = vdwg.mxu0
        %1723 = vmatprep.subr.mxu0 0.0
        %v1724 = vand.u32 %v227, 4294901760
        %1725 = vmatpush1.msra.mxu0 %v1724
        %1726 = vmatprep.subr.mxu0 0.0
        %v1727 = vand.u32 %v224, 4294901760
        %1728 = vmatpush1.msra.mxu0 %v1727
        %1729 = vmatprep.subr.mxu0 0.0
        %v1730 = vand.u32 %v221, 4294901760
        %1731 = vmatpush1.msra.mxu0 %v1730
        %1732 = vmatprep.subr.mxu0 0.0
        %v1733 = vand.u32 %v218, 4294901760
        %1734 = vmatpush1.msra.mxu0 %v1733
        %1735 = vmatprep.subr.mxu0 0.0
        %v1736 = vand.u32 %v215, 4294901760
        %1737 = vmatpush1.msra.mxu0 %v1736
        %1738 = vmatprep.subr.mxu0 0.0
        %v1739 = vand.u32 %v212, 4294901760
        %1740 = vmatpush1.msra.mxu0 %v1739
        %1741 = vmatprep.subr.mxu0 0.0
        %v1742 = vand.u32 %v209, 4294901760
        %1743 = vmatpush1.msra.mxu0 %v1742
        %1744 = vmatprep.subr.mxu0 0.0
        %v1745 = vand.u32 %v206, 4294901760
        %1746 = vmatpush1.msra.mxu0 %v1745
        %1747 = vmatprep.subr.mxu0 0.0
        %v1748 = vand.u32 %v203, 4294901760
        %1749 = vmatpush1.msra.mxu0 %v1748
        %1750 = vmatprep.subr.mxu0 0.0
        %v1751 = vand.u32 %v200, 4294901760
        %1752 = vmatpush1.msra.mxu0 %v1751
        %1753 = vmatprep.subr.mxu0 0.0
        %v1754 = vand.u32 %v197, 4294901760
        %1755 = vmatpush1.msra.mxu0 %v1754
        %1756 = vmatprep.subr.mxu0 0.0
        %v1757 = vand.u32 %v194, 4294901760
        %1758 = vmatpush1.msra.mxu0 %v1757
        %1759 = vmatprep.subr.mxu0 0.0
        %v1760 = vand.u32 %v191, 4294901760
        %1761 = vmatpush1.msra.mxu0 %v1760
        %1762 = vmatprep.subr.mxu0 0.0
        %v1763 = vand.u32 %v188, 4294901760
        %1764 = vmatpush1.msra.mxu0 %v1763
        %1765 = vmatprep.subr.mxu0 0.0
        %v1766 = vand.u32 %v185, 4294901760
        %1767 = vmatpush1.msra.mxu0 %v1766
        %1768 = vmatprep.subr.mxu0 0.0
        %v1769 = vand.u32 %v182, 4294901760
        %1770 = vmatpush1.msra.mxu0 %v1769
        %1771 = vmatprep.subr.mxu0 0.0
        %1772 = vmatpush2.msra.mxu0 0.0
        %1773 = vmatprep.subr.mxu0 0.0
        %1774 = vmatpush2.msra.mxu0 0.0
        %1775 = vmatprep.subr.mxu0 0.0
        %1776 = vmatpush2.msra.mxu0 0.0
        %1777 = vmatprep.subr.mxu0 0.0
        %1778 = vmatpush2.msra.mxu0 0.0
        %1779 = vmatprep.subr.mxu0 0.0
        %1780 = vmatpush2.msra.mxu0 0.0
        %1781 = vmatprep.subr.mxu0 0.0
        %1782 = vmatpush2.msra.mxu0 0.0
        %1783 = vmatprep.subr.mxu0 0.0
        %1784 = vmatpush2.msra.mxu0 0.0
        %1785 = vmatprep.subr.mxu0 0.0
        %1786 = vmatpush2.msra.mxu0 0.0
        %1787 = vmatprep.subr.mxu0 0.0
        %1788 = vmatpush2.msra.mxu0 0.0
        %1789 = vmatprep.subr.mxu0 0.0
        %1790 = vmatpush2.msra.mxu0 0.0
        %1791 = vmatprep.subr.mxu0 0.0
        %1792 = vmatpush2.msra.mxu0 0.0
        %1793 = vmatprep.subr.mxu0 0.0
        %1794 = vmatpush2.msra.mxu0 0.0
        %1795 = vmatprep.subr.mxu0 0.0
        %1796 = vmatpush2.msra.mxu0 0.0
        %1797 = vmatprep.subr.mxu0 0.0
        %1798 = vmatpush2.msra.mxu0 0.0
        %1799 = vmatprep.subr.mxu0 0.0
        %1800 = vmatpush2.msra.mxu0 0.0
        %1801 = vmatprep.subr.mxu0 0.0
        %1802 = vmatpush2.msra.mxu0 0.0
        %1803 = vmatprep.mubr.f32.mxu0 0.0
        %v1804 = vand.u32 %v175, 4294901760
        %1805 = vmatmul.mubr.f32.gmra.mxu0 %v1804
        %v1806 = vpop.f32.mrf.mxu0
        %v1807 = vadd.f32 %v1714, %v1806
        %v1808 = vpop.f32.mrf.mxu0
        %1809 = vmatprep.mubr.f32.mxu0 0.0
        %v1810 = vand.u32 %v176, 4294901760
        %1811 = vmatmul.mubr.f32.gmra.mxu0 %v1810
        %v1812 = vpop.f32.mrf.mxu0
        %v1813 = vadd.f32 %v1720, %v1812
        %v1814 = vpop.f32.mrf.mxu0
        %1815 = vdwg.mxu0
        %1816 = vmatprep.subr.mxu0 0.0
        %1817 = vmatpush1.xpose.msra.mxu0 0.0
        %1818 = vmatprep.subr.mxu0 0.0
        %1819 = vmatpush1.xpose.msra.mxu0 0.0
        %1820 = vmatprep.subr.mxu0 0.0
        %1821 = vmatpush1.xpose.msra.mxu0 0.0
        %1822 = vmatprep.subr.mxu0 0.0
        %1823 = vmatpush1.xpose.msra.mxu0 0.0
        %1824 = vmatprep.subr.mxu0 0.0
        %1825 = vmatpush1.xpose.msra.mxu0 0.0
        %1826 = vmatprep.subr.mxu0 0.0
        %1827 = vmatpush1.xpose.msra.mxu0 0.0
        %1828 = vmatprep.subr.mxu0 0.0
        %1829 = vmatpush1.xpose.msra.mxu0 0.0
        %1830 = vmatprep.subr.mxu0 0.0
        %1831 = vmatpush1.xpose.msra.mxu0 0.0
        %1832 = vmatprep.subr.mxu0 0.0
        %1833 = vmatpush1.xpose.msra.mxu0 0.0
        %1834 = vmatprep.subr.mxu0 0.0
        %1835 = vmatpush1.xpose.msra.mxu0 0.0
        %1836 = vmatprep.subr.mxu0 0.0
        %1837 = vmatpush1.xpose.msra.mxu0 0.0
        %1838 = vmatprep.subr.mxu0 0.0
        %1839 = vmatpush1.xpose.msra.mxu0 0.0
        %1840 = vmatprep.subr.mxu0 0.0
        %1841 = vmatpush1.xpose.msra.mxu0 0.0
        %1842 = vmatprep.subr.mxu0 0.0
        %1843 = vmatpush1.xpose.msra.mxu0 0.0
        %1844 = vmatprep.subr.mxu0 0.0
        %1845 = vmatpush1.xpose.msra.mxu0 0.0
        %1846 = vmatprep.subr.mxu0 0.0
        %v1847 = vand.u32 %v1123, 4294901760
        %1848 = vmatpush1.xpose.msra.mxu0 %v1847
        %1849 = vmatprep.subr.mxu0 0.0
        %1850 = vmatpush2.xpose.msra.mxu0 0.0
        %1851 = vmatprep.subr.mxu0 0.0
        %1852 = vmatpush2.xpose.msra.mxu0 0.0
        %1853 = vmatprep.subr.mxu0 0.0
        %1854 = vmatpush2.xpose.msra.mxu0 0.0
        %1855 = vmatprep.subr.mxu0 0.0
        %1856 = vmatpush2.xpose.msra.mxu0 0.0
        %1857 = vmatprep.subr.mxu0 0.0
        %1858 = vmatpush2.xpose.msra.mxu0 0.0
        %1859 = vmatprep.subr.mxu0 0.0
        %1860 = vmatpush2.xpose.msra.mxu0 0.0
        %1861 = vmatprep.subr.mxu0 0.0
        %1862 = vmatpush2.xpose.msra.mxu0 0.0
        %1863 = vmatprep.subr.mxu0 0.0
        %1864 = vmatpush2.xpose.msra.mxu0 0.0
        %1865 = vmatprep.subr.mxu0 0.0
        %1866 = vmatpush2.xpose.msra.mxu0 0.0
        %1867 = vmatprep.subr.mxu0 0.0
        %1868 = vmatpush2.xpose.msra.mxu0 0.0
        %1869 = vmatprep.subr.mxu0 0.0
        %1870 = vmatpush2.xpose.msra.mxu0 0.0
        %1871 = vmatprep.subr.mxu0 0.0
        %1872 = vmatpush2.xpose.msra.mxu0 0.0
        %1873 = vmatprep.subr.mxu0 0.0
        %1874 = vmatpush2.xpose.msra.mxu0 0.0
        %1875 = vmatprep.subr.mxu0 0.0
        %1876 = vmatpush2.xpose.msra.mxu0 0.0
        %1877 = vmatprep.subr.mxu0 0.0
        %1878 = vmatpush2.xpose.msra.mxu0 0.0
        %1879 = vmatprep.subr.mxu0 0.0
        %1880 = vmatpush2.xpose.msra.mxu0 0.0
        %1881 = vmatprep.mubr.f32.mxu0 0.0
        %v1882 = vand.u32 %v1121, 4294901760
        %v1883 = vsub.f32 %v1121, %v1882
        %v1884 = vand.u32 %v1883, 4294901760
        %v1885 = vsub.f32 %v1883, %v1884
        %v1886 = vand.u32 %v1885, 4294901760
        %1887 = vmatmul.mubr.f32.gmra.mxu0 %v1886
        %v1888 = vpop.f32.mrf.mxu0
        %v1889 = vadd.f32 0.0, %v1888
        %v1890 = vpop.f32.mrf.mxu0
        %1891 = vdwg.mxu0
        %1892 = vmatprep.subr.mxu0 0.0
        %1893 = vmatpush1.xpose.msra.mxu0 0.0
        %1894 = vmatprep.subr.mxu0 0.0
        %1895 = vmatpush1.xpose.msra.mxu0 0.0
        %1896 = vmatprep.subr.mxu0 0.0
        %1897 = vmatpush1.xpose.msra.mxu0 0.0
        %1898 = vmatprep.subr.mxu0 0.0
        %1899 = vmatpush1.xpose.msra.mxu0 0.0
        %1900 = vmatprep.subr.mxu0 0.0
        %1901 = vmatpush1.xpose.msra.mxu0 0.0
        %1902 = vmatprep.subr.mxu0 0.0
        %1903 = vmatpush1.xpose.msra.mxu0 0.0
        %1904 = vmatprep.subr.mxu0 0.0
        %1905 = vmatpush1.xpose.msra.mxu0 0.0
        %1906 = vmatprep.subr.mxu0 0.0
        %1907 = vmatpush1.xpose.msra.mxu0 0.0
        %1908 = vmatprep.subr.mxu0 0.0
        %1909 = vmatpush1.xpose.msra.mxu0 0.0
        %1910 = vmatprep.subr.mxu0 0.0
        %1911 = vmatpush1.xpose.msra.mxu0 0.0
        %1912 = vmatprep.subr.mxu0 0.0
        %1913 = vmatpush1.xpose.msra.mxu0 0.0
        %1914 = vmatprep.subr.mxu0 0.0
        %1915 = vmatpush1.xpose.msra.mxu0 0.0
        %1916 = vmatprep.subr.mxu0 0.0
        %1917 = vmatpush1.xpose.msra.mxu0 0.0
        %1918 = vmatprep.subr.mxu0 0.0
        %1919 = vmatpush1.xpose.msra.mxu0 0.0
        %1920 = vmatprep.subr.mxu0 0.0
        %1921 = vmatpush1.xpose.msra.mxu0 0.0
        %1922 = vmatprep.subr.mxu0 0.0
        %v1923 = vand.u32 %v1123, 4294901760
        %v1924 = vsub.f32 %v1123, %v1923
        %v1925 = vand.u32 %v1924, 4294901760
        %v1926 = vsub.f32 %v1924, %v1925
        %v1927 = vand.u32 %v1926, 4294901760
        %1928 = vmatpush1.xpose.msra.mxu0 %v1927
        %1929 = vmatprep.subr.mxu0 0.0
        %1930 = vmatpush2.xpose.msra.mxu0 0.0
        %1931 = vmatprep.subr.mxu0 0.0
        %1932 = vmatpush2.xpose.msra.mxu0 0.0
        %1933 = vmatprep.subr.mxu0 0.0
        %1934 = vmatpush2.xpose.msra.mxu0 0.0
        %1935 = vmatprep.subr.mxu0 0.0
        %1936 = vmatpush2.xpose.msra.mxu0 0.0
        %1937 = vmatprep.subr.mxu0 0.0
        %1938 = vmatpush2.xpose.msra.mxu0 0.0
        %1939 = vmatprep.subr.mxu0 0.0
        %1940 = vmatpush2.xpose.msra.mxu0 0.0
        %1941 = vmatprep.subr.mxu0 0.0
        %1942 = vmatpush2.xpose.msra.mxu0 0.0
        %1943 = vmatprep.subr.mxu0 0.0
        %1944 = vmatpush2.xpose.msra.mxu0 0.0
        %1945 = vmatprep.subr.mxu0 0.0
        %1946 = vmatpush2.xpose.msra.mxu0 0.0
        %1947 = vmatprep.subr.mxu0 0.0
        %1948 = vmatpush2.xpose.msra.mxu0 0.0
        %1949 = vmatprep.subr.mxu0 0.0
        %1950 = vmatpush2.xpose.msra.mxu0 0.0
        %1951 = vmatprep.subr.mxu0 0.0
        %1952 = vmatpush2.xpose.msra.mxu0 0.0
        %1953 = vmatprep.subr.mxu0 0.0
        %1954 = vmatpush2.xpose.msra.mxu0 0.0
        %1955 = vmatprep.subr.mxu0 0.0
        %1956 = vmatpush2.xpose.msra.mxu0 0.0
        %1957 = vmatprep.subr.mxu0 0.0
        %1958 = vmatpush2.xpose.msra.mxu0 0.0
        %1959 = vmatprep.subr.mxu0 0.0
        %1960 = vmatpush2.xpose.msra.mxu0 0.0
        %1961 = vmatprep.mubr.f32.mxu0 0.0
        %v1962 = vand.u32 %v1121, 4294901760
        %1963 = vmatmul.mubr.f32.gmra.mxu0 %v1962
        %v1964 = vpop.f32.mrf.mxu0
        %v1965 = vadd.f32 %v1889, %v1964
        %v1966 = vpop.f32.mrf.mxu0
        %1967 = vdwg.mxu0
        %1968 = vmatprep.subr.mxu0 0.0
        %1969 = vmatpush1.xpose.msra.mxu0 0.0
        %1970 = vmatprep.subr.mxu0 0.0
        %1971 = vmatpush1.xpose.msra.mxu0 0.0
        %1972 = vmatprep.subr.mxu0 0.0
        %1973 = vmatpush1.xpose.msra.mxu0 0.0
        %1974 = vmatprep.subr.mxu0 0.0
        %1975 = vmatpush1.xpose.msra.mxu0 0.0
        %1976 = vmatprep.subr.mxu0 0.0
        %1977 = vmatpush1.xpose.msra.mxu0 0.0
        %1978 = vmatprep.subr.mxu0 0.0
        %1979 = vmatpush1.xpose.msra.mxu0 0.0
        %1980 = vmatprep.subr.mxu0 0.0
        %1981 = vmatpush1.xpose.msra.mxu0 0.0
        %1982 = vmatprep.subr.mxu0 0.0
        %1983 = vmatpush1.xpose.msra.mxu0 0.0
        %1984 = vmatprep.subr.mxu0 0.0
        %1985 = vmatpush1.xpose.msra.mxu0 0.0
        %1986 = vmatprep.subr.mxu0 0.0
        %1987 = vmatpush1.xpose.msra.mxu0 0.0
        %1988 = vmatprep.subr.mxu0 0.0
        %1989 = vmatpush1.xpose.msra.mxu0 0.0
        %1990 = vmatprep.subr.mxu0 0.0
        %1991 = vmatpush1.xpose.msra.mxu0 0.0
        %1992 = vmatprep.subr.mxu0 0.0
        %1993 = vmatpush1.xpose.msra.mxu0 0.0
        %1994 = vmatprep.subr.mxu0 0.0
        %1995 = vmatpush1.xpose.msra.mxu0 0.0
        %1996 = vmatprep.subr.mxu0 0.0
        %1997 = vmatpush1.xpose.msra.mxu0 0.0
        %1998 = vmatprep.subr.mxu0 0.0
        %v1999 = vand.u32 %v1123, 4294901760
        %v2000 = vsub.f32 %v1123, %v1999
        %2001 = vmatpush1.xpose.msra.mxu0 %v2000
        %2002 = vmatprep.subr.mxu0 0.0
        %2003 = vmatpush2.xpose.msra.mxu0 0.0
        %2004 = vmatprep.subr.mxu0 0.0
        %2005 = vmatpush2.xpose.msra.mxu0 0.0
        %2006 = vmatprep.subr.mxu0 0.0
        %2007 = vmatpush2.xpose.msra.mxu0 0.0
        %2008 = vmatprep.subr.mxu0 0.0
        %2009 = vmatpush2.xpose.msra.mxu0 0.0
        %2010 = vmatprep.subr.mxu0 0.0
        %2011 = vmatpush2.xpose.msra.mxu0 0.0
        %2012 = vmatprep.subr.mxu0 0.0
        %2013 = vmatpush2.xpose.msra.mxu0 0.0
        %2014 = vmatprep.subr.mxu0 0.0
        %2015 = vmatpush2.xpose.msra.mxu0 0.0
        %2016 = vmatprep.subr.mxu0 0.0
        %2017 = vmatpush2.xpose.msra.mxu0 0.0
        %2018 = vmatprep.subr.mxu0 0.0
        %2019 = vmatpush2.xpose.msra.mxu0 0.0
        %2020 = vmatprep.subr.mxu0 0.0
        %2021 = vmatpush2.xpose.msra.mxu0 0.0
        %2022 = vmatprep.subr.mxu0 0.0
        %2023 = vmatpush2.xpose.msra.mxu0 0.0
        %2024 = vmatprep.subr.mxu0 0.0
        %2025 = vmatpush2.xpose.msra.mxu0 0.0
        %2026 = vmatprep.subr.mxu0 0.0
        %2027 = vmatpush2.xpose.msra.mxu0 0.0
        %2028 = vmatprep.subr.mxu0 0.0
        %2029 = vmatpush2.xpose.msra.mxu0 0.0
        %2030 = vmatprep.subr.mxu0 0.0
        %2031 = vmatpush2.xpose.msra.mxu0 0.0
        %2032 = vmatprep.subr.mxu0 0.0
        %2033 = vmatpush2.xpose.msra.mxu0 0.0
        %2034 = vmatprep.mubr.f32.mxu0 0.0
        %v2035 = vand.u32 %v1121, 4294901760
        %v2036 = vsub.f32 %v1121, %v2035
        %2037 = vmatmul.mubr.f32.gmra.mxu0 %v2036
        %v2038 = vpop.f32.mrf.mxu0
        %v2039 = vadd.f32 %v1965, %v2038
        %v2040 = vpop.f32.mrf.mxu0
        %2041 = vdwg.mxu0
        %2042 = vmatprep.subr.mxu0 0.0
        %2043 = vmatpush1.xpose.msra.mxu0 0.0
        %2044 = vmatprep.subr.mxu0 0.0
        %2045 = vmatpush1.xpose.msra.mxu0 0.0
        %2046 = vmatprep.subr.mxu0 0.0
        %2047 = vmatpush1.xpose.msra.mxu0 0.0
        %2048 = vmatprep.subr.mxu0 0.0
        %2049 = vmatpush1.xpose.msra.mxu0 0.0
        %2050 = vmatprep.subr.mxu0 0.0
        %2051 = vmatpush1.xpose.msra.mxu0 0.0
        %2052 = vmatprep.subr.mxu0 0.0
        %2053 = vmatpush1.xpose.msra.mxu0 0.0
        %2054 = vmatprep.subr.mxu0 0.0
        %2055 = vmatpush1.xpose.msra.mxu0 0.0
        %2056 = vmatprep.subr.mxu0 0.0
        %2057 = vmatpush1.xpose.msra.mxu0 0.0
        %2058 = vmatprep.subr.mxu0 0.0
        %2059 = vmatpush1.xpose.msra.mxu0 0.0
        %2060 = vmatprep.subr.mxu0 0.0
        %2061 = vmatpush1.xpose.msra.mxu0 0.0
        %2062 = vmatprep.subr.mxu0 0.0
        %2063 = vmatpush1.xpose.msra.mxu0 0.0
        %2064 = vmatprep.subr.mxu0 0.0
        %2065 = vmatpush1.xpose.msra.mxu0 0.0
        %2066 = vmatprep.subr.mxu0 0.0
        %2067 = vmatpush1.xpose.msra.mxu0 0.0
        %2068 = vmatprep.subr.mxu0 0.0
        %2069 = vmatpush1.xpose.msra.mxu0 0.0
        %2070 = vmatprep.subr.mxu0 0.0
        %2071 = vmatpush1.xpose.msra.mxu0 0.0
        %2072 = vmatprep.subr.mxu0 0.0
        %v2073 = vand.u32 %v1123, 4294901760
        %2074 = vmatpush1.xpose.msra.mxu0 %v2073
        %2075 = vmatprep.subr.mxu0 0.0
        %2076 = vmatpush2.xpose.msra.mxu0 0.0
        %2077 = vmatprep.subr.mxu0 0.0
        %2078 = vmatpush2.xpose.msra.mxu0 0.0
        %2079 = vmatprep.subr.mxu0 0.0
        %2080 = vmatpush2.xpose.msra.mxu0 0.0
        %2081 = vmatprep.subr.mxu0 0.0
        %2082 = vmatpush2.xpose.msra.mxu0 0.0
        %2083 = vmatprep.subr.mxu0 0.0
        %2084 = vmatpush2.xpose.msra.mxu0 0.0
        %2085 = vmatprep.subr.mxu0 0.0
        %2086 = vmatpush2.xpose.msra.mxu0 0.0
        %2087 = vmatprep.subr.mxu0 0.0
        %2088 = vmatpush2.xpose.msra.mxu0 0.0
        %2089 = vmatprep.subr.mxu0 0.0
        %2090 = vmatpush2.xpose.msra.mxu0 0.0
        %2091 = vmatprep.subr.mxu0 0.0
        %2092 = vmatpush2.xpose.msra.mxu0 0.0
        %2093 = vmatprep.subr.mxu0 0.0
        %2094 = vmatpush2.xpose.msra.mxu0 0.0
        %2095 = vmatprep.subr.mxu0 0.0
        %2096 = vmatpush2.xpose.msra.mxu0 0.0
        %2097 = vmatprep.subr.mxu0 0.0
        %2098 = vmatpush2.xpose.msra.mxu0 0.0
        %2099 = vmatprep.subr.mxu0 0.0
        %2100 = vmatpush2.xpose.msra.mxu0 0.0
        %2101 = vmatprep.subr.mxu0 0.0
        %2102 = vmatpush2.xpose.msra.mxu0 0.0
        %2103 = vmatprep.subr.mxu0 0.0
        %2104 = vmatpush2.xpose.msra.mxu0 0.0
        %2105 = vmatprep.subr.mxu0 0.0
        %2106 = vmatpush2.xpose.msra.mxu0 0.0
        %2107 = vmatprep.mubr.f32.mxu0 0.0
        %v2108 = vand.u32 %v1121, 4294901760
        %v2109 = vsub.f32 %v1121, %v2108
        %v2110 = vand.u32 %v2109, 4294901760
        %2111 = vmatmul.mubr.f32.gmra.mxu0 %v2110
        %v2112 = vpop.f32.mrf.mxu0
        %v2113 = vadd.f32 %v2039, %v2112
        %v2114 = vpop.f32.mrf.mxu0
        %2115 = vdwg.mxu0
        %2116 = vmatprep.subr.mxu0 0.0
        %2117 = vmatpush1.xpose.msra.mxu0 0.0
        %2118 = vmatprep.subr.mxu0 0.0
        %2119 = vmatpush1.xpose.msra.mxu0 0.0
        %2120 = vmatprep.subr.mxu0 0.0
        %2121 = vmatpush1.xpose.msra.mxu0 0.0
        %2122 = vmatprep.subr.mxu0 0.0
        %2123 = vmatpush1.xpose.msra.mxu0 0.0
        %2124 = vmatprep.subr.mxu0 0.0
        %2125 = vmatpush1.xpose.msra.mxu0 0.0
        %2126 = vmatprep.subr.mxu0 0.0
        %2127 = vmatpush1.xpose.msra.mxu0 0.0
        %2128 = vmatprep.subr.mxu0 0.0
        %2129 = vmatpush1.xpose.msra.mxu0 0.0
        %2130 = vmatprep.subr.mxu0 0.0
        %2131 = vmatpush1.xpose.msra.mxu0 0.0
        %2132 = vmatprep.subr.mxu0 0.0
        %2133 = vmatpush1.xpose.msra.mxu0 0.0
        %2134 = vmatprep.subr.mxu0 0.0
        %2135 = vmatpush1.xpose.msra.mxu0 0.0
        %2136 = vmatprep.subr.mxu0 0.0
        %2137 = vmatpush1.xpose.msra.mxu0 0.0
        %2138 = vmatprep.subr.mxu0 0.0
        %2139 = vmatpush1.xpose.msra.mxu0 0.0
        %2140 = vmatprep.subr.mxu0 0.0
        %2141 = vmatpush1.xpose.msra.mxu0 0.0
        %2142 = vmatprep.subr.mxu0 0.0
        %2143 = vmatpush1.xpose.msra.mxu0 0.0
        %2144 = vmatprep.subr.mxu0 0.0
        %2145 = vmatpush1.xpose.msra.mxu0 0.0
        %2146 = vmatprep.subr.mxu0 0.0
        %v2147 = vand.u32 %v1123, 4294901760
        %v2148 = vsub.f32 %v1123, %v2147
        %v2149 = vand.u32 %v2148, 4294901760
        %2150 = vmatpush1.xpose.msra.mxu0 %v2149
        %2151 = vmatprep.subr.mxu0 0.0
        %2152 = vmatpush2.xpose.msra.mxu0 0.0
        %2153 = vmatprep.subr.mxu0 0.0
        %2154 = vmatpush2.xpose.msra.mxu0 0.0
        %2155 = vmatprep.subr.mxu0 0.0
        %2156 = vmatpush2.xpose.msra.mxu0 0.0
        %2157 = vmatprep.subr.mxu0 0.0
        %2158 = vmatpush2.xpose.msra.mxu0 0.0
        %2159 = vmatprep.subr.mxu0 0.0
        %2160 = vmatpush2.xpose.msra.mxu0 0.0
        %2161 = vmatprep.subr.mxu0 0.0
        %2162 = vmatpush2.xpose.msra.mxu0 0.0
        %2163 = vmatprep.subr.mxu0 0.0
        %2164 = vmatpush2.xpose.msra.mxu0 0.0
        %2165 = vmatprep.subr.mxu0 0.0
        %2166 = vmatpush2.xpose.msra.mxu0 0.0
        %2167 = vmatprep.subr.mxu0 0.0
        %2168 = vmatpush2.xpose.msra.mxu0 0.0
        %2169 = vmatprep.subr.mxu0 0.0
        %2170 = vmatpush2.xpose.msra.mxu0 0.0
        %2171 = vmatprep.subr.mxu0 0.0
        %2172 = vmatpush2.xpose.msra.mxu0 0.0
        %2173 = vmatprep.subr.mxu0 0.0
        %2174 = vmatpush2.xpose.msra.mxu0 0.0
        %2175 = vmatprep.subr.mxu0 0.0
        %2176 = vmatpush2.xpose.msra.mxu0 0.0
        %2177 = vmatprep.subr.mxu0 0.0
        %2178 = vmatpush2.xpose.msra.mxu0 0.0
        %2179 = vmatprep.subr.mxu0 0.0
        %2180 = vmatpush2.xpose.msra.mxu0 0.0
        %2181 = vmatprep.subr.mxu0 0.0
        %2182 = vmatpush2.xpose.msra.mxu0 0.0
        %2183 = vmatprep.mubr.f32.mxu0 0.0
        %v2184 = vand.u32 %v1121, 4294901760
        %2185 = vmatmul.mubr.f32.gmra.mxu0 %v2184
        %v2186 = vpop.f32.mrf.mxu0
        %v2187 = vadd.f32 %v2113, %v2186
        %v2188 = vpop.f32.mrf.mxu0
        %2189 = vdwg.mxu0
        %2190 = vmatprep.subr.mxu0 0.0
        %2191 = vmatpush1.xpose.msra.mxu0 0.0
        %2192 = vmatprep.subr.mxu0 0.0
        %2193 = vmatpush1.xpose.msra.mxu0 0.0
        %2194 = vmatprep.subr.mxu0 0.0
        %2195 = vmatpush1.xpose.msra.mxu0 0.0
        %2196 = vmatprep.subr.mxu0 0.0
        %2197 = vmatpush1.xpose.msra.mxu0 0.0
        %2198 = vmatprep.subr.mxu0 0.0
        %2199 = vmatpush1.xpose.msra.mxu0 0.0
        %2200 = vmatprep.subr.mxu0 0.0
        %2201 = vmatpush1.xpose.msra.mxu0 0.0
        %2202 = vmatprep.subr.mxu0 0.0
        %2203 = vmatpush1.xpose.msra.mxu0 0.0
        %2204 = vmatprep.subr.mxu0 0.0
        %2205 = vmatpush1.xpose.msra.mxu0 0.0
        %2206 = vmatprep.subr.mxu0 0.0
        %2207 = vmatpush1.xpose.msra.mxu0 0.0
        %2208 = vmatprep.subr.mxu0 0.0
        %2209 = vmatpush1.xpose.msra.mxu0 0.0
        %2210 = vmatprep.subr.mxu0 0.0
        %2211 = vmatpush1.xpose.msra.mxu0 0.0
        %2212 = vmatprep.subr.mxu0 0.0
        %2213 = vmatpush1.xpose.msra.mxu0 0.0
        %2214 = vmatprep.subr.mxu0 0.0
        %2215 = vmatpush1.xpose.msra.mxu0 0.0
        %2216 = vmatprep.subr.mxu0 0.0
        %2217 = vmatpush1.xpose.msra.mxu0 0.0
        %2218 = vmatprep.subr.mxu0 0.0
        %2219 = vmatpush1.xpose.msra.mxu0 0.0
        %2220 = vmatprep.subr.mxu0 0.0
        %v2221 = vand.u32 %v1123, 4294901760
        %2222 = vmatpush1.xpose.msra.mxu0 %v2221
        %2223 = vmatprep.subr.mxu0 0.0
        %2224 = vmatpush2.xpose.msra.mxu0 0.0
        %2225 = vmatprep.subr.mxu0 0.0
        %2226 = vmatpush2.xpose.msra.mxu0 0.0
        %2227 = vmatprep.subr.mxu0 0.0
        %2228 = vmatpush2.xpose.msra.mxu0 0.0
        %2229 = vmatprep.subr.mxu0 0.0
        %2230 = vmatpush2.xpose.msra.mxu0 0.0
        %2231 = vmatprep.subr.mxu0 0.0
        %2232 = vmatpush2.xpose.msra.mxu0 0.0
        %2233 = vmatprep.subr.mxu0 0.0
        %2234 = vmatpush2.xpose.msra.mxu0 0.0
        %2235 = vmatprep.subr.mxu0 0.0
        %2236 = vmatpush2.xpose.msra.mxu0 0.0
        %2237 = vmatprep.subr.mxu0 0.0
        %2238 = vmatpush2.xpose.msra.mxu0 0.0
        %2239 = vmatprep.subr.mxu0 0.0
        %2240 = vmatpush2.xpose.msra.mxu0 0.0
        %2241 = vmatprep.subr.mxu0 0.0
        %2242 = vmatpush2.xpose.msra.mxu0 0.0
        %2243 = vmatprep.subr.mxu0 0.0
        %2244 = vmatpush2.xpose.msra.mxu0 0.0
        %2245 = vmatprep.subr.mxu0 0.0
        %2246 = vmatpush2.xpose.msra.mxu0 0.0
        %2247 = vmatprep.subr.mxu0 0.0
        %2248 = vmatpush2.xpose.msra.mxu0 0.0
        %2249 = vmatprep.subr.mxu0 0.0
        %2250 = vmatpush2.xpose.msra.mxu0 0.0
        %2251 = vmatprep.subr.mxu0 0.0
        %2252 = vmatpush2.xpose.msra.mxu0 0.0
        %2253 = vmatprep.subr.mxu0 0.0
        %2254 = vmatpush2.xpose.msra.mxu0 0.0
        %2255 = vmatprep.mubr.f32.mxu0 0.0
        %v2256 = vand.u32 %v1121, 4294901760
        %2257 = vmatmul.mubr.f32.gmra.mxu0 %v2256
        %v2258 = vpop.f32.mrf.mxu0
        %v2259 = vadd.f32 %v2187, %v2258
        %v2260 = vpop.f32.mrf.mxu0
        %2261 = vdwg.mxu0
        %2262 = vmatprep.subr.mxu0 0.0
        %2263 = vmatpush1.xpose.msra.mxu0 0.0
        %2264 = vmatprep.subr.mxu0 0.0
        %2265 = vmatpush1.xpose.msra.mxu0 0.0
        %2266 = vmatprep.subr.mxu0 0.0
        %2267 = vmatpush1.xpose.msra.mxu0 0.0
        %2268 = vmatprep.subr.mxu0 0.0
        %2269 = vmatpush1.xpose.msra.mxu0 0.0
        %2270 = vmatprep.subr.mxu0 0.0
        %2271 = vmatpush1.xpose.msra.mxu0 0.0
        %2272 = vmatprep.subr.mxu0 0.0
        %2273 = vmatpush1.xpose.msra.mxu0 0.0
        %2274 = vmatprep.subr.mxu0 0.0
        %2275 = vmatpush1.xpose.msra.mxu0 0.0
        %2276 = vmatprep.subr.mxu0 0.0
        %2277 = vmatpush1.xpose.msra.mxu0 0.0
        %2278 = vmatprep.subr.mxu0 0.0
        %2279 = vmatpush1.xpose.msra.mxu0 0.0
        %2280 = vmatprep.subr.mxu0 0.0
        %2281 = vmatpush1.xpose.msra.mxu0 0.0
        %2282 = vmatprep.subr.mxu0 0.0
        %2283 = vmatpush1.xpose.msra.mxu0 0.0
        %2284 = vmatprep.subr.mxu0 0.0
        %2285 = vmatpush1.xpose.msra.mxu0 0.0
        %2286 = vmatprep.subr.mxu0 0.0
        %2287 = vmatpush1.xpose.msra.mxu0 0.0
        %2288 = vmatprep.subr.mxu0 0.0
        %2289 = vmatpush1.xpose.msra.mxu0 0.0
        %2290 = vmatprep.subr.mxu0 0.0
        %2291 = vmatpush1.xpose.msra.mxu0 0.0
        %2292 = vmatprep.subr.mxu0 0.0
        %v2293 = vand.u32 %v1130, 4294901760
        %2294 = vmatpush1.xpose.msra.mxu0 %v2293
        %2295 = vmatprep.subr.mxu0 0.0
        %2296 = vmatpush2.xpose.msra.mxu0 0.0
        %2297 = vmatprep.subr.mxu0 0.0
        %2298 = vmatpush2.xpose.msra.mxu0 0.0
        %2299 = vmatprep.subr.mxu0 0.0
        %2300 = vmatpush2.xpose.msra.mxu0 0.0
        %2301 = vmatprep.subr.mxu0 0.0
        %2302 = vmatpush2.xpose.msra.mxu0 0.0
        %2303 = vmatprep.subr.mxu0 0.0
        %2304 = vmatpush2.xpose.msra.mxu0 0.0
        %2305 = vmatprep.subr.mxu0 0.0
        %2306 = vmatpush2.xpose.msra.mxu0 0.0
        %2307 = vmatprep.subr.mxu0 0.0
        %2308 = vmatpush2.xpose.msra.mxu0 0.0
        %2309 = vmatprep.subr.mxu0 0.0
        %2310 = vmatpush2.xpose.msra.mxu0 0.0
        %2311 = vmatprep.subr.mxu0 0.0
        %2312 = vmatpush2.xpose.msra.mxu0 0.0
        %2313 = vmatprep.subr.mxu0 0.0
        %2314 = vmatpush2.xpose.msra.mxu0 0.0
        %2315 = vmatprep.subr.mxu0 0.0
        %2316 = vmatpush2.xpose.msra.mxu0 0.0
        %2317 = vmatprep.subr.mxu0 0.0
        %2318 = vmatpush2.xpose.msra.mxu0 0.0
        %2319 = vmatprep.subr.mxu0 0.0
        %2320 = vmatpush2.xpose.msra.mxu0 0.0
        %2321 = vmatprep.subr.mxu0 0.0
        %2322 = vmatpush2.xpose.msra.mxu0 0.0
        %2323 = vmatprep.subr.mxu0 0.0
        %2324 = vmatpush2.xpose.msra.mxu0 0.0
        %2325 = vmatprep.subr.mxu0 0.0
        %2326 = vmatpush2.xpose.msra.mxu0 0.0
        %2327 = vmatprep.mubr.f32.mxu0 0.0
        %v2328 = vand.u32 %v1128, 4294901760
        %v2329 = vsub.f32 %v1128, %v2328
        %v2330 = vand.u32 %v2329, 4294901760
        %v2331 = vsub.f32 %v2329, %v2330
        %v2332 = vand.u32 %v2331, 4294901760
        %2333 = vmatmul.mubr.f32.gmra.mxu0 %v2332
        %v2334 = vpop.f32.mrf.mxu0
        %v2335 = vadd.f32 0.0, %v2334
        %v2336 = vpop.f32.mrf.mxu0
        %2337 = vdwg.mxu0
        %2338 = vmatprep.subr.mxu0 0.0
        %2339 = vmatpush1.xpose.msra.mxu0 0.0
        %2340 = vmatprep.subr.mxu0 0.0
        %2341 = vmatpush1.xpose.msra.mxu0 0.0
        %2342 = vmatprep.subr.mxu0 0.0
        %2343 = vmatpush1.xpose.msra.mxu0 0.0
        %2344 = vmatprep.subr.mxu0 0.0
        %2345 = vmatpush1.xpose.msra.mxu0 0.0
        %2346 = vmatprep.subr.mxu0 0.0
        %2347 = vmatpush1.xpose.msra.mxu0 0.0
        %2348 = vmatprep.subr.mxu0 0.0
        %2349 = vmatpush1.xpose.msra.mxu0 0.0
        %2350 = vmatprep.subr.mxu0 0.0
        %2351 = vmatpush1.xpose.msra.mxu0 0.0
        %2352 = vmatprep.subr.mxu0 0.0
        %2353 = vmatpush1.xpose.msra.mxu0 0.0
        %2354 = vmatprep.subr.mxu0 0.0
        %2355 = vmatpush1.xpose.msra.mxu0 0.0
        %2356 = vmatprep.subr.mxu0 0.0
        %2357 = vmatpush1.xpose.msra.mxu0 0.0
        %2358 = vmatprep.subr.mxu0 0.0
        %2359 = vmatpush1.xpose.msra.mxu0 0.0
        %2360 = vmatprep.subr.mxu0 0.0
        %2361 = vmatpush1.xpose.msra.mxu0 0.0
        %2362 = vmatprep.subr.mxu0 0.0
        %2363 = vmatpush1.xpose.msra.mxu0 0.0
        %2364 = vmatprep.subr.mxu0 0.0
        %2365 = vmatpush1.xpose.msra.mxu0 0.0
        %2366 = vmatprep.subr.mxu0 0.0
        %2367 = vmatpush1.xpose.msra.mxu0 0.0
        %2368 = vmatprep.subr.mxu0 0.0
        %v2369 = vand.u32 %v1130, 4294901760
        %v2370 = vsub.f32 %v1130, %v2369
        %v2371 = vand.u32 %v2370, 4294901760
        %v2372 = vsub.f32 %v2370, %v2371
        %v2373 = vand.u32 %v2372, 4294901760
        %2374 = vmatpush1.xpose.msra.mxu0 %v2373
        %2375 = vmatprep.subr.mxu0 0.0
        %2376 = vmatpush2.xpose.msra.mxu0 0.0
        %2377 = vmatprep.subr.mxu0 0.0
        %2378 = vmatpush2.xpose.msra.mxu0 0.0
        %2379 = vmatprep.subr.mxu0 0.0
        %2380 = vmatpush2.xpose.msra.mxu0 0.0
        %2381 = vmatprep.subr.mxu0 0.0
        %2382 = vmatpush2.xpose.msra.mxu0 0.0
        %2383 = vmatprep.subr.mxu0 0.0
        %2384 = vmatpush2.xpose.msra.mxu0 0.0
        %2385 = vmatprep.subr.mxu0 0.0
        %2386 = vmatpush2.xpose.msra.mxu0 0.0
        %2387 = vmatprep.subr.mxu0 0.0
        %2388 = vmatpush2.xpose.msra.mxu0 0.0
        %2389 = vmatprep.subr.mxu0 0.0
        %2390 = vmatpush2.xpose.msra.mxu0 0.0
        %2391 = vmatprep.subr.mxu0 0.0
        %2392 = vmatpush2.xpose.msra.mxu0 0.0
        %2393 = vmatprep.subr.mxu0 0.0
        %2394 = vmatpush2.xpose.msra.mxu0 0.0
        %2395 = vmatprep.subr.mxu0 0.0
        %2396 = vmatpush2.xpose.msra.mxu0 0.0
        %2397 = vmatprep.subr.mxu0 0.0
        %2398 = vmatpush2.xpose.msra.mxu0 0.0
        %2399 = vmatprep.subr.mxu0 0.0
        %2400 = vmatpush2.xpose.msra.mxu0 0.0
        %2401 = vmatprep.subr.mxu0 0.0
        %2402 = vmatpush2.xpose.msra.mxu0 0.0
        %2403 = vmatprep.subr.mxu0 0.0
        %2404 = vmatpush2.xpose.msra.mxu0 0.0
        %2405 = vmatprep.subr.mxu0 0.0
        %2406 = vmatpush2.xpose.msra.mxu0 0.0
        %2407 = vmatprep.mubr.f32.mxu0 0.0
        %v2408 = vand.u32 %v1128, 4294901760
        %2409 = vmatmul.mubr.f32.gmra.mxu0 %v2408
        %v2410 = vpop.f32.mrf.mxu0
        %v2411 = vadd.f32 %v2335, %v2410
        %v2412 = vpop.f32.mrf.mxu0
        %2413 = vdwg.mxu0
        %2414 = vmatprep.subr.mxu0 0.0
        %2415 = vmatpush1.xpose.msra.mxu0 0.0
        %2416 = vmatprep.subr.mxu0 0.0
        %2417 = vmatpush1.xpose.msra.mxu0 0.0
        %2418 = vmatprep.subr.mxu0 0.0
        %2419 = vmatpush1.xpose.msra.mxu0 0.0
        %2420 = vmatprep.subr.mxu0 0.0
        %2421 = vmatpush1.xpose.msra.mxu0 0.0
        %2422 = vmatprep.subr.mxu0 0.0
        %2423 = vmatpush1.xpose.msra.mxu0 0.0
        %2424 = vmatprep.subr.mxu0 0.0
        %2425 = vmatpush1.xpose.msra.mxu0 0.0
        %2426 = vmatprep.subr.mxu0 0.0
        %2427 = vmatpush1.xpose.msra.mxu0 0.0
        %2428 = vmatprep.subr.mxu0 0.0
        %2429 = vmatpush1.xpose.msra.mxu0 0.0
        %2430 = vmatprep.subr.mxu0 0.0
        %2431 = vmatpush1.xpose.msra.mxu0 0.0
        %2432 = vmatprep.subr.mxu0 0.0
        %2433 = vmatpush1.xpose.msra.mxu0 0.0
        %2434 = vmatprep.subr.mxu0 0.0
        %2435 = vmatpush1.xpose.msra.mxu0 0.0
        %2436 = vmatprep.subr.mxu0 0.0
        %2437 = vmatpush1.xpose.msra.mxu0 0.0
        %2438 = vmatprep.subr.mxu0 0.0
        %2439 = vmatpush1.xpose.msra.mxu0 0.0
        %2440 = vmatprep.subr.mxu0 0.0
        %2441 = vmatpush1.xpose.msra.mxu0 0.0
        %2442 = vmatprep.subr.mxu0 0.0
        %2443 = vmatpush1.xpose.msra.mxu0 0.0
        %2444 = vmatprep.subr.mxu0 0.0
        %v2445 = vand.u32 %v1130, 4294901760
        %v2446 = vsub.f32 %v1130, %v2445
        %2447 = vmatpush1.xpose.msra.mxu0 %v2446
        %2448 = vmatprep.subr.mxu0 0.0
        %2449 = vmatpush2.xpose.msra.mxu0 0.0
        %2450 = vmatprep.subr.mxu0 0.0
        %2451 = vmatpush2.xpose.msra.mxu0 0.0
        %2452 = vmatprep.subr.mxu0 0.0
        %2453 = vmatpush2.xpose.msra.mxu0 0.0
        %2454 = vmatprep.subr.mxu0 0.0
        %2455 = vmatpush2.xpose.msra.mxu0 0.0
        %2456 = vmatprep.subr.mxu0 0.0
        %2457 = vmatpush2.xpose.msra.mxu0 0.0
        %2458 = vmatprep.subr.mxu0 0.0
        %2459 = vmatpush2.xpose.msra.mxu0 0.0
        %2460 = vmatprep.subr.mxu0 0.0
        %2461 = vmatpush2.xpose.msra.mxu0 0.0
        %2462 = vmatprep.subr.mxu0 0.0
        %2463 = vmatpush2.xpose.msra.mxu0 0.0
        %2464 = vmatprep.subr.mxu0 0.0
        %2465 = vmatpush2.xpose.msra.mxu0 0.0
        %2466 = vmatprep.subr.mxu0 0.0
        %2467 = vmatpush2.xpose.msra.mxu0 0.0
        %2468 = vmatprep.subr.mxu0 0.0
        %2469 = vmatpush2.xpose.msra.mxu0 0.0
        %2470 = vmatprep.subr.mxu0 0.0
        %2471 = vmatpush2.xpose.msra.mxu0 0.0
        %2472 = vmatprep.subr.mxu0 0.0
        %2473 = vmatpush2.xpose.msra.mxu0 0.0
        %2474 = vmatprep.subr.mxu0 0.0
        %2475 = vmatpush2.xpose.msra.mxu0 0.0
        %2476 = vmatprep.subr.mxu0 0.0
        %2477 = vmatpush2.xpose.msra.mxu0 0.0
        %2478 = vmatprep.subr.mxu0 0.0
        %2479 = vmatpush2.xpose.msra.mxu0 0.0
        %2480 = vmatprep.mubr.f32.mxu0 0.0
        %v2481 = vand.u32 %v1128, 4294901760
        %v2482 = vsub.f32 %v1128, %v2481
        %2483 = vmatmul.mubr.f32.gmra.mxu0 %v2482
        %v2484 = vpop.f32.mrf.mxu0
        %v2485 = vadd.f32 %v2411, %v2484
        %v2486 = vpop.f32.mrf.mxu0
        %2487 = vdwg.mxu0
        %2488 = vmatprep.subr.mxu0 0.0
        %2489 = vmatpush1.xpose.msra.mxu0 0.0
        %2490 = vmatprep.subr.mxu0 0.0
        %2491 = vmatpush1.xpose.msra.mxu0 0.0
        %2492 = vmatprep.subr.mxu0 0.0
        %2493 = vmatpush1.xpose.msra.mxu0 0.0
        %2494 = vmatprep.subr.mxu0 0.0
        %2495 = vmatpush1.xpose.msra.mxu0 0.0
        %2496 = vmatprep.subr.mxu0 0.0
        %2497 = vmatpush1.xpose.msra.mxu0 0.0
        %2498 = vmatprep.subr.mxu0 0.0
        %2499 = vmatpush1.xpose.msra.mxu0 0.0
        %2500 = vmatprep.subr.mxu0 0.0
        %2501 = vmatpush1.xpose.msra.mxu0 0.0
        %2502 = vmatprep.subr.mxu0 0.0
        %2503 = vmatpush1.xpose.msra.mxu0 0.0
        %2504 = vmatprep.subr.mxu0 0.0
        %2505 = vmatpush1.xpose.msra.mxu0 0.0
        %2506 = vmatprep.subr.mxu0 0.0
        %2507 = vmatpush1.xpose.msra.mxu0 0.0
        %2508 = vmatprep.subr.mxu0 0.0
        %2509 = vmatpush1.xpose.msra.mxu0 0.0
        %2510 = vmatprep.subr.mxu0 0.0
        %2511 = vmatpush1.xpose.msra.mxu0 0.0
        %2512 = vmatprep.subr.mxu0 0.0
        %2513 = vmatpush1.xpose.msra.mxu0 0.0
        %2514 = vmatprep.subr.mxu0 0.0
        %2515 = vmatpush1.xpose.msra.mxu0 0.0
        %2516 = vmatprep.subr.mxu0 0.0
        %2517 = vmatpush1.xpose.msra.mxu0 0.0
        %2518 = vmatprep.subr.mxu0 0.0
        %v2519 = vand.u32 %v1130, 4294901760
        %2520 = vmatpush1.xpose.msra.mxu0 %v2519
        %2521 = vmatprep.subr.mxu0 0.0
        %2522 = vmatpush2.xpose.msra.mxu0 0.0
        %2523 = vmatprep.subr.mxu0 0.0
        %2524 = vmatpush2.xpose.msra.mxu0 0.0
        %2525 = vmatprep.subr.mxu0 0.0
        %2526 = vmatpush2.xpose.msra.mxu0 0.0
        %2527 = vmatprep.subr.mxu0 0.0
        %2528 = vmatpush2.xpose.msra.mxu0 0.0
        %2529 = vmatprep.subr.mxu0 0.0
        %2530 = vmatpush2.xpose.msra.mxu0 0.0
        %2531 = vmatprep.subr.mxu0 0.0
        %2532 = vmatpush2.xpose.msra.mxu0 0.0
        %2533 = vmatprep.subr.mxu0 0.0
        %2534 = vmatpush2.xpose.msra.mxu0 0.0
        %2535 = vmatprep.subr.mxu0 0.0
        %2536 = vmatpush2.xpose.msra.mxu0 0.0
        %2537 = vmatprep.subr.mxu0 0.0
        %2538 = vmatpush2.xpose.msra.mxu0 0.0
        %2539 = vmatprep.subr.mxu0 0.0
        %2540 = vmatpush2.xpose.msra.mxu0 0.0
        %2541 = vmatprep.subr.mxu0 0.0
        %2542 = vmatpush2.xpose.msra.mxu0 0.0
        %2543 = vmatprep.subr.mxu0 0.0
        %2544 = vmatpush2.xpose.msra.mxu0 0.0
        %2545 = vmatprep.subr.mxu0 0.0
        %2546 = vmatpush2.xpose.msra.mxu0 0.0
        %2547 = vmatprep.subr.mxu0 0.0
        %2548 = vmatpush2.xpose.msra.mxu0 0.0
        %2549 = vmatprep.subr.mxu0 0.0
        %2550 = vmatpush2.xpose.msra.mxu0 0.0
        %2551 = vmatprep.subr.mxu0 0.0
        %2552 = vmatpush2.xpose.msra.mxu0 0.0
        %2553 = vmatprep.mubr.f32.mxu0 0.0
        %v2554 = vand.u32 %v1128, 4294901760
        %v2555 = vsub.f32 %v1128, %v2554
        %v2556 = vand.u32 %v2555, 4294901760
        %2557 = vmatmul.mubr.f32.gmra.mxu0 %v2556
        %v2558 = vpop.f32.mrf.mxu0
        %v2559 = vadd.f32 %v2485, %v2558
        %v2560 = vpop.f32.mrf.mxu0
        %2561 = vdwg.mxu0
        %2562 = vmatprep.subr.mxu0 0.0
        %2563 = vmatpush1.xpose.msra.mxu0 0.0
        %2564 = vmatprep.subr.mxu0 0.0
        %2565 = vmatpush1.xpose.msra.mxu0 0.0
        %2566 = vmatprep.subr.mxu0 0.0
        %2567 = vmatpush1.xpose.msra.mxu0 0.0
        %2568 = vmatprep.subr.mxu0 0.0
        %2569 = vmatpush1.xpose.msra.mxu0 0.0
        %2570 = vmatprep.subr.mxu0 0.0
        %2571 = vmatpush1.xpose.msra.mxu0 0.0
        %2572 = vmatprep.subr.mxu0 0.0
        %2573 = vmatpush1.xpose.msra.mxu0 0.0
        %2574 = vmatprep.subr.mxu0 0.0
        %2575 = vmatpush1.xpose.msra.mxu0 0.0
        %2576 = vmatprep.subr.mxu0 0.0
        %2577 = vmatpush1.xpose.msra.mxu0 0.0
        %2578 = vmatprep.subr.mxu0 0.0
        %2579 = vmatpush1.xpose.msra.mxu0 0.0
        %2580 = vmatprep.subr.mxu0 0.0
        %2581 = vmatpush1.xpose.msra.mxu0 0.0
        %2582 = vmatprep.subr.mxu0 0.0
        %2583 = vmatpush1.xpose.msra.mxu0 0.0
        %2584 = vmatprep.subr.mxu0 0.0
        %2585 = vmatpush1.xpose.msra.mxu0 0.0
        %2586 = vmatprep.subr.mxu0 0.0
        %2587 = vmatpush1.xpose.msra.mxu0 0.0
        %2588 = vmatprep.subr.mxu0 0.0
        %2589 = vmatpush1.xpose.msra.mxu0 0.0
        %2590 = vmatprep.subr.mxu0 0.0
        %2591 = vmatpush1.xpose.msra.mxu0 0.0
        %2592 = vmatprep.subr.mxu0 0.0
        %v2593 = vand.u32 %v1130, 4294901760
        %v2594 = vsub.f32 %v1130, %v2593
        %v2595 = vand.u32 %v2594, 4294901760
        %2596 = vmatpush1.xpose.msra.mxu0 %v2595
        %2597 = vmatprep.subr.mxu0 0.0
        %2598 = vmatpush2.xpose.msra.mxu0 0.0
        %2599 = vmatprep.subr.mxu0 0.0
        %2600 = vmatpush2.xpose.msra.mxu0 0.0
        %2601 = vmatprep.subr.mxu0 0.0
        %2602 = vmatpush2.xpose.msra.mxu0 0.0
        %2603 = vmatprep.subr.mxu0 0.0
        %2604 = vmatpush2.xpose.msra.mxu0 0.0
        %2605 = vmatprep.subr.mxu0 0.0
        %2606 = vmatpush2.xpose.msra.mxu0 0.0
        %2607 = vmatprep.subr.mxu0 0.0
        %2608 = vmatpush2.xpose.msra.mxu0 0.0
        %2609 = vmatprep.subr.mxu0 0.0
        %2610 = vmatpush2.xpose.msra.mxu0 0.0
        %2611 = vmatprep.subr.mxu0 0.0
        %2612 = vmatpush2.xpose.msra.mxu0 0.0
        %2613 = vmatprep.subr.mxu0 0.0
        %2614 = vmatpush2.xpose.msra.mxu0 0.0
        %2615 = vmatprep.subr.mxu0 0.0
        %2616 = vmatpush2.xpose.msra.mxu0 0.0
        %2617 = vmatprep.subr.mxu0 0.0
        %2618 = vmatpush2.xpose.msra.mxu0 0.0
        %2619 = vmatprep.subr.mxu0 0.0
        %2620 = vmatpush2.xpose.msra.mxu0 0.0
        %2621 = vmatprep.subr.mxu0 0.0
        %2622 = vmatpush2.xpose.msra.mxu0 0.0
        %2623 = vmatprep.subr.mxu0 0.0
        %2624 = vmatpush2.xpose.msra.mxu0 0.0
        %2625 = vmatprep.subr.mxu0 0.0
        %2626 = vmatpush2.xpose.msra.mxu0 0.0
        %2627 = vmatprep.subr.mxu0 0.0
        %2628 = vmatpush2.xpose.msra.mxu0 0.0
        %2629 = vmatprep.mubr.f32.mxu0 0.0
        %v2630 = vand.u32 %v1128, 4294901760
        %2631 = vmatmul.mubr.f32.gmra.mxu0 %v2630
        %v2632 = vpop.f32.mrf.mxu0
        %v2633 = vadd.f32 %v2559, %v2632
        %v2634 = vpop.f32.mrf.mxu0
        %2635 = vdwg.mxu0
        %2636 = vmatprep.subr.mxu0 0.0
        %2637 = vmatpush1.xpose.msra.mxu0 0.0
        %2638 = vmatprep.subr.mxu0 0.0
        %2639 = vmatpush1.xpose.msra.mxu0 0.0
        %2640 = vmatprep.subr.mxu0 0.0
        %2641 = vmatpush1.xpose.msra.mxu0 0.0
        %2642 = vmatprep.subr.mxu0 0.0
        %2643 = vmatpush1.xpose.msra.mxu0 0.0
        %2644 = vmatprep.subr.mxu0 0.0
        %2645 = vmatpush1.xpose.msra.mxu0 0.0
        %2646 = vmatprep.subr.mxu0 0.0
        %2647 = vmatpush1.xpose.msra.mxu0 0.0
        %2648 = vmatprep.subr.mxu0 0.0
        %2649 = vmatpush1.xpose.msra.mxu0 0.0
        %2650 = vmatprep.subr.mxu0 0.0
        %2651 = vmatpush1.xpose.msra.mxu0 0.0
        %2652 = vmatprep.subr.mxu0 0.0
        %2653 = vmatpush1.xpose.msra.mxu0 0.0
        %2654 = vmatprep.subr.mxu0 0.0
        %2655 = vmatpush1.xpose.msra.mxu0 0.0
        %2656 = vmatprep.subr.mxu0 0.0
        %2657 = vmatpush1.xpose.msra.mxu0 0.0
        %2658 = vmatprep.subr.mxu0 0.0
        %2659 = vmatpush1.xpose.msra.mxu0 0.0
        %2660 = vmatprep.subr.mxu0 0.0
        %2661 = vmatpush1.xpose.msra.mxu0 0.0
        %2662 = vmatprep.subr.mxu0 0.0
        %2663 = vmatpush1.xpose.msra.mxu0 0.0
        %2664 = vmatprep.subr.mxu0 0.0
        %2665 = vmatpush1.xpose.msra.mxu0 0.0
        %2666 = vmatprep.subr.mxu0 0.0
        %v2667 = vand.u32 %v1130, 4294901760
        %2668 = vmatpush1.xpose.msra.mxu0 %v2667
        %2669 = vmatprep.subr.mxu0 0.0
        %2670 = vmatpush2.xpose.msra.mxu0 0.0
        %2671 = vmatprep.subr.mxu0 0.0
        %2672 = vmatpush2.xpose.msra.mxu0 0.0
        %2673 = vmatprep.subr.mxu0 0.0
        %2674 = vmatpush2.xpose.msra.mxu0 0.0
        %2675 = vmatprep.subr.mxu0 0.0
        %2676 = vmatpush2.xpose.msra.mxu0 0.0
        %2677 = vmatprep.subr.mxu0 0.0
        %2678 = vmatpush2.xpose.msra.mxu0 0.0
        %2679 = vmatprep.subr.mxu0 0.0
        %2680 = vmatpush2.xpose.msra.mxu0 0.0
        %2681 = vmatprep.subr.mxu0 0.0
        %2682 = vmatpush2.xpose.msra.mxu0 0.0
        %2683 = vmatprep.subr.mxu0 0.0
        %2684 = vmatpush2.xpose.msra.mxu0 0.0
        %2685 = vmatprep.subr.mxu0 0.0
        %2686 = vmatpush2.xpose.msra.mxu0 0.0
        %2687 = vmatprep.subr.mxu0 0.0
        %2688 = vmatpush2.xpose.msra.mxu0 0.0
        %2689 = vmatprep.subr.mxu0 0.0
        %2690 = vmatpush2.xpose.msra.mxu0 0.0
        %2691 = vmatprep.subr.mxu0 0.0
        %2692 = vmatpush2.xpose.msra.mxu0 0.0
        %2693 = vmatprep.subr.mxu0 0.0
        %2694 = vmatpush2.xpose.msra.mxu0 0.0
        %2695 = vmatprep.subr.mxu0 0.0
        %2696 = vmatpush2.xpose.msra.mxu0 0.0
        %2697 = vmatprep.subr.mxu0 0.0
        %2698 = vmatpush2.xpose.msra.mxu0 0.0
        %2699 = vmatprep.subr.mxu0 0.0
        %2700 = vmatpush2.xpose.msra.mxu0 0.0
        %2701 = vmatprep.mubr.f32.mxu0 0.0
        %v2702 = vand.u32 %v1128, 4294901760
        %2703 = vmatmul.mubr.f32.gmra.mxu0 %v2702
        %v2704 = vpop.f32.mrf.mxu0
        %v2705 = vadd.f32 %v2633, %v2704
        %v2706 = vpop.f32.mrf.mxu0
        %2707 = vdwg.mxu0
        %vm2708 = vcmask 64512
        %v2709 = vsel %vm2708, %v2259, -inf
        %2710 = vmax.xlane.f32.xlu0 %v2709
        %v2711 = vpop.xlane.xlu0 %2710
        %v2712 = vsel %vm2708, %v2705, -inf
        %2713 = vmax.xlane.f32.xlu0 %v2712
        %v2714 = vpop.xlane.xlu0 %2713
        %v2715 = vsub.f32 %v2259, %v2711
        %v2716 = vsub.f32 %v2705, %v2714
        %v2717 = vmul.f32 %v2715, 1.442695
        %v2718 = vpow.pop %v2717
        %v2719 = vmul.f32 %v2716, 1.442695
        %v2720 = vpow.pop %v2719
        %v2721 = vsel %vm2708, %v2718, 0.0
        %2722 = vadd.xlane.f32.xlu0 %v2721
        %v2723 = vpop.xlane.xlu0 %2722
        %v2724 = vsel %vm2708, %v2720, 0.0
        %2725 = vadd.xlane.f32.xlu0 %v2724
        %v2726 = vpop.xlane.xlu0 %2725
        %v2727 = vrcp.pop %v2723
        %v2728 = vrcp.pop %v2726
        %v2729 = vmul.f32 %v2718, %v2727
        %v2730 = vmul.f32 %v2720, %v2728
        %v2732 = vsel %vm2708, %v2729, 0
        %2734 = vmatprep.subr.mxu0 0.0
        %2735 = vmatpush1.msra.mxu0 0.0
        %2736 = vmatprep.subr.mxu0 0.0
        %2737 = vmatpush1.msra.mxu0 0.0
        %2738 = vmatprep.subr.mxu0 0.0
        %2739 = vmatpush1.msra.mxu0 0.0
        %2740 = vmatprep.subr.mxu0 0.0
        %2741 = vmatpush1.msra.mxu0 0.0
        %2742 = vmatprep.subr.mxu0 0.0
        %2743 = vmatpush1.msra.mxu0 0.0
        %2744 = vmatprep.subr.mxu0 0.0
        %2745 = vmatpush1.msra.mxu0 0.0
        %2746 = vmatprep.subr.mxu0 0.0
        %2747 = vmatpush1.msra.mxu0 0.0
        %2748 = vmatprep.subr.mxu0 0.0
        %2749 = vmatpush1.msra.mxu0 0.0
        %2750 = vmatprep.subr.mxu0 0.0
        %2751 = vmatpush1.msra.mxu0 0.0
        %2752 = vmatprep.subr.mxu0 0.0
        %2753 = vmatpush1.msra.mxu0 0.0
        %2754 = vmatprep.subr.mxu0 0.0
        %2755 = vmatpush1.msra.mxu0 0.0
        %2756 = vmatprep.subr.mxu0 0.0
        %2757 = vmatpush1.msra.mxu0 0.0
        %2758 = vmatprep.subr.mxu0 0.0
        %2759 = vmatpush1.msra.mxu0 0.0
        %2760 = vmatprep.subr.mxu0 0.0
        %2761 = vmatpush1.msra.mxu0 0.0
        %2762 = vmatprep.subr.mxu0 0.0
        %2763 = vmatpush1.msra.mxu0 0.0
        %2764 = vmatprep.subr.mxu0 0.0
        %v2765 = vand.u32 %v1807, 4294901760
        %2766 = vmatpush1.msra.mxu0 %v2765
        %2767 = vmatprep.subr.mxu0 0.0
        %2768 = vmatpush2.msra.mxu0 0.0
        %2769 = vmatprep.subr.mxu0 0.0
        %2770 = vmatpush2.msra.mxu0 0.0
        %2771 = vmatprep.subr.mxu0 0.0
        %2772 = vmatpush2.msra.mxu0 0.0
        %2773 = vmatprep.subr.mxu0 0.0
        %2774 = vmatpush2.msra.mxu0 0.0
        %2775 = vmatprep.subr.mxu0 0.0
        %2776 = vmatpush2.msra.mxu0 0.0
        %2777 = vmatprep.subr.mxu0 0.0
        %2778 = vmatpush2.msra.mxu0 0.0
        %2779 = vmatprep.subr.mxu0 0.0
        %2780 = vmatpush2.msra.mxu0 0.0
        %2781 = vmatprep.subr.mxu0 0.0
        %2782 = vmatpush2.msra.mxu0 0.0
        %2783 = vmatprep.subr.mxu0 0.0
        %2784 = vmatpush2.msra.mxu0 0.0
        %2785 = vmatprep.subr.mxu0 0.0
        %2786 = vmatpush2.msra.mxu0 0.0
        %2787 = vmatprep.subr.mxu0 0.0
        %2788 = vmatpush2.msra.mxu0 0.0
        %2789 = vmatprep.subr.mxu0 0.0
        %2790 = vmatpush2.msra.mxu0 0.0
        %2791 = vmatprep.subr.mxu0 0.0
        %2792 = vmatpush2.msra.mxu0 0.0
        %2793 = vmatprep.subr.mxu0 0.0
        %2794 = vmatpush2.msra.mxu0 0.0
        %2795 = vmatprep.subr.mxu0 0.0
        %2796 = vmatpush2.msra.mxu0 0.0
        %2797 = vmatprep.subr.mxu0 0.0
        %2798 = vmatpush2.msra.mxu0 0.0
        %2799 = vmatprep.mubr.f32.mxu0 0.0
        %v2800 = vand.u32 %v2732, 4294901760
        %v2801 = vsub.f32 %v2732, %v2800
        %v2802 = vand.u32 %v2801, 4294901760
        %v2803 = vsub.f32 %v2801, %v2802
        %v2804 = vand.u32 %v2803, 4294901760
        %2805 = vmatmul.mubr.f32.gmra.mxu0 %v2804
        %v2806 = vpop.f32.mrf.mxu0
        %v2807 = vadd.f32 0.0, %v2806
        %v2808 = vpop.f32.mrf.mxu0
        %2809 = vdwg.mxu0
        %2810 = vmatprep.subr.mxu0 0.0
        %2811 = vmatpush1.msra.mxu0 0.0
        %2812 = vmatprep.subr.mxu0 0.0
        %2813 = vmatpush1.msra.mxu0 0.0
        %2814 = vmatprep.subr.mxu0 0.0
        %2815 = vmatpush1.msra.mxu0 0.0
        %2816 = vmatprep.subr.mxu0 0.0
        %2817 = vmatpush1.msra.mxu0 0.0
        %2818 = vmatprep.subr.mxu0 0.0
        %2819 = vmatpush1.msra.mxu0 0.0
        %2820 = vmatprep.subr.mxu0 0.0
        %2821 = vmatpush1.msra.mxu0 0.0
        %2822 = vmatprep.subr.mxu0 0.0
        %2823 = vmatpush1.msra.mxu0 0.0
        %2824 = vmatprep.subr.mxu0 0.0
        %2825 = vmatpush1.msra.mxu0 0.0
        %2826 = vmatprep.subr.mxu0 0.0
        %2827 = vmatpush1.msra.mxu0 0.0
        %2828 = vmatprep.subr.mxu0 0.0
        %2829 = vmatpush1.msra.mxu0 0.0
        %2830 = vmatprep.subr.mxu0 0.0
        %2831 = vmatpush1.msra.mxu0 0.0
        %2832 = vmatprep.subr.mxu0 0.0
        %2833 = vmatpush1.msra.mxu0 0.0
        %2834 = vmatprep.subr.mxu0 0.0
        %2835 = vmatpush1.msra.mxu0 0.0
        %2836 = vmatprep.subr.mxu0 0.0
        %2837 = vmatpush1.msra.mxu0 0.0
        %2838 = vmatprep.subr.mxu0 0.0
        %2839 = vmatpush1.msra.mxu0 0.0
        %2840 = vmatprep.subr.mxu0 0.0
        %v2841 = vand.u32 %v1807, 4294901760
        %v2842 = vsub.f32 %v1807, %v2841
        %v2843 = vand.u32 %v2842, 4294901760
        %v2844 = vsub.f32 %v2842, %v2843
        %v2845 = vand.u32 %v2844, 4294901760
        %2846 = vmatpush1.msra.mxu0 %v2845
        %2847 = vmatprep.subr.mxu0 0.0
        %2848 = vmatpush2.msra.mxu0 0.0
        %2849 = vmatprep.subr.mxu0 0.0
        %2850 = vmatpush2.msra.mxu0 0.0
        %2851 = vmatprep.subr.mxu0 0.0
        %2852 = vmatpush2.msra.mxu0 0.0
        %2853 = vmatprep.subr.mxu0 0.0
        %2854 = vmatpush2.msra.mxu0 0.0
        %2855 = vmatprep.subr.mxu0 0.0
        %2856 = vmatpush2.msra.mxu0 0.0
        %2857 = vmatprep.subr.mxu0 0.0
        %2858 = vmatpush2.msra.mxu0 0.0
        %2859 = vmatprep.subr.mxu0 0.0
        %2860 = vmatpush2.msra.mxu0 0.0
        %2861 = vmatprep.subr.mxu0 0.0
        %2862 = vmatpush2.msra.mxu0 0.0
        %2863 = vmatprep.subr.mxu0 0.0
        %2864 = vmatpush2.msra.mxu0 0.0
        %2865 = vmatprep.subr.mxu0 0.0
        %2866 = vmatpush2.msra.mxu0 0.0
        %2867 = vmatprep.subr.mxu0 0.0
        %2868 = vmatpush2.msra.mxu0 0.0
        %2869 = vmatprep.subr.mxu0 0.0
        %2870 = vmatpush2.msra.mxu0 0.0
        %2871 = vmatprep.subr.mxu0 0.0
        %2872 = vmatpush2.msra.mxu0 0.0
        %2873 = vmatprep.subr.mxu0 0.0
        %2874 = vmatpush2.msra.mxu0 0.0
        %2875 = vmatprep.subr.mxu0 0.0
        %2876 = vmatpush2.msra.mxu0 0.0
        %2877 = vmatprep.subr.mxu0 0.0
        %2878 = vmatpush2.msra.mxu0 0.0
        %2879 = vmatprep.mubr.f32.mxu0 0.0
        %v2880 = vand.u32 %v2732, 4294901760
        %2881 = vmatmul.mubr.f32.gmra.mxu0 %v2880
        %v2882 = vpop.f32.mrf.mxu0
        %v2883 = vadd.f32 %v2807, %v2882
        %v2884 = vpop.f32.mrf.mxu0
        %2885 = vdwg.mxu0
        %2886 = vmatprep.subr.mxu0 0.0
        %2887 = vmatpush1.msra.mxu0 0.0
        %2888 = vmatprep.subr.mxu0 0.0
        %2889 = vmatpush1.msra.mxu0 0.0
        %2890 = vmatprep.subr.mxu0 0.0
        %2891 = vmatpush1.msra.mxu0 0.0
        %2892 = vmatprep.subr.mxu0 0.0
        %2893 = vmatpush1.msra.mxu0 0.0
        %2894 = vmatprep.subr.mxu0 0.0
        %2895 = vmatpush1.msra.mxu0 0.0
        %2896 = vmatprep.subr.mxu0 0.0
        %2897 = vmatpush1.msra.mxu0 0.0
        %2898 = vmatprep.subr.mxu0 0.0
        %2899 = vmatpush1.msra.mxu0 0.0
        %2900 = vmatprep.subr.mxu0 0.0
        %2901 = vmatpush1.msra.mxu0 0.0
        %2902 = vmatprep.subr.mxu0 0.0
        %2903 = vmatpush1.msra.mxu0 0.0
        %2904 = vmatprep.subr.mxu0 0.0
        %2905 = vmatpush1.msra.mxu0 0.0
        %2906 = vmatprep.subr.mxu0 0.0
        %2907 = vmatpush1.msra.mxu0 0.0
        %2908 = vmatprep.subr.mxu0 0.0
        %2909 = vmatpush1.msra.mxu0 0.0
        %2910 = vmatprep.subr.mxu0 0.0
        %2911 = vmatpush1.msra.mxu0 0.0
        %2912 = vmatprep.subr.mxu0 0.0
        %2913 = vmatpush1.msra.mxu0 0.0
        %2914 = vmatprep.subr.mxu0 0.0
        %2915 = vmatpush1.msra.mxu0 0.0
        %2916 = vmatprep.subr.mxu0 0.0
        %v2917 = vand.u32 %v1807, 4294901760
        %v2918 = vsub.f32 %v1807, %v2917
        %2919 = vmatpush1.msra.mxu0 %v2918
        %2920 = vmatprep.subr.mxu0 0.0
        %2921 = vmatpush2.msra.mxu0 0.0
        %2922 = vmatprep.subr.mxu0 0.0
        %2923 = vmatpush2.msra.mxu0 0.0
        %2924 = vmatprep.subr.mxu0 0.0
        %2925 = vmatpush2.msra.mxu0 0.0
        %2926 = vmatprep.subr.mxu0 0.0
        %2927 = vmatpush2.msra.mxu0 0.0
        %2928 = vmatprep.subr.mxu0 0.0
        %2929 = vmatpush2.msra.mxu0 0.0
        %2930 = vmatprep.subr.mxu0 0.0
        %2931 = vmatpush2.msra.mxu0 0.0
        %2932 = vmatprep.subr.mxu0 0.0
        %2933 = vmatpush2.msra.mxu0 0.0
        %2934 = vmatprep.subr.mxu0 0.0
        %2935 = vmatpush2.msra.mxu0 0.0
        %2936 = vmatprep.subr.mxu0 0.0
        %2937 = vmatpush2.msra.mxu0 0.0
        %2938 = vmatprep.subr.mxu0 0.0
        %2939 = vmatpush2.msra.mxu0 0.0
        %2940 = vmatprep.subr.mxu0 0.0
        %2941 = vmatpush2.msra.mxu0 0.0
        %2942 = vmatprep.subr.mxu0 0.0
        %2943 = vmatpush2.msra.mxu0 0.0
        %2944 = vmatprep.subr.mxu0 0.0
        %2945 = vmatpush2.msra.mxu0 0.0
        %2946 = vmatprep.subr.mxu0 0.0
        %2947 = vmatpush2.msra.mxu0 0.0
        %2948 = vmatprep.subr.mxu0 0.0
        %2949 = vmatpush2.msra.mxu0 0.0
        %2950 = vmatprep.subr.mxu0 0.0
        %2951 = vmatpush2.msra.mxu0 0.0
        %2952 = vmatprep.mubr.f32.mxu0 0.0
        %v2953 = vand.u32 %v2732, 4294901760
        %v2954 = vsub.f32 %v2732, %v2953
        %2955 = vmatmul.mubr.f32.gmra.mxu0 %v2954
        %v2956 = vpop.f32.mrf.mxu0
        %v2957 = vadd.f32 %v2883, %v2956
        %v2958 = vpop.f32.mrf.mxu0
        %2959 = vdwg.mxu0
        %2960 = vmatprep.subr.mxu0 0.0
        %2961 = vmatpush1.msra.mxu0 0.0
        %2962 = vmatprep.subr.mxu0 0.0
        %2963 = vmatpush1.msra.mxu0 0.0
        %2964 = vmatprep.subr.mxu0 0.0
        %2965 = vmatpush1.msra.mxu0 0.0
        %2966 = vmatprep.subr.mxu0 0.0
        %2967 = vmatpush1.msra.mxu0 0.0
        %2968 = vmatprep.subr.mxu0 0.0
        %2969 = vmatpush1.msra.mxu0 0.0
        %2970 = vmatprep.subr.mxu0 0.0
        %2971 = vmatpush1.msra.mxu0 0.0
        %2972 = vmatprep.subr.mxu0 0.0
        %2973 = vmatpush1.msra.mxu0 0.0
        %2974 = vmatprep.subr.mxu0 0.0
        %2975 = vmatpush1.msra.mxu0 0.0
        %2976 = vmatprep.subr.mxu0 0.0
        %2977 = vmatpush1.msra.mxu0 0.0
        %2978 = vmatprep.subr.mxu0 0.0
        %2979 = vmatpush1.msra.mxu0 0.0
        %2980 = vmatprep.subr.mxu0 0.0
        %2981 = vmatpush1.msra.mxu0 0.0
        %2982 = vmatprep.subr.mxu0 0.0
        %2983 = vmatpush1.msra.mxu0 0.0
        %2984 = vmatprep.subr.mxu0 0.0
        %2985 = vmatpush1.msra.mxu0 0.0
        %2986 = vmatprep.subr.mxu0 0.0
        %2987 = vmatpush1.msra.mxu0 0.0
        %2988 = vmatprep.subr.mxu0 0.0
        %2989 = vmatpush1.msra.mxu0 0.0
        %2990 = vmatprep.subr.mxu0 0.0
        %v2991 = vand.u32 %v1807, 4294901760
        %2992 = vmatpush1.msra.mxu0 %v2991
        %2993 = vmatprep.subr.mxu0 0.0
        %2994 = vmatpush2.msra.mxu0 0.0
        %2995 = vmatprep.subr.mxu0 0.0
        %2996 = vmatpush2.msra.mxu0 0.0
        %2997 = vmatprep.subr.mxu0 0.0
        %2998 = vmatpush2.msra.mxu0 0.0
        %2999 = vmatprep.subr.mxu0 0.0
        %3000 = vmatpush2.msra.mxu0 0.0
        %3001 = vmatprep.subr.mxu0 0.0
        %3002 = vmatpush2.msra.mxu0 0.0
        %3003 = vmatprep.subr.mxu0 0.0
        %3004 = vmatpush2.msra.mxu0 0.0
        %3005 = vmatprep.subr.mxu0 0.0
        %3006 = vmatpush2.msra.mxu0 0.0
        %3007 = vmatprep.subr.mxu0 0.0
        %3008 = vmatpush2.msra.mxu0 0.0
        %3009 = vmatprep.subr.mxu0 0.0
        %3010 = vmatpush2.msra.mxu0 0.0
        %3011 = vmatprep.subr.mxu0 0.0
        %3012 = vmatpush2.msra.mxu0 0.0
        %3013 = vmatprep.subr.mxu0 0.0
        %3014 = vmatpush2.msra.mxu0 0.0
        %3015 = vmatprep.subr.mxu0 0.0
        %3016 = vmatpush2.msra.mxu0 0.0
        %3017 = vmatprep.subr.mxu0 0.0
        %3018 = vmatpush2.msra.mxu0 0.0
        %3019 = vmatprep.subr.mxu0 0.0
        %3020 = vmatpush2.msra.mxu0 0.0
        %3021 = vmatprep.subr.mxu0 0.0
        %3022 = vmatpush2.msra.mxu0 0.0
        %3023 = vmatprep.subr.mxu0 0.0
        %3024 = vmatpush2.msra.mxu0 0.0
        %3025 = vmatprep.mubr.f32.mxu0 0.0
        %v3026 = vand.u32 %v2732, 4294901760
        %v3027 = vsub.f32 %v2732, %v3026
        %v3028 = vand.u32 %v3027, 4294901760
        %3029 = vmatmul.mubr.f32.gmra.mxu0 %v3028
        %v3030 = vpop.f32.mrf.mxu0
        %v3031 = vadd.f32 %v2957, %v3030
        %v3032 = vpop.f32.mrf.mxu0
        %3033 = vdwg.mxu0
        %3034 = vmatprep.subr.mxu0 0.0
        %3035 = vmatpush1.msra.mxu0 0.0
        %3036 = vmatprep.subr.mxu0 0.0
        %3037 = vmatpush1.msra.mxu0 0.0
        %3038 = vmatprep.subr.mxu0 0.0
        %3039 = vmatpush1.msra.mxu0 0.0
        %3040 = vmatprep.subr.mxu0 0.0
        %3041 = vmatpush1.msra.mxu0 0.0
        %3042 = vmatprep.subr.mxu0 0.0
        %3043 = vmatpush1.msra.mxu0 0.0
        %3044 = vmatprep.subr.mxu0 0.0
        %3045 = vmatpush1.msra.mxu0 0.0
        %3046 = vmatprep.subr.mxu0 0.0
        %3047 = vmatpush1.msra.mxu0 0.0
        %3048 = vmatprep.subr.mxu0 0.0
        %3049 = vmatpush1.msra.mxu0 0.0
        %3050 = vmatprep.subr.mxu0 0.0
        %3051 = vmatpush1.msra.mxu0 0.0
        %3052 = vmatprep.subr.mxu0 0.0
        %3053 = vmatpush1.msra.mxu0 0.0
        %3054 = vmatprep.subr.mxu0 0.0
        %3055 = vmatpush1.msra.mxu0 0.0
        %3056 = vmatprep.subr.mxu0 0.0
        %3057 = vmatpush1.msra.mxu0 0.0
        %3058 = vmatprep.subr.mxu0 0.0
        %3059 = vmatpush1.msra.mxu0 0.0
        %3060 = vmatprep.subr.mxu0 0.0
        %3061 = vmatpush1.msra.mxu0 0.0
        %3062 = vmatprep.subr.mxu0 0.0
        %3063 = vmatpush1.msra.mxu0 0.0
        %3064 = vmatprep.subr.mxu0 0.0
        %v3065 = vand.u32 %v1807, 4294901760
        %v3066 = vsub.f32 %v1807, %v3065
        %v3067 = vand.u32 %v3066, 4294901760
        %3068 = vmatpush1.msra.mxu0 %v3067
        %3069 = vmatprep.subr.mxu0 0.0
        %3070 = vmatpush2.msra.mxu0 0.0
        %3071 = vmatprep.subr.mxu0 0.0
        %3072 = vmatpush2.msra.mxu0 0.0
        %3073 = vmatprep.subr.mxu0 0.0
        %3074 = vmatpush2.msra.mxu0 0.0
        %3075 = vmatprep.subr.mxu0 0.0
        %3076 = vmatpush2.msra.mxu0 0.0
        %3077 = vmatprep.subr.mxu0 0.0
        %3078 = vmatpush2.msra.mxu0 0.0
        %3079 = vmatprep.subr.mxu0 0.0
        %3080 = vmatpush2.msra.mxu0 0.0
        %3081 = vmatprep.subr.mxu0 0.0
        %3082 = vmatpush2.msra.mxu0 0.0
        %3083 = vmatprep.subr.mxu0 0.0
        %3084 = vmatpush2.msra.mxu0 0.0
        %3085 = vmatprep.subr.mxu0 0.0
        %3086 = vmatpush2.msra.mxu0 0.0
        %3087 = vmatprep.subr.mxu0 0.0
        %3088 = vmatpush2.msra.mxu0 0.0
        %3089 = vmatprep.subr.mxu0 0.0
        %3090 = vmatpush2.msra.mxu0 0.0
        %3091 = vmatprep.subr.mxu0 0.0
        %3092 = vmatpush2.msra.mxu0 0.0
        %3093 = vmatprep.subr.mxu0 0.0
        %3094 = vmatpush2.msra.mxu0 0.0
        %3095 = vmatprep.subr.mxu0 0.0
        %3096 = vmatpush2.msra.mxu0 0.0
        %3097 = vmatprep.subr.mxu0 0.0
        %3098 = vmatpush2.msra.mxu0 0.0
        %3099 = vmatprep.subr.mxu0 0.0
        %3100 = vmatpush2.msra.mxu0 0.0
        %3101 = vmatprep.mubr.f32.mxu0 0.0
        %v3102 = vand.u32 %v2732, 4294901760
        %3103 = vmatmul.mubr.f32.gmra.mxu0 %v3102
        %v3104 = vpop.f32.mrf.mxu0
        %v3105 = vadd.f32 %v3031, %v3104
        %v3106 = vpop.f32.mrf.mxu0
        %3107 = vdwg.mxu0
        %3108 = vmatprep.subr.mxu0 0.0
        %3109 = vmatpush1.msra.mxu0 0.0
        %3110 = vmatprep.subr.mxu0 0.0
        %3111 = vmatpush1.msra.mxu0 0.0
        %3112 = vmatprep.subr.mxu0 0.0
        %3113 = vmatpush1.msra.mxu0 0.0
        %3114 = vmatprep.subr.mxu0 0.0
        %3115 = vmatpush1.msra.mxu0 0.0
        %3116 = vmatprep.subr.mxu0 0.0
        %3117 = vmatpush1.msra.mxu0 0.0
        %3118 = vmatprep.subr.mxu0 0.0
        %3119 = vmatpush1.msra.mxu0 0.0
        %3120 = vmatprep.subr.mxu0 0.0
        %3121 = vmatpush1.msra.mxu0 0.0
        %3122 = vmatprep.subr.mxu0 0.0
        %3123 = vmatpush1.msra.mxu0 0.0
        %3124 = vmatprep.subr.mxu0 0.0
        %3125 = vmatpush1.msra.mxu0 0.0
        %3126 = vmatprep.subr.mxu0 0.0
        %3127 = vmatpush1.msra.mxu0 0.0
        %3128 = vmatprep.subr.mxu0 0.0
        %3129 = vmatpush1.msra.mxu0 0.0
        %3130 = vmatprep.subr.mxu0 0.0
        %3131 = vmatpush1.msra.mxu0 0.0
        %3132 = vmatprep.subr.mxu0 0.0
        %3133 = vmatpush1.msra.mxu0 0.0
        %3134 = vmatprep.subr.mxu0 0.0
        %3135 = vmatpush1.msra.mxu0 0.0
        %3136 = vmatprep.subr.mxu0 0.0
        %3137 = vmatpush1.msra.mxu0 0.0
        %3138 = vmatprep.subr.mxu0 0.0
        %v3139 = vand.u32 %v1807, 4294901760
        %3140 = vmatpush1.msra.mxu0 %v3139
        %3141 = vmatprep.subr.mxu0 0.0
        %3142 = vmatpush2.msra.mxu0 0.0
        %3143 = vmatprep.subr.mxu0 0.0
        %3144 = vmatpush2.msra.mxu0 0.0
        %3145 = vmatprep.subr.mxu0 0.0
        %3146 = vmatpush2.msra.mxu0 0.0
        %3147 = vmatprep.subr.mxu0 0.0
        %3148 = vmatpush2.msra.mxu0 0.0
        %3149 = vmatprep.subr.mxu0 0.0
        %3150 = vmatpush2.msra.mxu0 0.0
        %3151 = vmatprep.subr.mxu0 0.0
        %3152 = vmatpush2.msra.mxu0 0.0
        %3153 = vmatprep.subr.mxu0 0.0
        %3154 = vmatpush2.msra.mxu0 0.0
        %3155 = vmatprep.subr.mxu0 0.0
        %3156 = vmatpush2.msra.mxu0 0.0
        %3157 = vmatprep.subr.mxu0 0.0
        %3158 = vmatpush2.msra.mxu0 0.0
        %3159 = vmatprep.subr.mxu0 0.0
        %3160 = vmatpush2.msra.mxu0 0.0
        %3161 = vmatprep.subr.mxu0 0.0
        %3162 = vmatpush2.msra.mxu0 0.0
        %3163 = vmatprep.subr.mxu0 0.0
        %3164 = vmatpush2.msra.mxu0 0.0
        %3165 = vmatprep.subr.mxu0 0.0
        %3166 = vmatpush2.msra.mxu0 0.0
        %3167 = vmatprep.subr.mxu0 0.0
        %3168 = vmatpush2.msra.mxu0 0.0
        %3169 = vmatprep.subr.mxu0 0.0
        %3170 = vmatpush2.msra.mxu0 0.0
        %3171 = vmatprep.subr.mxu0 0.0
        %3172 = vmatpush2.msra.mxu0 0.0
        %3173 = vmatprep.mubr.f32.mxu0 0.0
        %v3174 = vand.u32 %v2732, 4294901760
        %3175 = vmatmul.mubr.f32.gmra.mxu0 %v3174
        %v3176 = vpop.f32.mrf.mxu0
        %v3177 = vadd.f32 %v3105, %v3176
        %v3178 = vpop.f32.mrf.mxu0
        %3179 = vdwg.mxu0
        %v3181 = vsel %vm2708, %v2730, 0
        %3183 = vmatprep.subr.mxu0 0.0
        %3184 = vmatpush1.msra.mxu0 0.0
        %3185 = vmatprep.subr.mxu0 0.0
        %3186 = vmatpush1.msra.mxu0 0.0
        %3187 = vmatprep.subr.mxu0 0.0
        %3188 = vmatpush1.msra.mxu0 0.0
        %3189 = vmatprep.subr.mxu0 0.0
        %3190 = vmatpush1.msra.mxu0 0.0
        %3191 = vmatprep.subr.mxu0 0.0
        %3192 = vmatpush1.msra.mxu0 0.0
        %3193 = vmatprep.subr.mxu0 0.0
        %3194 = vmatpush1.msra.mxu0 0.0
        %3195 = vmatprep.subr.mxu0 0.0
        %3196 = vmatpush1.msra.mxu0 0.0
        %3197 = vmatprep.subr.mxu0 0.0
        %3198 = vmatpush1.msra.mxu0 0.0
        %3199 = vmatprep.subr.mxu0 0.0
        %3200 = vmatpush1.msra.mxu0 0.0
        %3201 = vmatprep.subr.mxu0 0.0
        %3202 = vmatpush1.msra.mxu0 0.0
        %3203 = vmatprep.subr.mxu0 0.0
        %3204 = vmatpush1.msra.mxu0 0.0
        %3205 = vmatprep.subr.mxu0 0.0
        %3206 = vmatpush1.msra.mxu0 0.0
        %3207 = vmatprep.subr.mxu0 0.0
        %3208 = vmatpush1.msra.mxu0 0.0
        %3209 = vmatprep.subr.mxu0 0.0
        %3210 = vmatpush1.msra.mxu0 0.0
        %3211 = vmatprep.subr.mxu0 0.0
        %3212 = vmatpush1.msra.mxu0 0.0
        %3213 = vmatprep.subr.mxu0 0.0
        %v3214 = vand.u32 %v1813, 4294901760
        %3215 = vmatpush1.msra.mxu0 %v3214
        %3216 = vmatprep.subr.mxu0 0.0
        %3217 = vmatpush2.msra.mxu0 0.0
        %3218 = vmatprep.subr.mxu0 0.0
        %3219 = vmatpush2.msra.mxu0 0.0
        %3220 = vmatprep.subr.mxu0 0.0
        %3221 = vmatpush2.msra.mxu0 0.0
        %3222 = vmatprep.subr.mxu0 0.0
        %3223 = vmatpush2.msra.mxu0 0.0
        %3224 = vmatprep.subr.mxu0 0.0
        %3225 = vmatpush2.msra.mxu0 0.0
        %3226 = vmatprep.subr.mxu0 0.0
        %3227 = vmatpush2.msra.mxu0 0.0
        %3228 = vmatprep.subr.mxu0 0.0
        %3229 = vmatpush2.msra.mxu0 0.0
        %3230 = vmatprep.subr.mxu0 0.0
        %3231 = vmatpush2.msra.mxu0 0.0
        %3232 = vmatprep.subr.mxu0 0.0
        %3233 = vmatpush2.msra.mxu0 0.0
        %3234 = vmatprep.subr.mxu0 0.0
        %3235 = vmatpush2.msra.mxu0 0.0
        %3236 = vmatprep.subr.mxu0 0.0
        %3237 = vmatpush2.msra.mxu0 0.0
        %3238 = vmatprep.subr.mxu0 0.0
        %3239 = vmatpush2.msra.mxu0 0.0
        %3240 = vmatprep.subr.mxu0 0.0
        %3241 = vmatpush2.msra.mxu0 0.0
        %3242 = vmatprep.subr.mxu0 0.0
        %3243 = vmatpush2.msra.mxu0 0.0
        %3244 = vmatprep.subr.mxu0 0.0
        %3245 = vmatpush2.msra.mxu0 0.0
        %3246 = vmatprep.subr.mxu0 0.0
        %3247 = vmatpush2.msra.mxu0 0.0
        %3248 = vmatprep.mubr.f32.mxu0 0.0
        %v3249 = vand.u32 %v3181, 4294901760
        %v3250 = vsub.f32 %v3181, %v3249
        %v3251 = vand.u32 %v3250, 4294901760
        %v3252 = vsub.f32 %v3250, %v3251
        %v3253 = vand.u32 %v3252, 4294901760
        %3254 = vmatmul.mubr.f32.gmra.mxu0 %v3253
        %v3255 = vpop.f32.mrf.mxu0
        %v3256 = vadd.f32 0.0, %v3255
        %v3257 = vpop.f32.mrf.mxu0
        %3258 = vdwg.mxu0
        %3259 = vmatprep.subr.mxu0 0.0
        %3260 = vmatpush1.msra.mxu0 0.0
        %3261 = vmatprep.subr.mxu0 0.0
        %3262 = vmatpush1.msra.mxu0 0.0
        %3263 = vmatprep.subr.mxu0 0.0
        %3264 = vmatpush1.msra.mxu0 0.0
        %3265 = vmatprep.subr.mxu0 0.0
        %3266 = vmatpush1.msra.mxu0 0.0
        %3267 = vmatprep.subr.mxu0 0.0
        %3268 = vmatpush1.msra.mxu0 0.0
        %3269 = vmatprep.subr.mxu0 0.0
        %3270 = vmatpush1.msra.mxu0 0.0
        %3271 = vmatprep.subr.mxu0 0.0
        %3272 = vmatpush1.msra.mxu0 0.0
        %3273 = vmatprep.subr.mxu0 0.0
        %3274 = vmatpush1.msra.mxu0 0.0
        %3275 = vmatprep.subr.mxu0 0.0
        %3276 = vmatpush1.msra.mxu0 0.0
        %3277 = vmatprep.subr.mxu0 0.0
        %3278 = vmatpush1.msra.mxu0 0.0
        %3279 = vmatprep.subr.mxu0 0.0
        %3280 = vmatpush1.msra.mxu0 0.0
        %3281 = vmatprep.subr.mxu0 0.0
        %3282 = vmatpush1.msra.mxu0 0.0
        %3283 = vmatprep.subr.mxu0 0.0
        %3284 = vmatpush1.msra.mxu0 0.0
        %3285 = vmatprep.subr.mxu0 0.0
        %3286 = vmatpush1.msra.mxu0 0.0
        %3287 = vmatprep.subr.mxu0 0.0
        %3288 = vmatpush1.msra.mxu0 0.0
        %3289 = vmatprep.subr.mxu0 0.0
        %v3290 = vand.u32 %v1813, 4294901760
        %v3291 = vsub.f32 %v1813, %v3290
        %v3292 = vand.u32 %v3291, 4294901760
        %v3293 = vsub.f32 %v3291, %v3292
        %v3294 = vand.u32 %v3293, 4294901760
        %3295 = vmatpush1.msra.mxu0 %v3294
        %3296 = vmatprep.subr.mxu0 0.0
        %3297 = vmatpush2.msra.mxu0 0.0
        %3298 = vmatprep.subr.mxu0 0.0
        %3299 = vmatpush2.msra.mxu0 0.0
        %3300 = vmatprep.subr.mxu0 0.0
        %3301 = vmatpush2.msra.mxu0 0.0
        %3302 = vmatprep.subr.mxu0 0.0
        %3303 = vmatpush2.msra.mxu0 0.0
        %3304 = vmatprep.subr.mxu0 0.0
        %3305 = vmatpush2.msra.mxu0 0.0
        %3306 = vmatprep.subr.mxu0 0.0
        %3307 = vmatpush2.msra.mxu0 0.0
        %3308 = vmatprep.subr.mxu0 0.0
        %3309 = vmatpush2.msra.mxu0 0.0
        %3310 = vmatprep.subr.mxu0 0.0
        %3311 = vmatpush2.msra.mxu0 0.0
        %3312 = vmatprep.subr.mxu0 0.0
        %3313 = vmatpush2.msra.mxu0 0.0
        %3314 = vmatprep.subr.mxu0 0.0
        %3315 = vmatpush2.msra.mxu0 0.0
        %3316 = vmatprep.subr.mxu0 0.0
        %3317 = vmatpush2.msra.mxu0 0.0
        %3318 = vmatprep.subr.mxu0 0.0
        %3319 = vmatpush2.msra.mxu0 0.0
        %3320 = vmatprep.subr.mxu0 0.0
        %3321 = vmatpush2.msra.mxu0 0.0
        %3322 = vmatprep.subr.mxu0 0.0
        %3323 = vmatpush2.msra.mxu0 0.0
        %3324 = vmatprep.subr.mxu0 0.0
        %3325 = vmatpush2.msra.mxu0 0.0
        %3326 = vmatprep.subr.mxu0 0.0
        %3327 = vmatpush2.msra.mxu0 0.0
        %3328 = vmatprep.mubr.f32.mxu0 0.0
        %v3329 = vand.u32 %v3181, 4294901760
        %3330 = vmatmul.mubr.f32.gmra.mxu0 %v3329
        %v3331 = vpop.f32.mrf.mxu0
        %v3332 = vadd.f32 %v3256, %v3331
        %v3333 = vpop.f32.mrf.mxu0
        %3334 = vdwg.mxu0
        %3335 = vmatprep.subr.mxu0 0.0
        %3336 = vmatpush1.msra.mxu0 0.0
        %3337 = vmatprep.subr.mxu0 0.0
        %3338 = vmatpush1.msra.mxu0 0.0
        %3339 = vmatprep.subr.mxu0 0.0
        %3340 = vmatpush1.msra.mxu0 0.0
        %3341 = vmatprep.subr.mxu0 0.0
        %3342 = vmatpush1.msra.mxu0 0.0
        %3343 = vmatprep.subr.mxu0 0.0
        %3344 = vmatpush1.msra.mxu0 0.0
        %3345 = vmatprep.subr.mxu0 0.0
        %3346 = vmatpush1.msra.mxu0 0.0
        %3347 = vmatprep.subr.mxu0 0.0
        %3348 = vmatpush1.msra.mxu0 0.0
        %3349 = vmatprep.subr.mxu0 0.0
        %3350 = vmatpush1.msra.mxu0 0.0
        %3351 = vmatprep.subr.mxu0 0.0
        %3352 = vmatpush1.msra.mxu0 0.0
        %3353 = vmatprep.subr.mxu0 0.0
        %3354 = vmatpush1.msra.mxu0 0.0
        %3355 = vmatprep.subr.mxu0 0.0
        %3356 = vmatpush1.msra.mxu0 0.0
        %3357 = vmatprep.subr.mxu0 0.0
        %3358 = vmatpush1.msra.mxu0 0.0
        %3359 = vmatprep.subr.mxu0 0.0
        %3360 = vmatpush1.msra.mxu0 0.0
        %3361 = vmatprep.subr.mxu0 0.0
        %3362 = vmatpush1.msra.mxu0 0.0
        %3363 = vmatprep.subr.mxu0 0.0
        %3364 = vmatpush1.msra.mxu0 0.0
        %3365 = vmatprep.subr.mxu0 0.0
        %v3366 = vand.u32 %v1813, 4294901760
        %v3367 = vsub.f32 %v1813, %v3366
        %3368 = vmatpush1.msra.mxu0 %v3367
        %3369 = vmatprep.subr.mxu0 0.0
        %3370 = vmatpush2.msra.mxu0 0.0
        %3371 = vmatprep.subr.mxu0 0.0
        %3372 = vmatpush2.msra.mxu0 0.0
        %3373 = vmatprep.subr.mxu0 0.0
        %3374 = vmatpush2.msra.mxu0 0.0
        %3375 = vmatprep.subr.mxu0 0.0
        %3376 = vmatpush2.msra.mxu0 0.0
        %3377 = vmatprep.subr.mxu0 0.0
        %3378 = vmatpush2.msra.mxu0 0.0
        %3379 = vmatprep.subr.mxu0 0.0
        %3380 = vmatpush2.msra.mxu0 0.0
        %3381 = vmatprep.subr.mxu0 0.0
        %3382 = vmatpush2.msra.mxu0 0.0
        %3383 = vmatprep.subr.mxu0 0.0
        %3384 = vmatpush2.msra.mxu0 0.0
        %3385 = vmatprep.subr.mxu0 0.0
        %3386 = vmatpush2.msra.mxu0 0.0
        %3387 = vmatprep.subr.mxu0 0.0
        %3388 = vmatpush2.msra.mxu0 0.0
        %3389 = vmatprep.subr.mxu0 0.0
        %3390 = vmatpush2.msra.mxu0 0.0
        %3391 = vmatprep.subr.mxu0 0.0
        %3392 = vmatpush2.msra.mxu0 0.0
        %3393 = vmatprep.subr.mxu0 0.0
        %3394 = vmatpush2.msra.mxu0 0.0
        %3395 = vmatprep.subr.mxu0 0.0
        %3396 = vmatpush2.msra.mxu0 0.0
        %3397 = vmatprep.subr.mxu0 0.0
        %3398 = vmatpush2.msra.mxu0 0.0
        %3399 = vmatprep.subr.mxu0 0.0
        %3400 = vmatpush2.msra.mxu0 0.0
        %3401 = vmatprep.mubr.f32.mxu0 0.0
        %v3402 = vand.u32 %v3181, 4294901760
        %v3403 = vsub.f32 %v3181, %v3402
        %3404 = vmatmul.mubr.f32.gmra.mxu0 %v3403
        %v3405 = vpop.f32.mrf.mxu0
        %v3406 = vadd.f32 %v3332, %v3405
        %v3407 = vpop.f32.mrf.mxu0
        %3408 = vdwg.mxu0
        %3409 = vmatprep.subr.mxu0 0.0
        %3410 = vmatpush1.msra.mxu0 0.0
        %3411 = vmatprep.subr.mxu0 0.0
        %3412 = vmatpush1.msra.mxu0 0.0
        %3413 = vmatprep.subr.mxu0 0.0
        %3414 = vmatpush1.msra.mxu0 0.0
        %3415 = vmatprep.subr.mxu0 0.0
        %3416 = vmatpush1.msra.mxu0 0.0
        %3417 = vmatprep.subr.mxu0 0.0
        %3418 = vmatpush1.msra.mxu0 0.0
        %3419 = vmatprep.subr.mxu0 0.0
        %3420 = vmatpush1.msra.mxu0 0.0
        %3421 = vmatprep.subr.mxu0 0.0
        %3422 = vmatpush1.msra.mxu0 0.0
        %3423 = vmatprep.subr.mxu0 0.0
        %3424 = vmatpush1.msra.mxu0 0.0
        %3425 = vmatprep.subr.mxu0 0.0
        %3426 = vmatpush1.msra.mxu0 0.0
        %3427 = vmatprep.subr.mxu0 0.0
        %3428 = vmatpush1.msra.mxu0 0.0
        %3429 = vmatprep.subr.mxu0 0.0
        %3430 = vmatpush1.msra.mxu0 0.0
        %3431 = vmatprep.subr.mxu0 0.0
        %3432 = vmatpush1.msra.mxu0 0.0
        %3433 = vmatprep.subr.mxu0 0.0
        %3434 = vmatpush1.msra.mxu0 0.0
        %3435 = vmatprep.subr.mxu0 0.0
        %3436 = vmatpush1.msra.mxu0 0.0
        %3437 = vmatprep.subr.mxu0 0.0
        %3438 = vmatpush1.msra.mxu0 0.0
        %3439 = vmatprep.subr.mxu0 0.0
        %v3440 = vand.u32 %v1813, 4294901760
        %3441 = vmatpush1.msra.mxu0 %v3440
        %3442 = vmatprep.subr.mxu0 0.0
        %3443 = vmatpush2.msra.mxu0 0.0
        %3444 = vmatprep.subr.mxu0 0.0
        %3445 = vmatpush2.msra.mxu0 0.0
        %3446 = vmatprep.subr.mxu0 0.0
        %3447 = vmatpush2.msra.mxu0 0.0
        %3448 = vmatprep.subr.mxu0 0.0
        %3449 = vmatpush2.msra.mxu0 0.0
        %3450 = vmatprep.subr.mxu0 0.0
        %3451 = vmatpush2.msra.mxu0 0.0
        %3452 = vmatprep.subr.mxu0 0.0
        %3453 = vmatpush2.msra.mxu0 0.0
        %3454 = vmatprep.subr.mxu0 0.0
        %3455 = vmatpush2.msra.mxu0 0.0
        %3456 = vmatprep.subr.mxu0 0.0
        %3457 = vmatpush2.msra.mxu0 0.0
        %3458 = vmatprep.subr.mxu0 0.0
        %3459 = vmatpush2.msra.mxu0 0.0
        %3460 = vmatprep.subr.mxu0 0.0
        %3461 = vmatpush2.msra.mxu0 0.0
        %3462 = vmatprep.subr.mxu0 0.0
        %3463 = vmatpush2.msra.mxu0 0.0
        %3464 = vmatprep.subr.mxu0 0.0
        %3465 = vmatpush2.msra.mxu0 0.0
        %3466 = vmatprep.subr.mxu0 0.0
        %3467 = vmatpush2.msra.mxu0 0.0
        %3468 = vmatprep.subr.mxu0 0.0
        %3469 = vmatpush2.msra.mxu0 0.0
        %3470 = vmatprep.subr.mxu0 0.0
        %3471 = vmatpush2.msra.mxu0 0.0
        %3472 = vmatprep.subr.mxu0 0.0
        %3473 = vmatpush2.msra.mxu0 0.0
        %3474 = vmatprep.mubr.f32.mxu0 0.0
        %v3475 = vand.u32 %v3181, 4294901760
        %v3476 = vsub.f32 %v3181, %v3475
        %v3477 = vand.u32 %v3476, 4294901760
        %3478 = vmatmul.mubr.f32.gmra.mxu0 %v3477
        %v3479 = vpop.f32.mrf.mxu0
        %v3480 = vadd.f32 %v3406, %v3479
        %v3481 = vpop.f32.mrf.mxu0
        %3482 = vdwg.mxu0
        %3483 = vmatprep.subr.mxu0 0.0
        %3484 = vmatpush1.msra.mxu0 0.0
        %3485 = vmatprep.subr.mxu0 0.0
        %3486 = vmatpush1.msra.mxu0 0.0
        %3487 = vmatprep.subr.mxu0 0.0
        %3488 = vmatpush1.msra.mxu0 0.0
        %3489 = vmatprep.subr.mxu0 0.0
        %3490 = vmatpush1.msra.mxu0 0.0
        %3491 = vmatprep.subr.mxu0 0.0
        %3492 = vmatpush1.msra.mxu0 0.0
        %3493 = vmatprep.subr.mxu0 0.0
        %3494 = vmatpush1.msra.mxu0 0.0
        %3495 = vmatprep.subr.mxu0 0.0
        %3496 = vmatpush1.msra.mxu0 0.0
        %3497 = vmatprep.subr.mxu0 0.0
        %3498 = vmatpush1.msra.mxu0 0.0
        %3499 = vmatprep.subr.mxu0 0.0
        %3500 = vmatpush1.msra.mxu0 0.0
        %3501 = vmatprep.subr.mxu0 0.0
        %3502 = vmatpush1.msra.mxu0 0.0
        %3503 = vmatprep.subr.mxu0 0.0
        %3504 = vmatpush1.msra.mxu0 0.0
        %3505 = vmatprep.subr.mxu0 0.0
        %3506 = vmatpush1.msra.mxu0 0.0
        %3507 = vmatprep.subr.mxu0 0.0
        %3508 = vmatpush1.msra.mxu0 0.0
        %3509 = vmatprep.subr.mxu0 0.0
        %3510 = vmatpush1.msra.mxu0 0.0
        %3511 = vmatprep.subr.mxu0 0.0
        %3512 = vmatpush1.msra.mxu0 0.0
        %3513 = vmatprep.subr.mxu0 0.0
        %v3514 = vand.u32 %v1813, 4294901760
        %v3515 = vsub.f32 %v1813, %v3514
        %v3516 = vand.u32 %v3515, 4294901760
        %3517 = vmatpush1.msra.mxu0 %v3516
        %3518 = vmatprep.subr.mxu0 0.0
        %3519 = vmatpush2.msra.mxu0 0.0
        %3520 = vmatprep.subr.mxu0 0.0
        %3521 = vmatpush2.msra.mxu0 0.0
        %3522 = vmatprep.subr.mxu0 0.0
        %3523 = vmatpush2.msra.mxu0 0.0
        %3524 = vmatprep.subr.mxu0 0.0
        %3525 = vmatpush2.msra.mxu0 0.0
        %3526 = vmatprep.subr.mxu0 0.0
        %3527 = vmatpush2.msra.mxu0 0.0
        %3528 = vmatprep.subr.mxu0 0.0
        %3529 = vmatpush2.msra.mxu0 0.0
        %3530 = vmatprep.subr.mxu0 0.0
        %3531 = vmatpush2.msra.mxu0 0.0
        %3532 = vmatprep.subr.mxu0 0.0
        %3533 = vmatpush2.msra.mxu0 0.0
        %3534 = vmatprep.subr.mxu0 0.0
        %3535 = vmatpush2.msra.mxu0 0.0
        %3536 = vmatprep.subr.mxu0 0.0
        %3537 = vmatpush2.msra.mxu0 0.0
        %3538 = vmatprep.subr.mxu0 0.0
        %3539 = vmatpush2.msra.mxu0 0.0
        %3540 = vmatprep.subr.mxu0 0.0
        %3541 = vmatpush2.msra.mxu0 0.0
        %3542 = vmatprep.subr.mxu0 0.0
        %3543 = vmatpush2.msra.mxu0 0.0
        %3544 = vmatprep.subr.mxu0 0.0
        %3545 = vmatpush2.msra.mxu0 0.0
        %3546 = vmatprep.subr.mxu0 0.0
        %3547 = vmatpush2.msra.mxu0 0.0
        %3548 = vmatprep.subr.mxu0 0.0
        %3549 = vmatpush2.msra.mxu0 0.0
        %3550 = vmatprep.mubr.f32.mxu0 0.0
        %v3551 = vand.u32 %v3181, 4294901760
        %3552 = vmatmul.mubr.f32.gmra.mxu0 %v3551
        %v3553 = vpop.f32.mrf.mxu0
        %v3554 = vadd.f32 %v3480, %v3553
        %v3555 = vpop.f32.mrf.mxu0
        %3556 = vdwg.mxu0
        %3557 = vmatprep.subr.mxu0 0.0
        %3558 = vmatpush1.msra.mxu0 0.0
        %3559 = vmatprep.subr.mxu0 0.0
        %3560 = vmatpush1.msra.mxu0 0.0
        %3561 = vmatprep.subr.mxu0 0.0
        %3562 = vmatpush1.msra.mxu0 0.0
        %3563 = vmatprep.subr.mxu0 0.0
        %3564 = vmatpush1.msra.mxu0 0.0
        %3565 = vmatprep.subr.mxu0 0.0
        %3566 = vmatpush1.msra.mxu0 0.0
        %3567 = vmatprep.subr.mxu0 0.0
        %3568 = vmatpush1.msra.mxu0 0.0
        %3569 = vmatprep.subr.mxu0 0.0
        %3570 = vmatpush1.msra.mxu0 0.0
        %3571 = vmatprep.subr.mxu0 0.0
        %3572 = vmatpush1.msra.mxu0 0.0
        %3573 = vmatprep.subr.mxu0 0.0
        %3574 = vmatpush1.msra.mxu0 0.0
        %3575 = vmatprep.subr.mxu0 0.0
        %3576 = vmatpush1.msra.mxu0 0.0
        %3577 = vmatprep.subr.mxu0 0.0
        %3578 = vmatpush1.msra.mxu0 0.0
        %3579 = vmatprep.subr.mxu0 0.0
        %3580 = vmatpush1.msra.mxu0 0.0
        %3581 = vmatprep.subr.mxu0 0.0
        %3582 = vmatpush1.msra.mxu0 0.0
        %3583 = vmatprep.subr.mxu0 0.0
        %3584 = vmatpush1.msra.mxu0 0.0
        %3585 = vmatprep.subr.mxu0 0.0
        %3586 = vmatpush1.msra.mxu0 0.0
        %3587 = vmatprep.subr.mxu0 0.0
        %v3588 = vand.u32 %v1813, 4294901760
        %3589 = vmatpush1.msra.mxu0 %v3588
        %3590 = vmatprep.subr.mxu0 0.0
        %3591 = vmatpush2.msra.mxu0 0.0
        %3592 = vmatprep.subr.mxu0 0.0
        %3593 = vmatpush2.msra.mxu0 0.0
        %3594 = vmatprep.subr.mxu0 0.0
        %3595 = vmatpush2.msra.mxu0 0.0
        %3596 = vmatprep.subr.mxu0 0.0
        %3597 = vmatpush2.msra.mxu0 0.0
        %3598 = vmatprep.subr.mxu0 0.0
        %3599 = vmatpush2.msra.mxu0 0.0
        %3600 = vmatprep.subr.mxu0 0.0
        %3601 = vmatpush2.msra.mxu0 0.0
        %3602 = vmatprep.subr.mxu0 0.0
        %3603 = vmatpush2.msra.mxu0 0.0
        %3604 = vmatprep.subr.mxu0 0.0
        %3605 = vmatpush2.msra.mxu0 0.0
        %3606 = vmatprep.subr.mxu0 0.0
        %3607 = vmatpush2.msra.mxu0 0.0
        %3608 = vmatprep.subr.mxu0 0.0
        %3609 = vmatpush2.msra.mxu0 0.0
        %3610 = vmatprep.subr.mxu0 0.0
        %3611 = vmatpush2.msra.mxu0 0.0
        %3612 = vmatprep.subr.mxu0 0.0
        %3613 = vmatpush2.msra.mxu0 0.0
        %3614 = vmatprep.subr.mxu0 0.0
        %3615 = vmatpush2.msra.mxu0 0.0
        %3616 = vmatprep.subr.mxu0 0.0
        %3617 = vmatpush2.msra.mxu0 0.0
        %3618 = vmatprep.subr.mxu0 0.0
        %3619 = vmatpush2.msra.mxu0 0.0
        %3620 = vmatprep.subr.mxu0 0.0
        %3621 = vmatpush2.msra.mxu0 0.0
        %3622 = vmatprep.mubr.f32.mxu0 0.0
        %v3623 = vand.u32 %v3181, 4294901760
        %3624 = vmatmul.mubr.f32.gmra.mxu0 %v3623
        %v3625 = vpop.f32.mrf.mxu0
        %v3626 = vadd.f32 %v3554, %v3625
        %v3627 = vpop.f32.mrf.mxu0
        %3628 = vdwg.mxu0
        %3629 = vst [vmem:[#allocation7] sm:$0xff] %v3177
        %3630 = vst [vmem:[#allocation7 + $0x8] sm:$0xff] %v3626
        // Predicated region
        $region41: #{tpu_custom_call.1} parent=27 // pred_check
          %p3631 = pneg %p93
        $region42: #{tpu_custom_call.1} parent=27 // pred_check_branch
          %3633 = sbr.rel (%p3631) target = $region44
        $region43: #{tpu_custom_call.1} parent=27 // pred_region
          %s3634 = smul.u32 2, %s20
          %s3636 = ssub.s32 256, 256
          %3637 = vsyncadd [#allocation4], %s3636
          %s3638 = smul.addr %s3634, 128
          %s3639 = scalar_lea.hbm %s2, %s3638
          %s3640 = sshll.u32 [#allocation7], 4
          %s3641 = int_to_ptr.vmem [resolvable:$true] %s3640
          %3646 = dma.vmem_to_hbm [thread:$0]  %s3641, 256, %s3639, [#allocation4], 128, 128, 8
        $region44: #{tpu_custom_call.1} parent=27 // pred_fallthru
          _
        // Predicated region
        $region45: #{tpu_custom_call.1} parent=27 // pred_check
          %p3647 = pneg %p93
        $region46: #{tpu_custom_call.1} parent=27 // pred_check_branch
          %3649 = sbr.rel (%p3647) target = $region48
        $region47: #{tpu_custom_call.1} parent=27 // pred_region
          %3650 = dma.done [#allocation4], 256
        $region48: #{tpu_custom_call.1} parent=27 // pred_fallthru
          _
      $region28: #{tpu_custom_call.1} parent=5 // pred_fallthru
        _
      %p3651 = scmp.le.s32.totalorder 2, %s11
      // Predicated region
      $region49: #{tpu_custom_call.1} parent=5 // pred_check
        %p3652 = pneg %p3651
      $region50: #{tpu_custom_call.1} parent=5 // pred_check_branch
        %3654 = sbr.rel (%p3652) target = $region52
      $region51: #{tpu_custom_call.1} parent=5 // pred_region
        %s3655 = ssub.s32 %s11, 2
      $region52: #{tpu_custom_call.1} parent=5 // pred_fallthru
        _
    $region6: #{tpu_custom_call.1} parent=1 // loop_footer
      %s15 = sadd.s32 1, %s11
    $region7: #{tpu_custom_call.1} parent=1 // loop_footer_branch
      %10 = sbr.rel target = $region3
    $region8: #{tpu_custom_call.1} parent=1 // loop_exit
      _
    %3656 = vsyncpa [#allocation3], 1
    %s3657 = scalar_lea.sflag [#allocation3], 1
    %3658 = vsyncpa %s3657, 1
    %3659 = vsyncpa [#allocation6], 1
    %3660 = vsyncpa [#allocation4], 1
    %s3661 = scalar_lea.sflag [#allocation4], 1
    %3662 = vsyncpa %s3661, 1

</llo_original>
